<compile_context>
chip_gen: v5e
topology: v5e:2x2
jax: 0.10.0
libtpu: 0.0.40
codegen_flags: <defaults>
</compile_context>

<pallas_src>
import numpy as np

import jax
import jax.numpy as jnp
from jax.experimental import pallas as pl
from jax.experimental.pallas import tpu as pltpu


def _conv_hw_band(w_eff, H, W):
    """Fold the (H, W) part of the 7x7x7 conv (incl. zero padding) into matmuls.

    w_eff: (2, 7, 7, 7) float32 effective conv weights (BN scale already folded).
    Returns band: (2*7, H*W, H*W) with
        band[c*7 + kd][hi*W + wi, ho*W + wo] = w_eff[c, kd, hi-ho+3, wi-wo+3]
    so that  out[d, :] += pad[c, d+kd, :] @ band[c*7 + kd].
    """
    HW = H * W
    band = np.zeros((2, 7, HW, HW), np.float32)
    for kh in range(7):
        dh = kh - 3
        for kw in range(7):
            dw = kw - 3
            for ho in range(max(0, -dh), min(H, H - dh)):
                hi = ho + dh
                for wo in range(max(0, -dw), min(W, W - dw)):
                    wi = wo + dw
                    band[:, :, hi * W + wi, ho * W + wo] = w_eff[:, :, kh, kw]
    return band.reshape(2 * 7, HW, HW)


def _spatial_gate3d_kernel(x_ref, band_ref, bias_ref, out_ref, pad_ref):
    # x_ref:    (1, C, D, HW)  f32   one batch element, spatial flattened to lanes
    # band_ref: (14, HW, HW)   f32   (H, W)-conv-as-matmul matrices (BN-scaled)
    # bias_ref: (1,)           f32   SMEM, folded BatchNorm bias
    # out_ref:  (1, C, D, HW)  f32
    # pad_ref:  (2, D+6, HW)   f32   VMEM scratch: depth-padded channel pool
    C = x_ref.shape[1]
    D = x_ref.shape[2]
    HW = x_ref.shape[3]

    x = x_ref[0]                                   # (C, D, HW)

    # ChannelPool: channel 0 = max over C, channel 1 = mean over C.
    pooled_max = jnp.max(x, axis=0)                # (D, HW)
    pooled_mean = jnp.mean(x, axis=0)              # (D, HW)

    # Zero-pad along depth by 3 on each side (the conv's D padding).
    pad_ref[...] = jnp.zeros_like(pad_ref)
    pad_ref[0, 3:3 + D, :] = pooled_max
    pad_ref[1, 3:3 + D, :] = pooled_mean

    # Conv3d(2 -> 1, k=7, padding=3) + folded BatchNorm:
    #   y[d, :] = bias + sum_{c, kd} pad[c, d + kd, :] @ band[c*7 + kd]
    acc = jnp.full((D, HW), bias_ref[0], dtype=jnp.float32)
    for c in range(2):
        for kd in range(7):
            patch = pad_ref[c, kd:kd + D, :]       # (D, HW)
            acc = acc + jnp.dot(patch, band_ref[c * 7 + kd],
                                preferred_element_type=jnp.float32)

    scale = jax.nn.sigmoid(acc)                    # (D, HW)
    out_ref[0] = x * scale[None, :, :]             # broadcast gate over channels


def spatial_gate3d(x, conv_w, bn_gamma, bn_beta, bn_mean, bn_var, eps=1e-5):
    """SpatialGate3d forward.

    x:      (B, C, D, H, W) float32
    conv_w: (1, 2, 7, 7, 7) float32  -- Conv3d(2, 1, 7, padding=3, bias=False).weight
    bn_*:   scalars         -- BatchNorm3d(1) gamma / beta / running_mean / running_var
    Returns (B, C, D, H, W) float32.
    """
    B, C, D, H, W = x.shape
    HW = H * W

    # ---- host-side weight plumbing (free): fold BN into conv weight + bias ----
    s = float(bn_gamma) / float(np.sqrt(float(bn_var) + eps))
    w_eff = np.asarray(conv_w, np.float32)[0] * np.float32(s)     # (2, 7, 7, 7)
    bias_eff = np.float32(float(bn_beta) - float(bn_mean) * s)
    band = jnp.asarray(_conv_hw_band(w_eff, H, W))                # (14, HW, HW)
    bias = jnp.asarray([bias_eff], dtype=jnp.float32)             # (1,)

    x_flat = x.reshape(B, C, D, HW)

    flops = int(B * (2 * 14 * D * HW * HW + 6 * C * D * HW))
    bytes_accessed = int(2 * B * C * D * HW * 4 + band.size * 4 + 4)

    out = pl.pallas_call(
        _spatial_gate3d_kernel,
        out_shape=jax.ShapeDtypeStruct((B, C, D, HW), jnp.float32),
        grid_spec=pltpu.PrefetchScalarGridSpec(
            num_scalar_prefetch=0,
            grid=(B,),
            in_specs=[
                pl.BlockSpec((1, C, D, HW), lambda b: (b, 0, 0, 0)),
                pl.BlockSpec((2 * 7, HW, HW), lambda b: (0, 0, 0)),
                pl.BlockSpec(memory_space=pltpu.MemorySpace.SMEM),
            ],
            out_specs=pl.BlockSpec((1, C, D, HW), lambda b: (b, 0, 0, 0)),
            scratch_shapes=[pltpu.VMEM((2, D + 6, HW), jnp.float32)],
        ),
        compiler_params=pltpu.CompilerParams(
            dimension_semantics=("parallel",)),
        cost_estimate=pl.CostEstimate(
            flops=flops,
            transcendentals=int(B * D * HW),
            bytes_accessed=bytes_accessed),
    )(x_flat, band, bias)

    return out.reshape(B, C, D, H, W)


def spatial_gate3d_ref(x, conv_w, bn_gamma, bn_beta, bn_mean, bn_var, eps=1e-5):
    """Pure-JAX reference mirroring the PyTorch forward (inference-mode BN)."""
    mx = jnp.max(x, axis=1, keepdims=True)
    mn = jnp.mean(x, axis=1, keepdims=True)
    pooled = jnp.concatenate([mx, mn], axis=1)                    # (B, 2, D, H, W)
    y = jax.lax.conv_general_dilated(
        pooled, conv_w, window_strides=(1, 1, 1),
        padding=((3, 3), (3, 3), (3, 3)),
        dimension_numbers=("NCDHW", "OIDHW", "NCDHW"),
        precision=jax.lax.Precision.HIGHEST)                      # (B, 1, D, H, W)
    y = (y - bn_mean) / jnp.sqrt(bn_var + eps) * bn_gamma + bn_beta
    return x * jax.nn.sigmoid(y)


if __name__ == "__main__":
    # Small shapes consistent with the module: x is 5-D NCDHW, conv is 2 -> 1, k=7.
    B, C, D, H, W = 2, 4, 8, 16, 16

    key = jax.random.PRNGKey(0)
    kx, kw = jax.random.split(key)
    x = jax.random.normal(kx, (B, C, D, H, W), dtype=jnp.float32)
    # Conv3d(2, 1, 7, padding=3, bias=False).weight has shape (1, 2, 7, 7, 7).
    conv_w = jax.random.normal(kw, (1, 2, 7, 7, 7), dtype=jnp.float32) * 0.1
    # BatchNorm3d(1) inference-mode parameters / running statistics.
    bn_gamma, bn_beta = 1.25, 0.1
    bn_mean, bn_var = 0.05, 0.9

    out = spatial_gate3d(x, conv_w, bn_gamma, bn_beta, bn_mean, bn_var)
    out = jax.block_until_ready(out)

    ref = spatial_gate3d_ref(x, conv_w, bn_gamma, bn_beta, bn_mean, bn_var)
    assert out.shape == x.shape
    max_err = float(jnp.max(jnp.abs(out - ref)))
    assert jnp.allclose(out, ref, atol=1e-3, rtol=1e-3), f"max_err={max_err}"

    print("KERNEL_OK")
</pallas_src>

<mosaic_0001>
module attributes {stable_mosaic.version = 11 : i64} {
  func.func @_spatial_gate3d_kernel(%arg0: i32, %arg1: memref<1x4x8x256xf32, #tpu.memory_space<vmem>>, %arg2: memref<14x256x256xf32, #tpu.memory_space<vmem>>, %arg3: memref<1xf32, #tpu.memory_space<smem>>, %arg4: memref<1x4x8x256xf32, #tpu.memory_space<vmem>>, %arg5: memref<2x14x256xf32, #tpu.memory_space<vmem>>) attributes {dimension_semantics = [#tpu.dimension_semantics<parallel>], iteration_bounds = array<i64: 2>, scalar_prefetch = 0 : i64, scratch_operands = 1 : i64, tpu.core_type = #tpu.core_type<tc>, window_params = [{transform_indices = @transform_0, window_bounds = array<i64: 1, 4, 8, 256>}, {pipeline_mode = #tpu.pipeline_mode<synchronous>, transform_indices = @transform_1, window_bounds = array<i64: 14, 256, 256>}, {transform_indices = @transform_2, window_bounds = array<i64: 1>}, {transform_indices = @transform_3, window_bounds = array<i64: 1, 4, 8, 256>}]} {
    %c0 = arith.constant 0 : index
    %c0_0 = arith.constant 0 : index
    %c0_1 = arith.constant 0 : index
    %c0_2 = arith.constant 0 : index
    %0 = vector.load %arg1[%c0, %c0_0, %c0_1, %c0_2] : memref<1x4x8x256xf32, #tpu.memory_space<vmem>>, vector<1x4x8x256xf32>
    %1 = vector.shape_cast %0 : vector<1x4x8x256xf32> to vector<4x8x256xf32>
    %cst = arith.constant dense<0xFF800000> : vector<8x256xf32>
    %2 = vector.multi_reduction <maximumf>, %1, %cst [0] : vector<4x8x256xf32> to vector<8x256xf32>
    %cst_3 = arith.constant dense<0.000000e+00> : vector<8x256xf32>
    %3 = vector.multi_reduction <add>, %1, %cst_3 [0] : vector<4x8x256xf32> to vector<8x256xf32>
    %cst_4 = arith.constant 4.000000e+00 : f32
    %4 = vector.broadcast %cst_4 : f32 to vector<8x256xf32>
    %5 = arith.divf %3, %4 : vector<8x256xf32>
    %cst_5 = arith.constant 0.000000e+00 : f32
    %6 = vector.broadcast %cst_5 : f32 to vector<2x14x256xf32>
    %c0_6 = arith.constant 0 : index
    %c0_7 = arith.constant 0 : index
    %c0_8 = arith.constant 0 : index
    %7 = vector.load %arg5[%c0_6, %c0_7, %c0_8] : memref<2x14x256xf32, #tpu.memory_space<vmem>>, vector<2x14x256xf32>
    tpu.vector_store %arg5[%c0_6, %c0_7, %c0_8], %6 {strides = array<i32>} : memref<2x14x256xf32, #tpu.memory_space<vmem>>, vector<2x14x256xf32>,
    %c0_9 = arith.constant 0 : index
    %c3 = arith.constant 3 : index
    %c0_10 = arith.constant 0 : index
    %8 = vector.load %arg5[%c0_9, %c3, %c0_10] : memref<2x14x256xf32, #tpu.memory_space<vmem>>, vector<1x8x256xf32>
    %9 = vector.shape_cast %8 : vector<1x8x256xf32> to vector<8x256xf32>
    %10 = vector.shape_cast %2 : vector<8x256xf32> to vector<1x8x256xf32>
    tpu.vector_store %arg5[%c0_9, %c3, %c0_10], %10 {strides = array<i32>} : memref<2x14x256xf32, #tpu.memory_space<vmem>>, vector<1x8x256xf32>,
    %c1 = arith.constant 1 : index
    %c3_11 = arith.constant 3 : index
    %c0_12 = arith.constant 0 : index
    %11 = vector.load %arg5[%c1, %c3_11, %c0_12] : memref<2x14x256xf32, #tpu.memory_space<vmem>>, vector<1x8x256xf32>
    %12 = vector.shape_cast %11 : vector<1x8x256xf32> to vector<8x256xf32>
    %13 = vector.shape_cast %5 : vector<8x256xf32> to vector<1x8x256xf32>
    tpu.vector_store %arg5[%c1, %c3_11, %c0_12], %13 {strides = array<i32>} : memref<2x14x256xf32, #tpu.memory_space<vmem>>, vector<1x8x256xf32>,
    %c0_13 = arith.constant 0 : index
    %14 = memref.load %arg3[%c0_13] : memref<1xf32, #tpu.memory_space<smem>>
    %15 = vector.broadcast %14 : f32 to vector<8x256xf32>
    %c0_14 = arith.constant 0 : index
    %c0_15 = arith.constant 0 : index
    %c0_16 = arith.constant 0 : index
    %16 = vector.load %arg5[%c0_14, %c0_15, %c0_16] : memref<2x14x256xf32, #tpu.memory_space<vmem>>, vector<1x8x256xf32>
    %17 = vector.shape_cast %16 : vector<1x8x256xf32> to vector<8x256xf32>
    %c0_17 = arith.constant 0 : index
    %c0_18 = arith.constant 0 : index
    %c0_19 = arith.constant 0 : index
    %18 = vector.load %arg2[%c0_17, %c0_18, %c0_19] : memref<14x256x256xf32, #tpu.memory_space<vmem>>, vector<1x256x256xf32>
    %19 = vector.shape_cast %18 : vector<1x256x256xf32> to vector<256x256xf32>
    %cst_20 = arith.constant dense<0.000000e+00> : vector<8x256xf32>
    %20 = tpu.matmul %17, %19, %cst_20 {dimension_numbers = #tpu.dot_dimension_numbers<[1], [0], [0], [1], [0, 0, 1, 1], [], []>} : vector<8x256xf32>, vector<256x256xf32>, vector<8x256xf32> -> vector<8x256xf32>
    %21 = arith.addf %15, %20 : vector<8x256xf32>
    %c0_21 = arith.constant 0 : index
    %c1_22 = arith.constant 1 : index
    %c0_23 = arith.constant 0 : index
    %22 = vector.load %arg5[%c0_21, %c1_22, %c0_23] : memref<2x14x256xf32, #tpu.memory_space<vmem>>, vector<1x8x256xf32>
    %23 = vector.shape_cast %22 : vector<1x8x256xf32> to vector<8x256xf32>
    %c1_24 = arith.constant 1 : index
    %c0_25 = arith.constant 0 : index
    %c0_26 = arith.constant 0 : index
    %24 = vector.load %arg2[%c1_24, %c0_25, %c0_26] : memref<14x256x256xf32, #tpu.memory_space<vmem>>, vector<1x256x256xf32>
    %25 = vector.shape_cast %24 : vector<1x256x256xf32> to vector<256x256xf32>
    %cst_27 = arith.constant dense<0.000000e+00> : vector<8x256xf32>
    %26 = tpu.matmul %23, %25, %cst_27 {dimension_numbers = #tpu.dot_dimension_numbers<[1], [0], [0], [1], [0, 0, 1, 1], [], []>} : vector<8x256xf32>, vector<256x256xf32>, vector<8x256xf32> -> vector<8x256xf32>
    %27 = arith.addf %21, %26 : vector<8x256xf32>
    %c0_28 = arith.constant 0 : index
    %c2 = arith.constant 2 : index
    %c0_29 = arith.constant 0 : index
    %28 = vector.load %arg5[%c0_28, %c2, %c0_29] : memref<2x14x256xf32, #tpu.memory_space<vmem>>, vector<1x8x256xf32>
    %29 = vector.shape_cast %28 : vector<1x8x256xf32> to vector<8x256xf32>
    %c2_30 = arith.constant 2 : index
    %c0_31 = arith.constant 0 : index
    %c0_32 = arith.constant 0 : index
    %30 = vector.load %arg2[%c2_30, %c0_31, %c0_32] : memref<14x256x256xf32, #tpu.memory_space<vmem>>, vector<1x256x256xf32>
    %31 = vector.shape_cast %30 : vector<1x256x256xf32> to vector<256x256xf32>
    %cst_33 = arith.constant dense<0.000000e+00> : vector<8x256xf32>
    %32 = tpu.matmul %29, %31, %cst_33 {dimension_numbers = #tpu.dot_dimension_numbers<[1], [0], [0], [1], [0, 0, 1, 1], [], []>} : vector<8x256xf32>, vector<256x256xf32>, vector<8x256xf32> -> vector<8x256xf32>
    %33 = arith.addf %27, %32 : vector<8x256xf32>
    %c0_34 = arith.constant 0 : index
    %c3_35 = arith.constant 3 : index
    %c0_36 = arith.constant 0 : index
    %34 = vector.load %arg5[%c0_34, %c3_35, %c0_36] : memref<2x14x256xf32, #tpu.memory_space<vmem>>, vector<1x8x256xf32>
    %35 = vector.shape_cast %34 : vector<1x8x256xf32> to vector<8x256xf32>
    %c3_37 = arith.constant 3 : index
    %c0_38 = arith.constant 0 : index
    %c0_39 = arith.constant 0 : index
    %36 = vector.load %arg2[%c3_37, %c0_38, %c0_39] : memref<14x256x256xf32, #tpu.memory_space<vmem>>, vector<1x256x256xf32>
    %37 = vector.shape_cast %36 : vector<1x256x256xf32> to vector<256x256xf32>
    %cst_40 = arith.constant dense<0.000000e+00> : vector<8x256xf32>
    %38 = tpu.matmul %35, %37, %cst_40 {dimension_numbers = #tpu.dot_dimension_numbers<[1], [0], [0], [1], [0, 0, 1, 1], [], []>} : vector<8x256xf32>, vector<256x256xf32>, vector<8x256xf32> -> vector<8x256xf32>
    %39 = arith.addf %33, %38 : vector<8x256xf32>
    %c0_41 = arith.constant 0 : index
    %c4 = arith.constant 4 : index
    %c0_42 = arith.constant 0 : index
    %40 = vector.load %arg5[%c0_41, %c4, %c0_42] : memref<2x14x256xf32, #tpu.memory_space<vmem>>, vector<1x8x256xf32>
    %41 = vector.shape_cast %40 : vector<1x8x256xf32> to vector<8x256xf32>
    %c4_43 = arith.constant 4 : index
    %c0_44 = arith.constant 0 : index
    %c0_45 = arith.constant 0 : index
    %42 = vector.load %arg2[%c4_43, %c0_44, %c0_45] : memref<14x256x256xf32, #tpu.memory_space<vmem>>, vector<1x256x256xf32>
    %43 = vector.shape_cast %42 : vector<1x256x256xf32> to vector<256x256xf32>
    %cst_46 = arith.constant dense<0.000000e+00> : vector<8x256xf32>
    %44 = tpu.matmul %41, %43, %cst_46 {dimension_numbers = #tpu.dot_dimension_numbers<[1], [0], [0], [1], [0, 0, 1, 1], [], []>} : vector<8x256xf32>, vector<256x256xf32>, vector<8x256xf32> -> vector<8x256xf32>
    %45 = arith.addf %39, %44 : vector<8x256xf32>
    %c0_47 = arith.constant 0 : index
    %c5 = arith.constant 5 : index
    %c0_48 = arith.constant 0 : index
    %46 = vector.load %arg5[%c0_47, %c5, %c0_48] : memref<2x14x256xf32, #tpu.memory_space<vmem>>, vector<1x8x256xf32>
    %47 = vector.shape_cast %46 : vector<1x8x256xf32> to vector<8x256xf32>
    %c5_49 = arith.constant 5 : index
    %c0_50 = arith.constant 0 : index
    %c0_51 = arith.constant 0 : index
    %48 = vector.load %arg2[%c5_49, %c0_50, %c0_51] : memref<14x256x256xf32, #tpu.memory_space<vmem>>, vector<1x256x256xf32>
    %49 = vector.shape_cast %48 : vector<1x256x256xf32> to vector<256x256xf32>
    %cst_52 = arith.constant dense<0.000000e+00> : vector<8x256xf32>
    %50 = tpu.matmul %47, %49, %cst_52 {dimension_numbers = #tpu.dot_dimension_numbers<[1], [0], [0], [1], [0, 0, 1, 1], [], []>} : vector<8x256xf32>, vector<256x256xf32>, vector<8x256xf32> -> vector<8x256xf32>
    %51 = arith.addf %45, %50 : vector<8x256xf32>
    %c0_53 = arith.constant 0 : index
    %c6 = arith.constant 6 : index
    %c0_54 = arith.constant 0 : index
    %52 = vector.load %arg5[%c0_53, %c6, %c0_54] : memref<2x14x256xf32, #tpu.memory_space<vmem>>, vector<1x8x256xf32>
    %53 = vector.shape_cast %52 : vector<1x8x256xf32> to vector<8x256xf32>
    %c6_55 = arith.constant 6 : index
    %c0_56 = arith.constant 0 : index
    %c0_57 = arith.constant 0 : index
    %54 = vector.load %arg2[%c6_55, %c0_56, %c0_57] : memref<14x256x256xf32, #tpu.memory_space<vmem>>, vector<1x256x256xf32>
    %55 = vector.shape_cast %54 : vector<1x256x256xf32> to vector<256x256xf32>
    %cst_58 = arith.constant dense<0.000000e+00> : vector<8x256xf32>
    %56 = tpu.matmul %53, %55, %cst_58 {dimension_numbers = #tpu.dot_dimension_numbers<[1], [0], [0], [1], [0, 0, 1, 1], [], []>} : vector<8x256xf32>, vector<256x256xf32>, vector<8x256xf32> -> vector<8x256xf32>
    %57 = arith.addf %51, %56 : vector<8x256xf32>
    %c1_59 = arith.constant 1 : index
    %c0_60 = arith.constant 0 : index
    %c0_61 = arith.constant 0 : index
    %58 = vector.load %arg5[%c1_59, %c0_60, %c0_61] : memref<2x14x256xf32, #tpu.memory_space<vmem>>, vector<1x8x256xf32>
    %59 = vector.shape_cast %58 : vector<1x8x256xf32> to vector<8x256xf32>
    %c7 = arith.constant 7 : index
    %c0_62 = arith.constant 0 : index
    %c0_63 = arith.constant 0 : index
    %60 = vector.load %arg2[%c7, %c0_62, %c0_63] : memref<14x256x256xf32, #tpu.memory_space<vmem>>, vector<1x256x256xf32>
    %61 = vector.shape_cast %60 : vector<1x256x256xf32> to vector<256x256xf32>
    %cst_64 = arith.constant dense<0.000000e+00> : vector<8x256xf32>
    %62 = tpu.matmul %59, %61, %cst_64 {dimension_numbers = #tpu.dot_dimension_numbers<[1], [0], [0], [1], [0, 0, 1, 1], [], []>} : vector<8x256xf32>, vector<256x256xf32>, vector<8x256xf32> -> vector<8x256xf32>
    %63 = arith.addf %57, %62 : vector<8x256xf32>
    %c1_65 = arith.constant 1 : index
    %c1_66 = arith.constant 1 : index
    %c0_67 = arith.constant 0 : index
    %64 = vector.load %arg5[%c1_65, %c1_66, %c0_67] : memref<2x14x256xf32, #tpu.memory_space<vmem>>, vector<1x8x256xf32>
    %65 = vector.shape_cast %64 : vector<1x8x256xf32> to vector<8x256xf32>
    %c8 = arith.constant 8 : index
    %c0_68 = arith.constant 0 : index
    %c0_69 = arith.constant 0 : index
    %66 = vector.load %arg2[%c8, %c0_68, %c0_69] : memref<14x256x256xf32, #tpu.memory_space<vmem>>, vector<1x256x256xf32>
    %67 = vector.shape_cast %66 : vector<1x256x256xf32> to vector<256x256xf32>
    %cst_70 = arith.constant dense<0.000000e+00> : vector<8x256xf32>
    %68 = tpu.matmul %65, %67, %cst_70 {dimension_numbers = #tpu.dot_dimension_numbers<[1], [0], [0], [1], [0, 0, 1, 1], [], []>} : vector<8x256xf32>, vector<256x256xf32>, vector<8x256xf32> -> vector<8x256xf32>
    %69 = arith.addf %63, %68 : vector<8x256xf32>
    %c1_71 = arith.constant 1 : index
    %c2_72 = arith.constant 2 : index
    %c0_73 = arith.constant 0 : index
    %70 = vector.load %arg5[%c1_71, %c2_72, %c0_73] : memref<2x14x256xf32, #tpu.memory_space<vmem>>, vector<1x8x256xf32>
    %71 = vector.shape_cast %70 : vector<1x8x256xf32> to vector<8x256xf32>
    %c9 = arith.constant 9 : index
    %c0_74 = arith.constant 0 : index
    %c0_75 = arith.constant 0 : index
    %72 = vector.load %arg2[%c9, %c0_74, %c0_75] : memref<14x256x256xf32, #tpu.memory_space<vmem>>, vector<1x256x256xf32>
    %73 = vector.shape_cast %72 : vector<1x256x256xf32> to vector<256x256xf32>
    %cst_76 = arith.constant dense<0.000000e+00> : vector<8x256xf32>
    %74 = tpu.matmul %71, %73, %cst_76 {dimension_numbers = #tpu.dot_dimension_numbers<[1], [0], [0], [1], [0, 0, 1, 1], [], []>} : vector<8x256xf32>, vector<256x256xf32>, vector<8x256xf32> -> vector<8x256xf32>
    %75 = arith.addf %69, %74 : vector<8x256xf32>
    %c1_77 = arith.constant 1 : index
    %c3_78 = arith.constant 3 : index
    %c0_79 = arith.constant 0 : index
    %76 = vector.load %arg5[%c1_77, %c3_78, %c0_79] : memref<2x14x256xf32, #tpu.memory_space<vmem>>, vector<1x8x256xf32>
    %77 = vector.shape_cast %76 : vector<1x8x256xf32> to vector<8x256xf32>
    %c10 = arith.constant 10 : index
    %c0_80 = arith.constant 0 : index
    %c0_81 = arith.constant 0 : index
    %78 = vector.load %arg2[%c10, %c0_80, %c0_81] : memref<14x256x256xf32, #tpu.memory_space<vmem>>, vector<1x256x256xf32>
    %79 = vector.shape_cast %78 : vector<1x256x256xf32> to vector<256x256xf32>
    %cst_82 = arith.constant dense<0.000000e+00> : vector<8x256xf32>
    %80 = tpu.matmul %77, %79, %cst_82 {dimension_numbers = #tpu.dot_dimension_numbers<[1], [0], [0], [1], [0, 0, 1, 1], [], []>} : vector<8x256xf32>, vector<256x256xf32>, vector<8x256xf32> -> vector<8x256xf32>
    %81 = arith.addf %75, %80 : vector<8x256xf32>
    %c1_83 = arith.constant 1 : index
    %c4_84 = arith.constant 4 : index
    %c0_85 = arith.constant 0 : index
    %82 = vector.load %arg5[%c1_83, %c4_84, %c0_85] : memref<2x14x256xf32, #tpu.memory_space<vmem>>, vector<1x8x256xf32>
    %83 = vector.shape_cast %82 : vector<1x8x256xf32> to vector<8x256xf32>
    %c11 = arith.constant 11 : index
    %c0_86 = arith.constant 0 : index
    %c0_87 = arith.constant 0 : index
    %84 = vector.load %arg2[%c11, %c0_86, %c0_87] : memref<14x256x256xf32, #tpu.memory_space<vmem>>, vector<1x256x256xf32>
    %85 = vector.shape_cast %84 : vector<1x256x256xf32> to vector<256x256xf32>
    %cst_88 = arith.constant dense<0.000000e+00> : vector<8x256xf32>
    %86 = tpu.matmul %83, %85, %cst_88 {dimension_numbers = #tpu.dot_dimension_numbers<[1], [0], [0], [1], [0, 0, 1, 1], [], []>} : vector<8x256xf32>, vector<256x256xf32>, vector<8x256xf32> -> vector<8x256xf32>
    %87 = arith.addf %81, %86 : vector<8x256xf32>
    %c1_89 = arith.constant 1 : index
    %c5_90 = arith.constant 5 : index
    %c0_91 = arith.constant 0 : index
    %88 = vector.load %arg5[%c1_89, %c5_90, %c0_91] : memref<2x14x256xf32, #tpu.memory_space<vmem>>, vector<1x8x256xf32>
    %89 = vector.shape_cast %88 : vector<1x8x256xf32> to vector<8x256xf32>
    %c12 = arith.constant 12 : index
    %c0_92 = arith.constant 0 : index
    %c0_93 = arith.constant 0 : index
    %90 = vector.load %arg2[%c12, %c0_92, %c0_93] : memref<14x256x256xf32, #tpu.memory_space<vmem>>, vector<1x256x256xf32>
    %91 = vector.shape_cast %90 : vector<1x256x256xf32> to vector<256x256xf32>
    %cst_94 = arith.constant dense<0.000000e+00> : vector<8x256xf32>
    %92 = tpu.matmul %89, %91, %cst_94 {dimension_numbers = #tpu.dot_dimension_numbers<[1], [0], [0], [1], [0, 0, 1, 1], [], []>} : vector<8x256xf32>, vector<256x256xf32>, vector<8x256xf32> -> vector<8x256xf32>
    %93 = arith.addf %87, %92 : vector<8x256xf32>
    %c1_95 = arith.constant 1 : index
    %c6_96 = arith.constant 6 : index
    %c0_97 = arith.constant 0 : index
    %94 = vector.load %arg5[%c1_95, %c6_96, %c0_97] : memref<2x14x256xf32, #tpu.memory_space<vmem>>, vector<1x8x256xf32>
    %95 = vector.shape_cast %94 : vector<1x8x256xf32> to vector<8x256xf32>
    %c13 = arith.constant 13 : index
    %c0_98 = arith.constant 0 : index
    %c0_99 = arith.constant 0 : index
    %96 = vector.load %arg2[%c13, %c0_98, %c0_99] : memref<14x256x256xf32, #tpu.memory_space<vmem>>, vector<1x256x256xf32>
    %97 = vector.shape_cast %96 : vector<1x256x256xf32> to vector<256x256xf32>
    %cst_100 = arith.constant dense<0.000000e+00> : vector<8x256xf32>
    %98 = tpu.matmul %95, %97, %cst_100 {dimension_numbers = #tpu.dot_dimension_numbers<[1], [0], [0], [1], [0, 0, 1, 1], [], []>} : vector<8x256xf32>, vector<256x256xf32>, vector<8x256xf32> -> vector<8x256xf32>
    %99 = arith.addf %93, %98 : vector<8x256xf32>
    %100 = arith.negf %99 : vector<8x256xf32>
    %101 = math.exp %100 : vector<8x256xf32>
    %cst_101 = arith.constant 1.000000e+00 : f32
    %102 = vector.broadcast %cst_101 : f32 to vector<8x256xf32>
    %103 = arith.addf %102, %101 : vector<8x256xf32>
    %104 = arith.divf %102, %103 : vector<8x256xf32>
    %105 = vector.shape_cast %104 : vector<8x256xf32> to vector<1x8x256xf32>
    %106 = vector.broadcast %105 : vector<1x8x256xf32> to vector<4x8x256xf32>
    %107 = arith.mulf %1, %106 : vector<4x8x256xf32>
    %c0_102 = arith.constant 0 : index
    %c0_103 = arith.constant 0 : index
    %c0_104 = arith.constant 0 : index
    %c0_105 = arith.constant 0 : index
    %108 = vector.load %arg4[%c0_102, %c0_103, %c0_104, %c0_105] : memref<1x4x8x256xf32, #tpu.memory_space<vmem>>, vector<1x4x8x256xf32>
    %109 = vector.shape_cast %108 : vector<1x4x8x256xf32> to vector<4x8x256xf32>
    %110 = vector.shape_cast %107 : vector<4x8x256xf32> to vector<1x4x8x256xf32>
    tpu.vector_store %arg4[%c0_102, %c0_103, %c0_104, %c0_105], %110 {strides = array<i32>} : memref<1x4x8x256xf32, #tpu.memory_space<vmem>>, vector<1x4x8x256xf32>,
    return
  }
  func.func @transform_0(%arg0: i32) -> (i32, i32, i32, i32) {
    %c0_i32 = arith.constant 0 : i32
    %c0_i32_0 = arith.constant 0 : i32
    %c0_i32_1 = arith.constant 0 : i32
    %c0_i32_2 = arith.constant 0 : i32
    return %arg0, %c0_i32, %c0_i32_0, %c0_i32_1 : i32, i32, i32, i32
  }
  func.func @transform_1(%arg0: i32) -> (i32, i32, i32) {
    %c0_i32 = arith.constant 0 : i32
    %c0_i32_0 = arith.constant 0 : i32
    %c0_i32_1 = arith.constant 0 : i32
    %c0_i32_2 = arith.constant 0 : i32
    return %c0_i32, %c0_i32_0, %c0_i32_1 : i32, i32, i32
  }
  func.func @transform_2(%arg0: i32) -> i32 {
    %c0_i32 = arith.constant 0 : i32
    %c0_i32_0 = arith.constant 0 : i32
    return %c0_i32 : i32
  }
  func.func @transform_3(%arg0: i32) -> (i32, i32, i32, i32) {
    %c0_i32 = arith.constant 0 : i32
    %c0_i32_0 = arith.constant 0 : i32
    %c0_i32_1 = arith.constant 0 : i32
    %c0_i32_2 = arith.constant 0 : i32
    return %arg0, %c0_i32, %c0_i32_0, %c0_i32_1 : i32, i32, i32, i32
  }
}

</mosaic_0001>

<llo_original>
// kernel: tpu_custom_call.1
$region0: #{tpu_custom_call.1}
  #allocation0 [shape = 'u32[]', space=smem, size = 0x4, offset = 0x4, fixed_abs, tag = 'smem constant byte address 0x4 - core index']
  #allocation1 [shape = 'u32[72,128]{1,0:T(1,128)}', space=vmem, size = 0x9000, scoped, tag = 'internal scratch']
  #allocation2 [shape = 'f32[2,14,256]{2,1,0:T(8,128)}', space=vmem, size = 0x8000, scoped, tag = 'scratch operand']
  #allocation3 [shape = 'f32[1]{0:T(128)S(6)}', space=smem, size = 0x200, scoped, tag = 'scoped memory for tpu_custom_call.1']
  %s0 = inlined_call_operand.hbm [shape: f32[2,4,8,256], index: 0, kind: input, shape index: {}]
  %s1 = inlined_call_operand.hbm [shape: f32[14,256,256], index: 1, kind: input, shape index: {}]
  %s2 = inlined_call_operand.<no memory space> [shape: f32[1], index: 2, kind: input, shape index: {}]
  %s3 = inlined_call_operand.hbm [shape: f32[2,4,8,256], index: 3, kind: output, shape index: {}]
  %s4 = sld [smem:[#allocation0]]
  $region53: #{tpu_custom_call.1} parent=0
    _
  %s6 = ssub.s32 1, %s4
  %s7 = scalar_select 0, %s6, %s4
  %8 = sst [smem:[#allocation3]] %s2
  $region1: #{tpu_custom_call.1} parent=0
    #allocation4 [shape = 'u8[65536]{0}', space=vmem, size = 0x10000, scoped, tag = 'input window, operand 0']
    #allocation5 [shape = 's32[2]{0}', space=sflag, size = 0x8, scoped, tag = 'scoped memory for tpu_custom_call.1']
    #allocation6 [shape = 's32[2]{0}', space=sflag, size = 0x8, scoped, tag = 'scoped memory for tpu_custom_call.1']
    #allocation7 [shape = 'u8[3670016]{0}', space=vmem, size = 0x380000, scoped, tag = 'input window, operand 1, single buffered']
    #allocation8 [shape = 's32[1]{0}', space=sflag, size = 0x4, scoped, tag = 'scoped memory for tpu_custom_call.1']
    #allocation9 [shape = 'u8[65536]{0}', space=vmem, size = 0x10000, scoped, tag = 'output window, operand 0']
    %9 = vsyncpa [#allocation5], 0
    %s10 = scalar_lea.sflag [#allocation5], 1
    %11 = vsyncpa %s10, 0
    %12 = vsyncpa [#allocation8], 0
    %13 = vsyncpa [#allocation6], 0
    %s14 = scalar_lea.sflag [#allocation6], 1
    %15 = vsyncpa %s14, 0
    loop: start=0, step=1, limit=4
    $region2: #{tpu_custom_call.1} parent=1 // loop_pre_header
      _
    $region3: #{tpu_custom_call.1} parent=1 // loop_header
      %s17 = sphi 0, %s21
      %p18 = scmp.ge.s32.totalorder %s17, 4
      %s27 = sphi 0, %s29
      %s30 = sphi 0, %s27
      %s31 = sphi 0, %s30
      %s47 = sphi 0, %s31
      %s51 = sphi 0, %s51
      %s53 = sphi 0, %s51
      %s54 = sphi 0, %s53
      %s68 = sphi 0, %s54
      %s72 = sphi 0, %s72
      %s74 = sphi 0, %s72
      %s75 = sphi 0, %s74
      %s89 = sphi 0, %s75
      %s95 = sphi 0, %s97
      %s98 = sphi 0, %s95
      %s99 = sphi 0, %s98
      %s115 = sphi 0, %s99
    $region4: #{tpu_custom_call.1} parent=1 // loop_header_branch
      %20 = sbr.rel (%p18) target = $region8
    $region5: #{tpu_custom_call.1} parent=1 // loop_body
      %s22 = ssub.s32 %s17, 1
      %s23 = ssub.s32 %s17, 2
      %s24 = sadd.s32 %s17, 1
      %s25 = ssub.s32 %s17, %s24
      %p26 = scmp.eq.s32.totalorder %s25, 0
      %s28 = sadd.s32 %s27, 1
      %s29 = scalar_select %p26, %s27, %s28
      %p32 = pneg %p26
      %p33 = scmp.eq.s32.totalorder %s17, 1
      %p34 = por %p32, %p33
      %p35 = scmp.ne.s32.totalorder %s27, %s30
      %p36 = scmp.eq.s32.totalorder %s17, 0
      %p37 = por %p35, %p36
      %p38 = scmp.ne.s32.totalorder %s27, %s30
      %p39 = scmp.eq.s32.totalorder %s22, 1
      %p40 = por %p38, %p39
      %p41 = scmp.ne.s32.totalorder %s30, %s31
      %p42 = scmp.eq.s32.totalorder %s22, 0
      %p43 = por %p41, %p42
      %p44 = scmp.ne.s32.totalorder %s30, %s31
      %p45 = scmp.eq.s32.totalorder %s23, 1
      %p46 = por %p44, %p45
      %p48 = scmp.ne.s32.totalorder %s31, %s47
      %p49 = scmp.eq.s32.totalorder %s23, 0
      %p50 = por %p48, %p49
      %s52 = sadd.s32 %s51, 1
      %p55 = scmp.eq.s32.totalorder %s17, 1
      %p56 = scmp.ne.s32.totalorder %s51, %s53
      %p57 = scmp.eq.s32.totalorder %s17, 0
      %p58 = por %p56, %p57
      %p59 = scmp.ne.s32.totalorder %s51, %s53
      %p60 = scmp.eq.s32.totalorder %s22, 1
      %p61 = por %p59, %p60
      %p62 = scmp.ne.s32.totalorder %s53, %s54
      %p63 = scmp.eq.s32.totalorder %s22, 0
      %p64 = por %p62, %p63
      %p65 = scmp.ne.s32.totalorder %s53, %s54
      %p66 = scmp.eq.s32.totalorder %s23, 1
      %p67 = por %p65, %p66
      %p69 = scmp.ne.s32.totalorder %s54, %s68
      %p70 = scmp.eq.s32.totalorder %s23, 0
      %p71 = por %p69, %p70
      %s73 = sadd.s32 %s72, 1
      %p76 = scmp.eq.s32.totalorder %s17, 1
      %p77 = scmp.ne.s32.totalorder %s72, %s74
      %p78 = scmp.eq.s32.totalorder %s17, 0
      %p79 = por %p77, %p78
      %p80 = scmp.ne.s32.totalorder %s72, %s74
      %p81 = scmp.eq.s32.totalorder %s22, 1
      %p82 = por %p80, %p81
      %p83 = scmp.ne.s32.totalorder %s74, %s75
      %p84 = scmp.eq.s32.totalorder %s22, 0
      %p85 = por %p83, %p84
      %p86 = scmp.ne.s32.totalorder %s74, %s75
      %p87 = scmp.eq.s32.totalorder %s23, 1
      %p88 = por %p86, %p87
      %p90 = scmp.ne.s32.totalorder %s75, %s89
      %p91 = scmp.eq.s32.totalorder %s23, 0
      %p92 = por %p90, %p91
      %s93 = ssub.s32 %s17, %s24
      %p94 = scmp.eq.s32.totalorder %s93, 0
      %s96 = sadd.s32 %s95, 1
      %s97 = scalar_select %p94, %s95, %s96
      %p100 = pneg %p94
      %p101 = scmp.eq.s32.totalorder %s17, 1
      %p102 = por %p100, %p101
      %p103 = scmp.ne.s32.totalorder %s95, %s98
      %p104 = scmp.eq.s32.totalorder %s17, 0
      %p105 = por %p103, %p104
      %p106 = scmp.ne.s32.totalorder %s95, %s98
      %p107 = scmp.eq.s32.totalorder %s22, 1
      %p108 = por %p106, %p107
      %p109 = scmp.ne.s32.totalorder %s98, %s99
      %p110 = scmp.eq.s32.totalorder %s22, 0
      %p111 = por %p109, %p110
      %p112 = scmp.ne.s32.totalorder %s98, %s99
      %p113 = scmp.eq.s32.totalorder %s23, 1
      %p114 = por %p112, %p113
      %p116 = scmp.ne.s32.totalorder %s99, %s115
      %p117 = scmp.eq.s32.totalorder %s23, 0
      %p118 = por %p116, %p117
      %p119 = scmp.le.s32.totalorder 1, %s17
      %p120 = scmp.lt.s32.totalorder %s17, 3
      %p121 = pnand %p119, %p120
      %p122 = pneg %p121
      // Predicated region
      $region9: #{tpu_custom_call.1} parent=5 // pred_check
        _
      $region10: #{tpu_custom_call.1} parent=5 // pred_check_branch
        %124 = sbr.rel (%p121) target = $region12
      $region11: #{tpu_custom_call.1} parent=5 // pred_region
        %s125 = ssub.s32 %s17, 1
        // Predicated region
        $region13: #{tpu_custom_call.1} parent=11 // pred_check
          %p126 = pneg %p64
        $region14: #{tpu_custom_call.1} parent=11 // pred_check_branch
          %128 = sbr.rel (%p126) target = $region16
        $region15: #{tpu_custom_call.1} parent=11 // pred_region
          %130 = vsyncadd [#allocation8], 0
          %s131 = sshll.u32 %s1, 4
          %s132 = int_to_ptr.hbm [resolvable:$true] %s131
          %s133 = sshll.u32 [#allocation7], 4
          %s134 = int_to_ptr.vmem [resolvable:$true] %s133
          %139 = dma.hbm_to_vmem [thread:$0]  %s132, 114688, %s134, [#allocation8], 256, 256, 16
        $region16: #{tpu_custom_call.1} parent=11 // pred_fallthru
          _
        // Predicated region
        $region17: #{tpu_custom_call.1} parent=11 // pred_check
          %p140 = pneg %p85
        $region18: #{tpu_custom_call.1} parent=11 // pred_check_branch
          %142 = sbr.rel (%p140) target = $region20
        $region19: #{tpu_custom_call.1} parent=11 // pred_region
          _
        $region20: #{tpu_custom_call.1} parent=11 // pred_fallthru
          _
      $region12: #{tpu_custom_call.1} parent=5 // pred_fallthru
        _
      %p143 = scmp.lt.s32.totalorder %s17, 2
      // Predicated region
      $region21: #{tpu_custom_call.1} parent=5 // pred_check
        %p144 = pneg %p143
      $region22: #{tpu_custom_call.1} parent=5 // pred_check_branch
        %146 = sbr.rel (%p144) target = $region24
      $region23: #{tpu_custom_call.1} parent=5 // pred_region
        // Predicated region
        $region25: #{tpu_custom_call.1} parent=23 // pred_check
          %p147 = pneg %p37
        $region26: #{tpu_custom_call.1} parent=23 // pred_check_branch
          %149 = sbr.rel (%p147) target = $region28
        $region27: #{tpu_custom_call.1} parent=23 // pred_region
          %s150 = sand.u32 %s27, 1
          %s151 = scalar_lea.sflag [#allocation5], %s150
          %s152 = sand.u32 %s27, 1
          %s153 = smul.addr %s152, 64
          %s154 = scalar_lea.vmem [#allocation4], %s153
          %156 = vsyncadd %s151, 0
          %s157 = smul.addr %s17, 8
          %s158 = smul.addr %s157, 8
          %s159 = scalar_lea.hbm %s0, %s158
          %s160 = sshll.u32 %s159, 4
          %s161 = int_to_ptr.hbm [resolvable:$true] %s160
          %s162 = sshll.u32 %s154, 4
          %s163 = int_to_ptr.vmem [resolvable:$true] %s162
          %168 = dma.hbm_to_vmem [thread:$0]  %s161, 1024, %s163, %s151, 256, 256, 16
        $region28: #{tpu_custom_call.1} parent=23 // pred_fallthru
          _
      $region24: #{tpu_custom_call.1} parent=5 // pred_fallthru
        _
      %p169 = scmp.le.s32.totalorder 1, %s17
      %p170 = scmp.lt.s32.totalorder %s17, 3
      %p171 = pnand %p169, %p170
      %p172 = pneg %p171
      // Predicated region
      $region29: #{tpu_custom_call.1} parent=5 // pred_check
        _
      $region30: #{tpu_custom_call.1} parent=5 // pred_check_branch
        %174 = sbr.rel (%p171) target = $region32
      $region31: #{tpu_custom_call.1} parent=5 // pred_region
        %s175 = ssub.s32 %s17, 1
        %s176 = sand.u32 %s30, 1
        %s177 = scalar_lea.sflag [#allocation5], %s176
        %s178 = sand.u32 %s30, 1
        %s179 = smul.addr %s178, 64
        %s180 = scalar_lea.vmem [#allocation4], %s179
        // Predicated region
        $region33: #{tpu_custom_call.1} parent=31 // pred_check
          %p181 = pneg %p43
        $region34: #{tpu_custom_call.1} parent=31 // pred_check_branch
          %183 = sbr.rel (%p181) target = $region36
        $region35: #{tpu_custom_call.1} parent=31 // pred_region
          %185 = dma.done %s177, 1024
        $region36: #{tpu_custom_call.1} parent=31 // pred_fallthru
          _
        // Predicated region
        $region37: #{tpu_custom_call.1} parent=31 // pred_check
          %p186 = pneg %p64
        $region38: #{tpu_custom_call.1} parent=31 // pred_check_branch
          %188 = sbr.rel (%p186) target = $region40
        $region39: #{tpu_custom_call.1} parent=31 // pred_region
          %190 = dma.done [#allocation8], 114688
        $region40: #{tpu_custom_call.1} parent=31 // pred_fallthru
          _
        %s191 = sand.u32 %s30, 1
        %s192 = scalar_lea.sflag [#allocation5], %s191
        %s193 = sand.u32 %s30, 1
        %s194 = smul.addr %s193, 64
        %s195 = scalar_lea.vmem [#allocation4], %s194
        %p196 = pneg %p43
        %p197 = pneg %p40
        %p198 = pneg %p64
        %p199 = pneg %p61
        %p200 = pneg %p85
        %p201 = pneg %p82
        %p202 = pneg %p111
        %p203 = pneg %p108
        %s204 = sand.u32 %s98, 1
        %s205 = scalar_lea.sflag [#allocation6], %s204
        %s206 = sand.u32 %s98, 1
        %s207 = smul.addr %s206, 64
        %s208 = scalar_lea.vmem [#allocation9], %s207
        %v209 = vld [vmem:[%s180] sm:$0xff]
        %v210 = vld [vmem:[%s180 + $0x8] sm:$0xff]
        %v211 = vld [vmem:[%s180 + $0x10] sm:$0xff]
        %v212 = vld [vmem:[%s180 + $0x18] sm:$0xff]
        %v213 = vld [vmem:[%s180 + $0x20] sm:$0xff]
        %v214 = vld [vmem:[%s180 + $0x28] sm:$0xff]
        %v215 = vld [vmem:[%s180 + $0x30] sm:$0xff]
        %v216 = vld [vmem:[%s180 + $0x38] sm:$0xff]
        %v217 = vmax.f32 %v209, %v213
        %v218 = vmax.f32 %v211, %v215
        %v219 = vmax.f32 %v217, %v218
        %v220 = vmax.f32 %v210, %v214
        %v221 = vmax.f32 %v212, %v216
        %v222 = vmax.f32 %v220, %v221
        %v223 = vadd.f32 %v209, %v211
        %v224 = vadd.f32 %v223, %v213
        %v225 = vadd.f32 %v224, %v215
        %v226 = vadd.f32 %v210, %v212
        %v227 = vadd.f32 %v226, %v214
        %v228 = vadd.f32 %v227, %v216
        %v229 = vrcp.pop 4.0
        %v230 = vmul.f32 4.0, %v229
        %v231 = vsub.f32 1.0, %v230
        %v232 = vmul.f32 %v229, %v231
        %v233 = vadd.f32 %v229, %v232
        %vm234 = vweird.f32 %v229
        %v235 = vsel %vm234, %v229, %v233
        %v236 = vmul.f32 %v225, %v235
        %v237 = vmul.f32 %v228, %v235
        %238 = vst [vmem:[#allocation2] sm:$0xff] 0.0
        %239 = vst [vmem:[#allocation2 + $0x8] sm:$0xff] 0.0
        %240 = vst [vmem:[#allocation2 + $0x10] sm:$0x3f] 0.0
        %241 = vst [vmem:[#allocation2 + $0x18] sm:$0x3f] 0.0
        %242 = vst [vmem:[#allocation2 + $0x20] sm:$0xff] 0.0
        %243 = vst [vmem:[#allocation2 + $0x28] sm:$0xff] 0.0
        %244 = vst [vmem:[#allocation2 + $0x30] sm:$0x3f] 0.0
        %245 = vst [vmem:[#allocation2 + $0x38] sm:$0x3f] 0.0
        %v248 = vrot.slane %v219, 5
        %v249 = vrot.slane %v222, 5
        %252 = vst [vmem:[#allocation2] sm:$0xf8] %v248
        %253 = vst [vmem:[#allocation2 + $0x8] sm:$0xf8] %v249
        %254 = vst [vmem:[#allocation2 + $0x10] sm:$0x7] %v248
        %255 = vst [vmem:[#allocation2 + $0x18] sm:$0x7] %v249
        %v258 = vrot.slane %v236, 5
        %v259 = vrot.slane %v237, 5
        %s262 = scalar_lea.vmem [#allocation2], 32
        %263 = vst [vmem:[%s262] sm:$0xf8] %v258
        %264 = vst [vmem:[%s262 + $0x8] sm:$0xf8] %v259
        %265 = vst [vmem:[%s262 + $0x10] sm:$0x7] %v258
        %266 = vst [vmem:[%s262 + $0x18] sm:$0x7] %v259
        %s267 = sld [smem:[#allocation3]]
        %v268 = vstv %s267
        %v269 = vld [vmem:[#allocation2] sm:$0xff]
        %v270 = vld [vmem:[#allocation2 + $0x8] sm:$0xff]
        %v271 = vld [vmem:[#allocation7] sm:$0xff]
        %v272 = vld [vmem:[#allocation7 + $0x8] sm:$0xff]
        %v273 = vld [vmem:[#allocation7 + $0x10] sm:$0xff]
        %v274 = vld [vmem:[#allocation7 + $0x18] sm:$0xff]
        %v275 = vld [vmem:[#allocation7 + $0x20] sm:$0xff]
        %v276 = vld [vmem:[#allocation7 + $0x28] sm:$0xff]
        %v277 = vld [vmem:[#allocation7 + $0x30] sm:$0xff]
        %v278 = vld [vmem:[#allocation7 + $0x38] sm:$0xff]
        %v279 = vld [vmem:[#allocation7 + $0x40] sm:$0xff]
        %v280 = vld [vmem:[#allocation7 + $0x48] sm:$0xff]
        %v281 = vld [vmem:[#allocation7 + $0x50] sm:$0xff]
        %v282 = vld [vmem:[#allocation7 + $0x58] sm:$0xff]
        %v283 = vld [vmem:[#allocation7 + $0x60] sm:$0xff]
        %v284 = vld [vmem:[#allocation7 + $0x68] sm:$0xff]
        %v285 = vld [vmem:[#allocation7 + $0x70] sm:$0xff]
        %v286 = vld [vmem:[#allocation7 + $0x78] sm:$0xff]
        %v287 = vld [vmem:[#allocation7 + $0x80] sm:$0xff]
        %v288 = vld [vmem:[#allocation7 + $0x88] sm:$0xff]
        %v289 = vld [vmem:[#allocation7 + $0x90] sm:$0xff]
        %v290 = vld [vmem:[#allocation7 + $0x98] sm:$0xff]
        %v291 = vld [vmem:[#allocation7 + $0xa0] sm:$0xff]
        %v292 = vld [vmem:[#allocation7 + $0xa8] sm:$0xff]
        %v293 = vld [vmem:[#allocation7 + $0xb0] sm:$0xff]
        %v294 = vld [vmem:[#allocation7 + $0xb8] sm:$0xff]
        %v295 = vld [vmem:[#allocation7 + $0xc0] sm:$0xff]
        %v296 = vld [vmem:[#allocation7 + $0xc8] sm:$0xff]
        %v297 = vld [vmem:[#allocation7 + $0xd0] sm:$0xff]
        %v298 = vld [vmem:[#allocation7 + $0xd8] sm:$0xff]
        %v299 = vld [vmem:[#allocation7 + $0xe0] sm:$0xff]
        %v300 = vld [vmem:[#allocation7 + $0xe8] sm:$0xff]
        %v301 = vld [vmem:[#allocation7 + $0xf0] sm:$0xff]
        %v302 = vld [vmem:[#allocation7 + $0xf8] sm:$0xff]
        %v303 = vld [vmem:[#allocation7 + $0x100] sm:$0xff]
        %v304 = vld [vmem:[#allocation7 + $0x108] sm:$0xff]
        %v305 = vld [vmem:[#allocation7 + $0x110] sm:$0xff]
        %v306 = vld [vmem:[#allocation7 + $0x118] sm:$0xff]
        %v307 = vld [vmem:[#allocation7 + $0x120] sm:$0xff]
        %v308 = vld [vmem:[#allocation7 + $0x128] sm:$0xff]
        %v309 = vld [vmem:[#allocation7 + $0x130] sm:$0xff]
        %v310 = vld [vmem:[#allocation7 + $0x138] sm:$0xff]
        %v311 = vld [vmem:[#allocation7 + $0x140] sm:$0xff]
        %v312 = vld [vmem:[#allocation7 + $0x148] sm:$0xff]
        %v313 = vld [vmem:[#allocation7 + $0x150] sm:$0xff]
        %v314 = vld [vmem:[#allocation7 + $0x158] sm:$0xff]
        %v315 = vld [vmem:[#allocation7 + $0x160] sm:$0xff]
        %v316 = vld [vmem:[#allocation7 + $0x168] sm:$0xff]
        %v317 = vld [vmem:[#allocation7 + $0x170] sm:$0xff]
        %v318 = vld [vmem:[#allocation7 + $0x178] sm:$0xff]
        %v319 = vld [vmem:[#allocation7 + $0x180] sm:$0xff]
        %v320 = vld [vmem:[#allocation7 + $0x188] sm:$0xff]
        %v321 = vld [vmem:[#allocation7 + $0x190] sm:$0xff]
        %v322 = vld [vmem:[#allocation7 + $0x198] sm:$0xff]
        %v323 = vld [vmem:[#allocation7 + $0x1a0] sm:$0xff]
        %v324 = vld [vmem:[#allocation7 + $0x1a8] sm:$0xff]
        %v325 = vld [vmem:[#allocation7 + $0x1b0] sm:$0xff]
        %v326 = vld [vmem:[#allocation7 + $0x1b8] sm:$0xff]
        %v327 = vld [vmem:[#allocation7 + $0x1c0] sm:$0xff]
        %v328 = vld [vmem:[#allocation7 + $0x1c8] sm:$0xff]
        %v329 = vld [vmem:[#allocation7 + $0x1d0] sm:$0xff]
        %v330 = vld [vmem:[#allocation7 + $0x1d8] sm:$0xff]
        %v331 = vld [vmem:[#allocation7 + $0x1e0] sm:$0xff]
        %v332 = vld [vmem:[#allocation7 + $0x1e8] sm:$0xff]
        %v333 = vld [vmem:[#allocation7 + $0x1f0] sm:$0xff]
        %v334 = vld [vmem:[#allocation7 + $0x1f8] sm:$0xff]
        %335 = vmatpush.msra.mxu0 %v301
        %336 = vmatpush.msra.mxu0 %v299
        %337 = vmatpush.msra.mxu0 %v297
        %338 = vmatpush.msra.mxu0 %v295
        %339 = vmatpush.msra.mxu0 %v293
        %340 = vmatpush.msra.mxu0 %v291
        %341 = vmatpush.msra.mxu0 %v289
        %342 = vmatpush.msra.mxu0 %v287
        %343 = vmatpush.msra.mxu0 %v285
        %344 = vmatpush.msra.mxu0 %v283
        %345 = vmatpush.msra.mxu0 %v281
        %346 = vmatpush.msra.mxu0 %v279
        %347 = vmatpush.msra.mxu0 %v277
        %348 = vmatpush.msra.mxu0 %v275
        %349 = vmatpush.msra.mxu0 %v273
        %350 = vmatpush.msra.mxu0 %v271
        %351 = vmatmul.f32.gmra.mxu0 %v269
        %v352 = vpop.f32.mrf.mxu0
        %v353 = vadd.f32 0.0, %v352
        %354 = vdwg.mxu0
        %355 = vmatpush.msra.mxu0 %v333
        %356 = vmatpush.msra.mxu0 %v331
        %357 = vmatpush.msra.mxu0 %v329
        %358 = vmatpush.msra.mxu0 %v327
        %359 = vmatpush.msra.mxu0 %v325
        %360 = vmatpush.msra.mxu0 %v323
        %361 = vmatpush.msra.mxu0 %v321
        %362 = vmatpush.msra.mxu0 %v319
        %363 = vmatpush.msra.mxu0 %v317
        %364 = vmatpush.msra.mxu0 %v315
        %365 = vmatpush.msra.mxu0 %v313
        %366 = vmatpush.msra.mxu0 %v311
        %367 = vmatpush.msra.mxu0 %v309
        %368 = vmatpush.msra.mxu0 %v307
        %369 = vmatpush.msra.mxu0 %v305
        %370 = vmatpush.msra.mxu0 %v303
        %371 = vmatmul.f32.gmra.mxu0 %v270
        %v372 = vpop.f32.mrf.mxu0
        %v373 = vadd.f32 %v353, %v372
        %374 = vdwg.mxu0
        %375 = vmatpush.msra.mxu0 %v302
        %376 = vmatpush.msra.mxu0 %v300
        %377 = vmatpush.msra.mxu0 %v298
        %378 = vmatpush.msra.mxu0 %v296
        %379 = vmatpush.msra.mxu0 %v294
        %380 = vmatpush.msra.mxu0 %v292
        %381 = vmatpush.msra.mxu0 %v290
        %382 = vmatpush.msra.mxu0 %v288
        %383 = vmatpush.msra.mxu0 %v286
        %384 = vmatpush.msra.mxu0 %v284
        %385 = vmatpush.msra.mxu0 %v282
        %386 = vmatpush.msra.mxu0 %v280
        %387 = vmatpush.msra.mxu0 %v278
        %388 = vmatpush.msra.mxu0 %v276
        %389 = vmatpush.msra.mxu0 %v274
        %390 = vmatpush.msra.mxu0 %v272
        %391 = vmatmul.f32.gmra.mxu0 %v269
        %v392 = vpop.f32.mrf.mxu0
        %v393 = vadd.f32 0.0, %v392
        %394 = vdwg.mxu0
        %395 = vmatpush.msra.mxu0 %v334
        %396 = vmatpush.msra.mxu0 %v332
        %397 = vmatpush.msra.mxu0 %v330
        %398 = vmatpush.msra.mxu0 %v328
        %399 = vmatpush.msra.mxu0 %v326
        %400 = vmatpush.msra.mxu0 %v324
        %401 = vmatpush.msra.mxu0 %v322
        %402 = vmatpush.msra.mxu0 %v320
        %403 = vmatpush.msra.mxu0 %v318
        %404 = vmatpush.msra.mxu0 %v316
        %405 = vmatpush.msra.mxu0 %v314
        %406 = vmatpush.msra.mxu0 %v312
        %407 = vmatpush.msra.mxu0 %v310
        %408 = vmatpush.msra.mxu0 %v308
        %409 = vmatpush.msra.mxu0 %v306
        %410 = vmatpush.msra.mxu0 %v304
        %411 = vmatmul.f32.gmra.mxu0 %v270
        %v412 = vpop.f32.mrf.mxu0
        %v413 = vadd.f32 %v393, %v412
        %414 = vdwg.mxu0
        %v415 = vadd.f32 %v268, %v373
        %v416 = vadd.f32 %v268, %v413
        %v417 = vld [vmem:[#allocation2] sm:$0xfe]
        %v418 = vld [vmem:[#allocation2 + $0x8] sm:$0xfe]
        %v419 = vld [vmem:[#allocation2 + $0x10] sm:$0x1]
        %v420 = vld [vmem:[#allocation2 + $0x18] sm:$0x1]
        %s421 = scalar_lea.vmem [#allocation7], 512
        %v422 = vld [vmem:[%s421] sm:$0xff]
        %v423 = vld [vmem:[%s421 + $0x8] sm:$0xff]
        %v424 = vld [vmem:[%s421 + $0x10] sm:$0xff]
        %v425 = vld [vmem:[%s421 + $0x18] sm:$0xff]
        %v426 = vld [vmem:[%s421 + $0x20] sm:$0xff]
        %v427 = vld [vmem:[%s421 + $0x28] sm:$0xff]
        %v428 = vld [vmem:[%s421 + $0x30] sm:$0xff]
        %v429 = vld [vmem:[%s421 + $0x38] sm:$0xff]
        %v430 = vld [vmem:[%s421 + $0x40] sm:$0xff]
        %v431 = vld [vmem:[%s421 + $0x48] sm:$0xff]
        %v432 = vld [vmem:[%s421 + $0x50] sm:$0xff]
        %v433 = vld [vmem:[%s421 + $0x58] sm:$0xff]
        %v434 = vld [vmem:[%s421 + $0x60] sm:$0xff]
        %v435 = vld [vmem:[%s421 + $0x68] sm:$0xff]
        %v436 = vld [vmem:[%s421 + $0x70] sm:$0xff]
        %v437 = vld [vmem:[%s421 + $0x78] sm:$0xff]
        %v438 = vld [vmem:[%s421 + $0x80] sm:$0xff]
        %v439 = vld [vmem:[%s421 + $0x88] sm:$0xff]
        %v440 = vld [vmem:[%s421 + $0x90] sm:$0xff]
        %v441 = vld [vmem:[%s421 + $0x98] sm:$0xff]
        %v442 = vld [vmem:[%s421 + $0xa0] sm:$0xff]
        %v443 = vld [vmem:[%s421 + $0xa8] sm:$0xff]
        %v444 = vld [vmem:[%s421 + $0xb0] sm:$0xff]
        %v445 = vld [vmem:[%s421 + $0xb8] sm:$0xff]
        %v446 = vld [vmem:[%s421 + $0xc0] sm:$0xff]
        %v447 = vld [vmem:[%s421 + $0xc8] sm:$0xff]
        %v448 = vld [vmem:[%s421 + $0xd0] sm:$0xff]
        %v449 = vld [vmem:[%s421 + $0xd8] sm:$0xff]
        %v450 = vld [vmem:[%s421 + $0xe0] sm:$0xff]
        %v451 = vld [vmem:[%s421 + $0xe8] sm:$0xff]
        %v452 = vld [vmem:[%s421 + $0xf0] sm:$0xff]
        %v453 = vld [vmem:[%s421 + $0xf8] sm:$0xff]
        %v454 = vld [vmem:[%s421 + $0x100] sm:$0xff]
        %v455 = vld [vmem:[%s421 + $0x108] sm:$0xff]
        %v456 = vld [vmem:[%s421 + $0x110] sm:$0xff]
        %v457 = vld [vmem:[%s421 + $0x118] sm:$0xff]
        %v458 = vld [vmem:[%s421 + $0x120] sm:$0xff]
        %v459 = vld [vmem:[%s421 + $0x128] sm:$0xff]
        %v460 = vld [vmem:[%s421 + $0x130] sm:$0xff]
        %v461 = vld [vmem:[%s421 + $0x138] sm:$0xff]
        %v462 = vld [vmem:[%s421 + $0x140] sm:$0xff]
        %v463 = vld [vmem:[%s421 + $0x148] sm:$0xff]
        %v464 = vld [vmem:[%s421 + $0x150] sm:$0xff]
        %v465 = vld [vmem:[%s421 + $0x158] sm:$0xff]
        %v466 = vld [vmem:[%s421 + $0x160] sm:$0xff]
        %v467 = vld [vmem:[%s421 + $0x168] sm:$0xff]
        %v468 = vld [vmem:[%s421 + $0x170] sm:$0xff]
        %v469 = vld [vmem:[%s421 + $0x178] sm:$0xff]
        %v470 = vld [vmem:[%s421 + $0x180] sm:$0xff]
        %v471 = vld [vmem:[%s421 + $0x188] sm:$0xff]
        %v472 = vld [vmem:[%s421 + $0x190] sm:$0xff]
        %v473 = vld [vmem:[%s421 + $0x198] sm:$0xff]
        %v474 = vld [vmem:[%s421 + $0x1a0] sm:$0xff]
        %v475 = vld [vmem:[%s421 + $0x1a8] sm:$0xff]
        %v476 = vld [vmem:[%s421 + $0x1b0] sm:$0xff]
        %v477 = vld [vmem:[%s421 + $0x1b8] sm:$0xff]
        %v478 = vld [vmem:[%s421 + $0x1c0] sm:$0xff]
        %v479 = vld [vmem:[%s421 + $0x1c8] sm:$0xff]
        %v480 = vld [vmem:[%s421 + $0x1d0] sm:$0xff]
        %v481 = vld [vmem:[%s421 + $0x1d8] sm:$0xff]
        %v482 = vld [vmem:[%s421 + $0x1e0] sm:$0xff]
        %v483 = vld [vmem:[%s421 + $0x1e8] sm:$0xff]
        %v484 = vld [vmem:[%s421 + $0x1f0] sm:$0xff]
        %v485 = vld [vmem:[%s421 + $0x1f8] sm:$0xff]
        %vm490 = vcmask 1046528
        %v491 = vrot.slane %v417, 1
        %v492 = vrot.slane %v419, 1
        %v493 = vsel %vm490, %v491, %v492
        %v494 = vrot.slane %v418, 1
        %v495 = vrot.slane %v420, 1
        %v496 = vsel %vm490, %v494, %v495
        %499 = vmatpush.msra.mxu0 %v452
        %500 = vmatpush.msra.mxu0 %v450
        %501 = vmatpush.msra.mxu0 %v448
        %502 = vmatpush.msra.mxu0 %v446
        %503 = vmatpush.msra.mxu0 %v444
        %504 = vmatpush.msra.mxu0 %v442
        %505 = vmatpush.msra.mxu0 %v440
        %506 = vmatpush.msra.mxu0 %v438
        %507 = vmatpush.msra.mxu0 %v436
        %508 = vmatpush.msra.mxu0 %v434
        %509 = vmatpush.msra.mxu0 %v432
        %510 = vmatpush.msra.mxu0 %v430
        %511 = vmatpush.msra.mxu0 %v428
        %512 = vmatpush.msra.mxu0 %v426
        %513 = vmatpush.msra.mxu0 %v424
        %514 = vmatpush.msra.mxu0 %v422
        %515 = vmatmul.f32.gmra.mxu0 %v493
        %v516 = vpop.f32.mrf.mxu0
        %v517 = vadd.f32 0.0, %v516
        %518 = vdwg.mxu0
        %519 = vmatpush.msra.mxu0 %v484
        %520 = vmatpush.msra.mxu0 %v482
        %521 = vmatpush.msra.mxu0 %v480
        %522 = vmatpush.msra.mxu0 %v478
        %523 = vmatpush.msra.mxu0 %v476
        %524 = vmatpush.msra.mxu0 %v474
        %525 = vmatpush.msra.mxu0 %v472
        %526 = vmatpush.msra.mxu0 %v470
        %527 = vmatpush.msra.mxu0 %v468
        %528 = vmatpush.msra.mxu0 %v466
        %529 = vmatpush.msra.mxu0 %v464
        %530 = vmatpush.msra.mxu0 %v462
        %531 = vmatpush.msra.mxu0 %v460
        %532 = vmatpush.msra.mxu0 %v458
        %533 = vmatpush.msra.mxu0 %v456
        %534 = vmatpush.msra.mxu0 %v454
        %535 = vmatmul.f32.gmra.mxu0 %v496
        %v536 = vpop.f32.mrf.mxu0
        %v537 = vadd.f32 %v517, %v536
        %538 = vdwg.mxu0
        %539 = vmatpush.msra.mxu0 %v453
        %540 = vmatpush.msra.mxu0 %v451
        %541 = vmatpush.msra.mxu0 %v449
        %542 = vmatpush.msra.mxu0 %v447
        %543 = vmatpush.msra.mxu0 %v445
        %544 = vmatpush.msra.mxu0 %v443
        %545 = vmatpush.msra.mxu0 %v441
        %546 = vmatpush.msra.mxu0 %v439
        %547 = vmatpush.msra.mxu0 %v437
        %548 = vmatpush.msra.mxu0 %v435
        %549 = vmatpush.msra.mxu0 %v433
        %550 = vmatpush.msra.mxu0 %v431
        %551 = vmatpush.msra.mxu0 %v429
        %552 = vmatpush.msra.mxu0 %v427
        %553 = vmatpush.msra.mxu0 %v425
        %554 = vmatpush.msra.mxu0 %v423
        %555 = vmatmul.f32.gmra.mxu0 %v493
        %v556 = vpop.f32.mrf.mxu0
        %v557 = vadd.f32 0.0, %v556
        %558 = vdwg.mxu0
        %559 = vmatpush.msra.mxu0 %v485
        %560 = vmatpush.msra.mxu0 %v483
        %561 = vmatpush.msra.mxu0 %v481
        %562 = vmatpush.msra.mxu0 %v479
        %563 = vmatpush.msra.mxu0 %v477
        %564 = vmatpush.msra.mxu0 %v475
        %565 = vmatpush.msra.mxu0 %v473
        %566 = vmatpush.msra.mxu0 %v471
        %567 = vmatpush.msra.mxu0 %v469
        %568 = vmatpush.msra.mxu0 %v467
        %569 = vmatpush.msra.mxu0 %v465
        %570 = vmatpush.msra.mxu0 %v463
        %571 = vmatpush.msra.mxu0 %v461
        %572 = vmatpush.msra.mxu0 %v459
        %573 = vmatpush.msra.mxu0 %v457
        %574 = vmatpush.msra.mxu0 %v455
        %575 = vmatmul.f32.gmra.mxu0 %v496
        %v576 = vpop.f32.mrf.mxu0
        %v577 = vadd.f32 %v557, %v576
        %578 = vdwg.mxu0
        %v579 = vadd.f32 %v415, %v537
        %v580 = vadd.f32 %v416, %v577
        %v581 = vld [vmem:[#allocation2] sm:$0xfc]
        %v582 = vld [vmem:[#allocation2 + $0x8] sm:$0xfc]
        %v583 = vld [vmem:[#allocation2 + $0x10] sm:$0x3]
        %v584 = vld [vmem:[#allocation2 + $0x18] sm:$0x3]
        %s585 = scalar_lea.vmem [#allocation7], 1024
        %v586 = vld [vmem:[%s585] sm:$0xff]
        %v587 = vld [vmem:[%s585 + $0x8] sm:$0xff]
        %v588 = vld [vmem:[%s585 + $0x10] sm:$0xff]
        %v589 = vld [vmem:[%s585 + $0x18] sm:$0xff]
        %v590 = vld [vmem:[%s585 + $0x20] sm:$0xff]
        %v591 = vld [vmem:[%s585 + $0x28] sm:$0xff]
        %v592 = vld [vmem:[%s585 + $0x30] sm:$0xff]
        %v593 = vld [vmem:[%s585 + $0x38] sm:$0xff]
        %v594 = vld [vmem:[%s585 + $0x40] sm:$0xff]
        %v595 = vld [vmem:[%s585 + $0x48] sm:$0xff]
        %v596 = vld [vmem:[%s585 + $0x50] sm:$0xff]
        %v597 = vld [vmem:[%s585 + $0x58] sm:$0xff]
        %v598 = vld [vmem:[%s585 + $0x60] sm:$0xff]
        %v599 = vld [vmem:[%s585 + $0x68] sm:$0xff]
        %v600 = vld [vmem:[%s585 + $0x70] sm:$0xff]
        %v601 = vld [vmem:[%s585 + $0x78] sm:$0xff]
        %v602 = vld [vmem:[%s585 + $0x80] sm:$0xff]
        %v603 = vld [vmem:[%s585 + $0x88] sm:$0xff]
        %v604 = vld [vmem:[%s585 + $0x90] sm:$0xff]
        %v605 = vld [vmem:[%s585 + $0x98] sm:$0xff]
        %v606 = vld [vmem:[%s585 + $0xa0] sm:$0xff]
        %v607 = vld [vmem:[%s585 + $0xa8] sm:$0xff]
        %v608 = vld [vmem:[%s585 + $0xb0] sm:$0xff]
        %v609 = vld [vmem:[%s585 + $0xb8] sm:$0xff]
        %v610 = vld [vmem:[%s585 + $0xc0] sm:$0xff]
        %v611 = vld [vmem:[%s585 + $0xc8] sm:$0xff]
        %v612 = vld [vmem:[%s585 + $0xd0] sm:$0xff]
        %v613 = vld [vmem:[%s585 + $0xd8] sm:$0xff]
        %v614 = vld [vmem:[%s585 + $0xe0] sm:$0xff]
        %v615 = vld [vmem:[%s585 + $0xe8] sm:$0xff]
        %v616 = vld [vmem:[%s585 + $0xf0] sm:$0xff]
        %v617 = vld [vmem:[%s585 + $0xf8] sm:$0xff]
        %v618 = vld [vmem:[%s585 + $0x100] sm:$0xff]
        %v619 = vld [vmem:[%s585 + $0x108] sm:$0xff]
        %v620 = vld [vmem:[%s585 + $0x110] sm:$0xff]
        %v621 = vld [vmem:[%s585 + $0x118] sm:$0xff]
        %v622 = vld [vmem:[%s585 + $0x120] sm:$0xff]
        %v623 = vld [vmem:[%s585 + $0x128] sm:$0xff]
        %v624 = vld [vmem:[%s585 + $0x130] sm:$0xff]
        %v625 = vld [vmem:[%s585 + $0x138] sm:$0xff]
        %v626 = vld [vmem:[%s585 + $0x140] sm:$0xff]
        %v627 = vld [vmem:[%s585 + $0x148] sm:$0xff]
        %v628 = vld [vmem:[%s585 + $0x150] sm:$0xff]
        %v629 = vld [vmem:[%s585 + $0x158] sm:$0xff]
        %v630 = vld [vmem:[%s585 + $0x160] sm:$0xff]
        %v631 = vld [vmem:[%s585 + $0x168] sm:$0xff]
        %v632 = vld [vmem:[%s585 + $0x170] sm:$0xff]
        %v633 = vld [vmem:[%s585 + $0x178] sm:$0xff]
        %v634 = vld [vmem:[%s585 + $0x180] sm:$0xff]
        %v635 = vld [vmem:[%s585 + $0x188] sm:$0xff]
        %v636 = vld [vmem:[%s585 + $0x190] sm:$0xff]
        %v637 = vld [vmem:[%s585 + $0x198] sm:$0xff]
        %v638 = vld [vmem:[%s585 + $0x1a0] sm:$0xff]
        %v639 = vld [vmem:[%s585 + $0x1a8] sm:$0xff]
        %v640 = vld [vmem:[%s585 + $0x1b0] sm:$0xff]
        %v641 = vld [vmem:[%s585 + $0x1b8] sm:$0xff]
        %v642 = vld [vmem:[%s585 + $0x1c0] sm:$0xff]
        %v643 = vld [vmem:[%s585 + $0x1c8] sm:$0xff]
        %v644 = vld [vmem:[%s585 + $0x1d0] sm:$0xff]
        %v645 = vld [vmem:[%s585 + $0x1d8] sm:$0xff]
        %v646 = vld [vmem:[%s585 + $0x1e0] sm:$0xff]
        %v647 = vld [vmem:[%s585 + $0x1e8] sm:$0xff]
        %v648 = vld [vmem:[%s585 + $0x1f0] sm:$0xff]
        %v649 = vld [vmem:[%s585 + $0x1f8] sm:$0xff]
        %vm654 = vcmask 1045504
        %v655 = vrot.slane %v581, 2
        %v656 = vrot.slane %v583, 2
        %v657 = vsel %vm654, %v655, %v656
        %v658 = vrot.slane %v582, 2
        %v659 = vrot.slane %v584, 2
        %v660 = vsel %vm654, %v658, %v659
        %663 = vmatpush.msra.mxu0 %v616
        %664 = vmatpush.msra.mxu0 %v614
        %665 = vmatpush.msra.mxu0 %v612
        %666 = vmatpush.msra.mxu0 %v610
        %667 = vmatpush.msra.mxu0 %v608
        %668 = vmatpush.msra.mxu0 %v606
        %669 = vmatpush.msra.mxu0 %v604
        %670 = vmatpush.msra.mxu0 %v602
        %671 = vmatpush.msra.mxu0 %v600
        %672 = vmatpush.msra.mxu0 %v598
        %673 = vmatpush.msra.mxu0 %v596
        %674 = vmatpush.msra.mxu0 %v594
        %675 = vmatpush.msra.mxu0 %v592
        %676 = vmatpush.msra.mxu0 %v590
        %677 = vmatpush.msra.mxu0 %v588
        %678 = vmatpush.msra.mxu0 %v586
        %679 = vmatmul.f32.gmra.mxu0 %v657
        %v680 = vpop.f32.mrf.mxu0
        %v681 = vadd.f32 0.0, %v680
        %682 = vdwg.mxu0
        %683 = vmatpush.msra.mxu0 %v648
        %684 = vmatpush.msra.mxu0 %v646
        %685 = vmatpush.msra.mxu0 %v644
        %686 = vmatpush.msra.mxu0 %v642
        %687 = vmatpush.msra.mxu0 %v640
        %688 = vmatpush.msra.mxu0 %v638
        %689 = vmatpush.msra.mxu0 %v636
        %690 = vmatpush.msra.mxu0 %v634
        %691 = vmatpush.msra.mxu0 %v632
        %692 = vmatpush.msra.mxu0 %v630
        %693 = vmatpush.msra.mxu0 %v628
        %694 = vmatpush.msra.mxu0 %v626
        %695 = vmatpush.msra.mxu0 %v624
        %696 = vmatpush.msra.mxu0 %v622
        %697 = vmatpush.msra.mxu0 %v620
        %698 = vmatpush.msra.mxu0 %v618
        %699 = vmatmul.f32.gmra.mxu0 %v660
        %v700 = vpop.f32.mrf.mxu0
        %v701 = vadd.f32 %v681, %v700
        %702 = vdwg.mxu0
        %703 = vmatpush.msra.mxu0 %v617
        %704 = vmatpush.msra.mxu0 %v615
        %705 = vmatpush.msra.mxu0 %v613
        %706 = vmatpush.msra.mxu0 %v611
        %707 = vmatpush.msra.mxu0 %v609
        %708 = vmatpush.msra.mxu0 %v607
        %709 = vmatpush.msra.mxu0 %v605
        %710 = vmatpush.msra.mxu0 %v603
        %711 = vmatpush.msra.mxu0 %v601
        %712 = vmatpush.msra.mxu0 %v599
        %713 = vmatpush.msra.mxu0 %v597
        %714 = vmatpush.msra.mxu0 %v595
        %715 = vmatpush.msra.mxu0 %v593
        %716 = vmatpush.msra.mxu0 %v591
        %717 = vmatpush.msra.mxu0 %v589
        %718 = vmatpush.msra.mxu0 %v587
        %719 = vmatmul.f32.gmra.mxu0 %v657
        %v720 = vpop.f32.mrf.mxu0
        %v721 = vadd.f32 0.0, %v720
        %722 = vdwg.mxu0
        %723 = vmatpush.msra.mxu0 %v649
        %724 = vmatpush.msra.mxu0 %v647
        %725 = vmatpush.msra.mxu0 %v645
        %726 = vmatpush.msra.mxu0 %v643
        %727 = vmatpush.msra.mxu0 %v641
        %728 = vmatpush.msra.mxu0 %v639
        %729 = vmatpush.msra.mxu0 %v637
        %730 = vmatpush.msra.mxu0 %v635
        %731 = vmatpush.msra.mxu0 %v633
        %732 = vmatpush.msra.mxu0 %v631
        %733 = vmatpush.msra.mxu0 %v629
        %734 = vmatpush.msra.mxu0 %v627
        %735 = vmatpush.msra.mxu0 %v625
        %736 = vmatpush.msra.mxu0 %v623
        %737 = vmatpush.msra.mxu0 %v621
        %738 = vmatpush.msra.mxu0 %v619
        %739 = vmatmul.f32.gmra.mxu0 %v660
        %v740 = vpop.f32.mrf.mxu0
        %v741 = vadd.f32 %v721, %v740
        %742 = vdwg.mxu0
        %v743 = vadd.f32 %v579, %v701
        %v744 = vadd.f32 %v580, %v741
        %v745 = vld [vmem:[#allocation2] sm:$0xf8]
        %v746 = vld [vmem:[#allocation2 + $0x8] sm:$0xf8]
        %v747 = vld [vmem:[#allocation2 + $0x10] sm:$0x7]
        %v748 = vld [vmem:[#allocation2 + $0x18] sm:$0x7]
        %s749 = scalar_lea.vmem [#allocation7], 1536
        %v750 = vld [vmem:[%s749] sm:$0xff]
        %v751 = vld [vmem:[%s749 + $0x8] sm:$0xff]
        %v752 = vld [vmem:[%s749 + $0x10] sm:$0xff]
        %v753 = vld [vmem:[%s749 + $0x18] sm:$0xff]
        %v754 = vld [vmem:[%s749 + $0x20] sm:$0xff]
        %v755 = vld [vmem:[%s749 + $0x28] sm:$0xff]
        %v756 = vld [vmem:[%s749 + $0x30] sm:$0xff]
        %v757 = vld [vmem:[%s749 + $0x38] sm:$0xff]
        %v758 = vld [vmem:[%s749 + $0x40] sm:$0xff]
        %v759 = vld [vmem:[%s749 + $0x48] sm:$0xff]
        %v760 = vld [vmem:[%s749 + $0x50] sm:$0xff]
        %v761 = vld [vmem:[%s749 + $0x58] sm:$0xff]
        %v762 = vld [vmem:[%s749 + $0x60] sm:$0xff]
        %v763 = vld [vmem:[%s749 + $0x68] sm:$0xff]
        %v764 = vld [vmem:[%s749 + $0x70] sm:$0xff]
        %v765 = vld [vmem:[%s749 + $0x78] sm:$0xff]
        %v766 = vld [vmem:[%s749 + $0x80] sm:$0xff]
        %v767 = vld [vmem:[%s749 + $0x88] sm:$0xff]
        %v768 = vld [vmem:[%s749 + $0x90] sm:$0xff]
        %v769 = vld [vmem:[%s749 + $0x98] sm:$0xff]
        %v770 = vld [vmem:[%s749 + $0xa0] sm:$0xff]
        %v771 = vld [vmem:[%s749 + $0xa8] sm:$0xff]
        %v772 = vld [vmem:[%s749 + $0xb0] sm:$0xff]
        %v773 = vld [vmem:[%s749 + $0xb8] sm:$0xff]
        %v774 = vld [vmem:[%s749 + $0xc0] sm:$0xff]
        %v775 = vld [vmem:[%s749 + $0xc8] sm:$0xff]
        %v776 = vld [vmem:[%s749 + $0xd0] sm:$0xff]
        %v777 = vld [vmem:[%s749 + $0xd8] sm:$0xff]
        %v778 = vld [vmem:[%s749 + $0xe0] sm:$0xff]
        %v779 = vld [vmem:[%s749 + $0xe8] sm:$0xff]
        %v780 = vld [vmem:[%s749 + $0xf0] sm:$0xff]
        %v781 = vld [vmem:[%s749 + $0xf8] sm:$0xff]
        %v782 = vld [vmem:[%s749 + $0x100] sm:$0xff]
        %v783 = vld [vmem:[%s749 + $0x108] sm:$0xff]
        %v784 = vld [vmem:[%s749 + $0x110] sm:$0xff]
        %v785 = vld [vmem:[%s749 + $0x118] sm:$0xff]
        %v786 = vld [vmem:[%s749 + $0x120] sm:$0xff]
        %v787 = vld [vmem:[%s749 + $0x128] sm:$0xff]
        %v788 = vld [vmem:[%s749 + $0x130] sm:$0xff]
        %v789 = vld [vmem:[%s749 + $0x138] sm:$0xff]
        %v790 = vld [vmem:[%s749 + $0x140] sm:$0xff]
        %v791 = vld [vmem:[%s749 + $0x148] sm:$0xff]
        %v792 = vld [vmem:[%s749 + $0x150] sm:$0xff]
        %v793 = vld [vmem:[%s749 + $0x158] sm:$0xff]
        %v794 = vld [vmem:[%s749 + $0x160] sm:$0xff]
        %v795 = vld [vmem:[%s749 + $0x168] sm:$0xff]
        %v796 = vld [vmem:[%s749 + $0x170] sm:$0xff]
        %v797 = vld [vmem:[%s749 + $0x178] sm:$0xff]
        %v798 = vld [vmem:[%s749 + $0x180] sm:$0xff]
        %v799 = vld [vmem:[%s749 + $0x188] sm:$0xff]
        %v800 = vld [vmem:[%s749 + $0x190] sm:$0xff]
        %v801 = vld [vmem:[%s749 + $0x198] sm:$0xff]
        %v802 = vld [vmem:[%s749 + $0x1a0] sm:$0xff]
        %v803 = vld [vmem:[%s749 + $0x1a8] sm:$0xff]
        %v804 = vld [vmem:[%s749 + $0x1b0] sm:$0xff]
        %v805 = vld [vmem:[%s749 + $0x1b8] sm:$0xff]
        %v806 = vld [vmem:[%s749 + $0x1c0] sm:$0xff]
        %v807 = vld [vmem:[%s749 + $0x1c8] sm:$0xff]
        %v808 = vld [vmem:[%s749 + $0x1d0] sm:$0xff]
        %v809 = vld [vmem:[%s749 + $0x1d8] sm:$0xff]
        %v810 = vld [vmem:[%s749 + $0x1e0] sm:$0xff]
        %v811 = vld [vmem:[%s749 + $0x1e8] sm:$0xff]
        %v812 = vld [vmem:[%s749 + $0x1f0] sm:$0xff]
        %v813 = vld [vmem:[%s749 + $0x1f8] sm:$0xff]
        %vm818 = vcmask 1044480
        %v819 = vrot.slane %v745, 3
        %v820 = vrot.slane %v747, 3
        %v821 = vsel %vm818, %v819, %v820
        %v822 = vrot.slane %v746, 3
        %v823 = vrot.slane %v748, 3
        %v824 = vsel %vm818, %v822, %v823
        %827 = vmatpush.msra.mxu0 %v780
        %828 = vmatpush.msra.mxu0 %v778
        %829 = vmatpush.msra.mxu0 %v776
        %830 = vmatpush.msra.mxu0 %v774
        %831 = vmatpush.msra.mxu0 %v772
        %832 = vmatpush.msra.mxu0 %v770
        %833 = vmatpush.msra.mxu0 %v768
        %834 = vmatpush.msra.mxu0 %v766
        %835 = vmatpush.msra.mxu0 %v764
        %836 = vmatpush.msra.mxu0 %v762
        %837 = vmatpush.msra.mxu0 %v760
        %838 = vmatpush.msra.mxu0 %v758
        %839 = vmatpush.msra.mxu0 %v756
        %840 = vmatpush.msra.mxu0 %v754
        %841 = vmatpush.msra.mxu0 %v752
        %842 = vmatpush.msra.mxu0 %v750
        %843 = vmatmul.f32.gmra.mxu0 %v821
        %v844 = vpop.f32.mrf.mxu0
        %v845 = vadd.f32 0.0, %v844
        %846 = vdwg.mxu0
        %847 = vmatpush.msra.mxu0 %v812
        %848 = vmatpush.msra.mxu0 %v810
        %849 = vmatpush.msra.mxu0 %v808
        %850 = vmatpush.msra.mxu0 %v806
        %851 = vmatpush.msra.mxu0 %v804
        %852 = vmatpush.msra.mxu0 %v802
        %853 = vmatpush.msra.mxu0 %v800
        %854 = vmatpush.msra.mxu0 %v798
        %855 = vmatpush.msra.mxu0 %v796
        %856 = vmatpush.msra.mxu0 %v794
        %857 = vmatpush.msra.mxu0 %v792
        %858 = vmatpush.msra.mxu0 %v790
        %859 = vmatpush.msra.mxu0 %v788
        %860 = vmatpush.msra.mxu0 %v786
        %861 = vmatpush.msra.mxu0 %v784
        %862 = vmatpush.msra.mxu0 %v782
        %863 = vmatmul.f32.gmra.mxu0 %v824
        %v864 = vpop.f32.mrf.mxu0
        %v865 = vadd.f32 %v845, %v864
        %866 = vdwg.mxu0
        %867 = vmatpush.msra.mxu0 %v781
        %868 = vmatpush.msra.mxu0 %v779
        %869 = vmatpush.msra.mxu0 %v777
        %870 = vmatpush.msra.mxu0 %v775
        %871 = vmatpush.msra.mxu0 %v773
        %872 = vmatpush.msra.mxu0 %v771
        %873 = vmatpush.msra.mxu0 %v769
        %874 = vmatpush.msra.mxu0 %v767
        %875 = vmatpush.msra.mxu0 %v765
        %876 = vmatpush.msra.mxu0 %v763
        %877 = vmatpush.msra.mxu0 %v761
        %878 = vmatpush.msra.mxu0 %v759
        %879 = vmatpush.msra.mxu0 %v757
        %880 = vmatpush.msra.mxu0 %v755
        %881 = vmatpush.msra.mxu0 %v753
        %882 = vmatpush.msra.mxu0 %v751
        %883 = vmatmul.f32.gmra.mxu0 %v821
        %v884 = vpop.f32.mrf.mxu0
        %v885 = vadd.f32 0.0, %v884
        %886 = vdwg.mxu0
        %887 = vmatpush.msra.mxu0 %v813
        %888 = vmatpush.msra.mxu0 %v811
        %889 = vmatpush.msra.mxu0 %v809
        %890 = vmatpush.msra.mxu0 %v807
        %891 = vmatpush.msra.mxu0 %v805
        %892 = vmatpush.msra.mxu0 %v803
        %893 = vmatpush.msra.mxu0 %v801
        %894 = vmatpush.msra.mxu0 %v799
        %895 = vmatpush.msra.mxu0 %v797
        %896 = vmatpush.msra.mxu0 %v795
        %897 = vmatpush.msra.mxu0 %v793
        %898 = vmatpush.msra.mxu0 %v791
        %899 = vmatpush.msra.mxu0 %v789
        %900 = vmatpush.msra.mxu0 %v787
        %901 = vmatpush.msra.mxu0 %v785
        %902 = vmatpush.msra.mxu0 %v783
        %903 = vmatmul.f32.gmra.mxu0 %v824
        %v904 = vpop.f32.mrf.mxu0
        %v905 = vadd.f32 %v885, %v904
        %906 = vdwg.mxu0
        %v907 = vadd.f32 %v743, %v865
        %v908 = vadd.f32 %v744, %v905
        %v909 = vld [vmem:[#allocation2] sm:$0xf0]
        %v910 = vld [vmem:[#allocation2 + $0x8] sm:$0xf0]
        %v911 = vld [vmem:[#allocation2 + $0x10] sm:$0xf]
        %v912 = vld [vmem:[#allocation2 + $0x18] sm:$0xf]
        %s913 = scalar_lea.vmem [#allocation7], 2048
        %v914 = vld [vmem:[%s913] sm:$0xff]
        %v915 = vld [vmem:[%s913 + $0x8] sm:$0xff]
        %v916 = vld [vmem:[%s913 + $0x10] sm:$0xff]
        %v917 = vld [vmem:[%s913 + $0x18] sm:$0xff]
        %v918 = vld [vmem:[%s913 + $0x20] sm:$0xff]
        %v919 = vld [vmem:[%s913 + $0x28] sm:$0xff]
        %v920 = vld [vmem:[%s913 + $0x30] sm:$0xff]
        %v921 = vld [vmem:[%s913 + $0x38] sm:$0xff]
        %v922 = vld [vmem:[%s913 + $0x40] sm:$0xff]
        %v923 = vld [vmem:[%s913 + $0x48] sm:$0xff]
        %v924 = vld [vmem:[%s913 + $0x50] sm:$0xff]
        %v925 = vld [vmem:[%s913 + $0x58] sm:$0xff]
        %v926 = vld [vmem:[%s913 + $0x60] sm:$0xff]
        %v927 = vld [vmem:[%s913 + $0x68] sm:$0xff]
        %v928 = vld [vmem:[%s913 + $0x70] sm:$0xff]
        %v929 = vld [vmem:[%s913 + $0x78] sm:$0xff]
        %v930 = vld [vmem:[%s913 + $0x80] sm:$0xff]
        %v931 = vld [vmem:[%s913 + $0x88] sm:$0xff]
        %v932 = vld [vmem:[%s913 + $0x90] sm:$0xff]
        %v933 = vld [vmem:[%s913 + $0x98] sm:$0xff]
        %v934 = vld [vmem:[%s913 + $0xa0] sm:$0xff]
        %v935 = vld [vmem:[%s913 + $0xa8] sm:$0xff]
        %v936 = vld [vmem:[%s913 + $0xb0] sm:$0xff]
        %v937 = vld [vmem:[%s913 + $0xb8] sm:$0xff]
        %v938 = vld [vmem:[%s913 + $0xc0] sm:$0xff]
        %v939 = vld [vmem:[%s913 + $0xc8] sm:$0xff]
        %v940 = vld [vmem:[%s913 + $0xd0] sm:$0xff]
        %v941 = vld [vmem:[%s913 + $0xd8] sm:$0xff]
        %v942 = vld [vmem:[%s913 + $0xe0] sm:$0xff]
        %v943 = vld [vmem:[%s913 + $0xe8] sm:$0xff]
        %v944 = vld [vmem:[%s913 + $0xf0] sm:$0xff]
        %v945 = vld [vmem:[%s913 + $0xf8] sm:$0xff]
        %v946 = vld [vmem:[%s913 + $0x100] sm:$0xff]
        %v947 = vld [vmem:[%s913 + $0x108] sm:$0xff]
        %v948 = vld [vmem:[%s913 + $0x110] sm:$0xff]
        %v949 = vld [vmem:[%s913 + $0x118] sm:$0xff]
        %v950 = vld [vmem:[%s913 + $0x120] sm:$0xff]
        %v951 = vld [vmem:[%s913 + $0x128] sm:$0xff]
        %v952 = vld [vmem:[%s913 + $0x130] sm:$0xff]
        %v953 = vld [vmem:[%s913 + $0x138] sm:$0xff]
        %v954 = vld [vmem:[%s913 + $0x140] sm:$0xff]
        %v955 = vld [vmem:[%s913 + $0x148] sm:$0xff]
        %v956 = vld [vmem:[%s913 + $0x150] sm:$0xff]
        %v957 = vld [vmem:[%s913 + $0x158] sm:$0xff]
        %v958 = vld [vmem:[%s913 + $0x160] sm:$0xff]
        %v959 = vld [vmem:[%s913 + $0x168] sm:$0xff]
        %v960 = vld [vmem:[%s913 + $0x170] sm:$0xff]
        %v961 = vld [vmem:[%s913 + $0x178] sm:$0xff]
        %v962 = vld [vmem:[%s913 + $0x180] sm:$0xff]
        %v963 = vld [vmem:[%s913 + $0x188] sm:$0xff]
        %v964 = vld [vmem:[%s913 + $0x190] sm:$0xff]
        %v965 = vld [vmem:[%s913 + $0x198] sm:$0xff]
        %v966 = vld [vmem:[%s913 + $0x1a0] sm:$0xff]
        %v967 = vld [vmem:[%s913 + $0x1a8] sm:$0xff]
        %v968 = vld [vmem:[%s913 + $0x1b0] sm:$0xff]
        %v969 = vld [vmem:[%s913 + $0x1b8] sm:$0xff]
        %v970 = vld [vmem:[%s913 + $0x1c0] sm:$0xff]
        %v971 = vld [vmem:[%s913 + $0x1c8] sm:$0xff]
        %v972 = vld [vmem:[%s913 + $0x1d0] sm:$0xff]
        %v973 = vld [vmem:[%s913 + $0x1d8] sm:$0xff]
        %v974 = vld [vmem:[%s913 + $0x1e0] sm:$0xff]
        %v975 = vld [vmem:[%s913 + $0x1e8] sm:$0xff]
        %v976 = vld [vmem:[%s913 + $0x1f0] sm:$0xff]
        %v977 = vld [vmem:[%s913 + $0x1f8] sm:$0xff]
        %vm982 = vcmask 1043456
        %v983 = vrot.slane %v909, 4
        %v984 = vrot.slane %v911, 4
        %v985 = vsel %vm982, %v983, %v984
        %v986 = vrot.slane %v910, 4
        %v987 = vrot.slane %v912, 4
        %v988 = vsel %vm982, %v986, %v987
        %991 = vmatpush.msra.mxu0 %v944
        %992 = vmatpush.msra.mxu0 %v942
        %993 = vmatpush.msra.mxu0 %v940
        %994 = vmatpush.msra.mxu0 %v938
        %995 = vmatpush.msra.mxu0 %v936
        %996 = vmatpush.msra.mxu0 %v934
        %997 = vmatpush.msra.mxu0 %v932
        %998 = vmatpush.msra.mxu0 %v930
        %999 = vmatpush.msra.mxu0 %v928
        %1000 = vmatpush.msra.mxu0 %v926
        %1001 = vmatpush.msra.mxu0 %v924
        %1002 = vmatpush.msra.mxu0 %v922
        %1003 = vmatpush.msra.mxu0 %v920
        %1004 = vmatpush.msra.mxu0 %v918
        %1005 = vmatpush.msra.mxu0 %v916
        %1006 = vmatpush.msra.mxu0 %v914
        %1007 = vmatmul.f32.gmra.mxu0 %v985
        %v1008 = vpop.f32.mrf.mxu0
        %v1009 = vadd.f32 0.0, %v1008
        %1010 = vdwg.mxu0
        %1011 = vmatpush.msra.mxu0 %v976
        %1012 = vmatpush.msra.mxu0 %v974
        %1013 = vmatpush.msra.mxu0 %v972
        %1014 = vmatpush.msra.mxu0 %v970
        %1015 = vmatpush.msra.mxu0 %v968
        %1016 = vmatpush.msra.mxu0 %v966
        %1017 = vmatpush.msra.mxu0 %v964
        %1018 = vmatpush.msra.mxu0 %v962
        %1019 = vmatpush.msra.mxu0 %v960
        %1020 = vmatpush.msra.mxu0 %v958
        %1021 = vmatpush.msra.mxu0 %v956
        %1022 = vmatpush.msra.mxu0 %v954
        %1023 = vmatpush.msra.mxu0 %v952
        %1024 = vmatpush.msra.mxu0 %v950
        %1025 = vmatpush.msra.mxu0 %v948
        %1026 = vmatpush.msra.mxu0 %v946
        %1027 = vmatmul.f32.gmra.mxu0 %v988
        %v1028 = vpop.f32.mrf.mxu0
        %v1029 = vadd.f32 %v1009, %v1028
        %1030 = vdwg.mxu0
        %1031 = vmatpush.msra.mxu0 %v945
        %1032 = vmatpush.msra.mxu0 %v943
        %1033 = vmatpush.msra.mxu0 %v941
        %1034 = vmatpush.msra.mxu0 %v939
        %1035 = vmatpush.msra.mxu0 %v937
        %1036 = vmatpush.msra.mxu0 %v935
        %1037 = vmatpush.msra.mxu0 %v933
        %1038 = vmatpush.msra.mxu0 %v931
        %1039 = vmatpush.msra.mxu0 %v929
        %1040 = vmatpush.msra.mxu0 %v927
        %1041 = vmatpush.msra.mxu0 %v925
        %1042 = vmatpush.msra.mxu0 %v923
        %1043 = vmatpush.msra.mxu0 %v921
        %1044 = vmatpush.msra.mxu0 %v919
        %1045 = vmatpush.msra.mxu0 %v917
        %1046 = vmatpush.msra.mxu0 %v915
        %1047 = vmatmul.f32.gmra.mxu0 %v985
        %v1048 = vpop.f32.mrf.mxu0
        %v1049 = vadd.f32 0.0, %v1048
        %1050 = vdwg.mxu0
        %1051 = vmatpush.msra.mxu0 %v977
        %1052 = vmatpush.msra.mxu0 %v975
        %1053 = vmatpush.msra.mxu0 %v973
        %1054 = vmatpush.msra.mxu0 %v971
        %1055 = vmatpush.msra.mxu0 %v969
        %1056 = vmatpush.msra.mxu0 %v967
        %1057 = vmatpush.msra.mxu0 %v965
        %1058 = vmatpush.msra.mxu0 %v963
        %1059 = vmatpush.msra.mxu0 %v961
        %1060 = vmatpush.msra.mxu0 %v959
        %1061 = vmatpush.msra.mxu0 %v957
        %1062 = vmatpush.msra.mxu0 %v955
        %1063 = vmatpush.msra.mxu0 %v953
        %1064 = vmatpush.msra.mxu0 %v951
        %1065 = vmatpush.msra.mxu0 %v949
        %1066 = vmatpush.msra.mxu0 %v947
        %1067 = vmatmul.f32.gmra.mxu0 %v988
        %v1068 = vpop.f32.mrf.mxu0
        %v1069 = vadd.f32 %v1049, %v1068
        %1070 = vdwg.mxu0
        %v1071 = vadd.f32 %v907, %v1029
        %v1072 = vadd.f32 %v908, %v1069
        %v1073 = vld [vmem:[#allocation2] sm:$0xe0]
        %v1074 = vld [vmem:[#allocation2 + $0x8] sm:$0xe0]
        %v1075 = vld [vmem:[#allocation2 + $0x10] sm:$0x1f]
        %v1076 = vld [vmem:[#allocation2 + $0x18] sm:$0x1f]
        %s1077 = scalar_lea.vmem [#allocation7], 2560
        %v1078 = vld [vmem:[%s1077] sm:$0xff]
        %v1079 = vld [vmem:[%s1077 + $0x8] sm:$0xff]
        %v1080 = vld [vmem:[%s1077 + $0x10] sm:$0xff]
        %v1081 = vld [vmem:[%s1077 + $0x18] sm:$0xff]
        %v1082 = vld [vmem:[%s1077 + $0x20] sm:$0xff]
        %v1083 = vld [vmem:[%s1077 + $0x28] sm:$0xff]
        %v1084 = vld [vmem:[%s1077 + $0x30] sm:$0xff]
        %v1085 = vld [vmem:[%s1077 + $0x38] sm:$0xff]
        %v1086 = vld [vmem:[%s1077 + $0x40] sm:$0xff]
        %v1087 = vld [vmem:[%s1077 + $0x48] sm:$0xff]
        %v1088 = vld [vmem:[%s1077 + $0x50] sm:$0xff]
        %v1089 = vld [vmem:[%s1077 + $0x58] sm:$0xff]
        %v1090 = vld [vmem:[%s1077 + $0x60] sm:$0xff]
        %v1091 = vld [vmem:[%s1077 + $0x68] sm:$0xff]
        %v1092 = vld [vmem:[%s1077 + $0x70] sm:$0xff]
        %v1093 = vld [vmem:[%s1077 + $0x78] sm:$0xff]
        %v1094 = vld [vmem:[%s1077 + $0x80] sm:$0xff]
        %v1095 = vld [vmem:[%s1077 + $0x88] sm:$0xff]
        %v1096 = vld [vmem:[%s1077 + $0x90] sm:$0xff]
        %v1097 = vld [vmem:[%s1077 + $0x98] sm:$0xff]
        %v1098 = vld [vmem:[%s1077 + $0xa0] sm:$0xff]
        %v1099 = vld [vmem:[%s1077 + $0xa8] sm:$0xff]
        %v1100 = vld [vmem:[%s1077 + $0xb0] sm:$0xff]
        %v1101 = vld [vmem:[%s1077 + $0xb8] sm:$0xff]
        %v1102 = vld [vmem:[%s1077 + $0xc0] sm:$0xff]
        %v1103 = vld [vmem:[%s1077 + $0xc8] sm:$0xff]
        %v1104 = vld [vmem:[%s1077 + $0xd0] sm:$0xff]
        %v1105 = vld [vmem:[%s1077 + $0xd8] sm:$0xff]
        %v1106 = vld [vmem:[%s1077 + $0xe0] sm:$0xff]
        %v1107 = vld [vmem:[%s1077 + $0xe8] sm:$0xff]
        %v1108 = vld [vmem:[%s1077 + $0xf0] sm:$0xff]
        %v1109 = vld [vmem:[%s1077 + $0xf8] sm:$0xff]
        %v1110 = vld [vmem:[%s1077 + $0x100] sm:$0xff]
        %v1111 = vld [vmem:[%s1077 + $0x108] sm:$0xff]
        %v1112 = vld [vmem:[%s1077 + $0x110] sm:$0xff]
        %v1113 = vld [vmem:[%s1077 + $0x118] sm:$0xff]
        %v1114 = vld [vmem:[%s1077 + $0x120] sm:$0xff]
        %v1115 = vld [vmem:[%s1077 + $0x128] sm:$0xff]
        %v1116 = vld [vmem:[%s1077 + $0x130] sm:$0xff]
        %v1117 = vld [vmem:[%s1077 + $0x138] sm:$0xff]
        %v1118 = vld [vmem:[%s1077 + $0x140] sm:$0xff]
        %v1119 = vld [vmem:[%s1077 + $0x148] sm:$0xff]
        %v1120 = vld [vmem:[%s1077 + $0x150] sm:$0xff]
        %v1121 = vld [vmem:[%s1077 + $0x158] sm:$0xff]
        %v1122 = vld [vmem:[%s1077 + $0x160] sm:$0xff]
        %v1123 = vld [vmem:[%s1077 + $0x168] sm:$0xff]
        %v1124 = vld [vmem:[%s1077 + $0x170] sm:$0xff]
        %v1125 = vld [vmem:[%s1077 + $0x178] sm:$0xff]
        %v1126 = vld [vmem:[%s1077 + $0x180] sm:$0xff]
        %v1127 = vld [vmem:[%s1077 + $0x188] sm:$0xff]
        %v1128 = vld [vmem:[%s1077 + $0x190] sm:$0xff]
        %v1129 = vld [vmem:[%s1077 + $0x198] sm:$0xff]
        %v1130 = vld [vmem:[%s1077 + $0x1a0] sm:$0xff]
        %v1131 = vld [vmem:[%s1077 + $0x1a8] sm:$0xff]
        %v1132 = vld [vmem:[%s1077 + $0x1b0] sm:$0xff]
        %v1133 = vld [vmem:[%s1077 + $0x1b8] sm:$0xff]
        %v1134 = vld [vmem:[%s1077 + $0x1c0] sm:$0xff]
        %v1135 = vld [vmem:[%s1077 + $0x1c8] sm:$0xff]
        %v1136 = vld [vmem:[%s1077 + $0x1d0] sm:$0xff]
        %v1137 = vld [vmem:[%s1077 + $0x1d8] sm:$0xff]
        %v1138 = vld [vmem:[%s1077 + $0x1e0] sm:$0xff]
        %v1139 = vld [vmem:[%s1077 + $0x1e8] sm:$0xff]
        %v1140 = vld [vmem:[%s1077 + $0x1f0] sm:$0xff]
        %v1141 = vld [vmem:[%s1077 + $0x1f8] sm:$0xff]
        %vm1146 = vcmask 1042432
        %v1147 = vrot.slane %v1073, 5
        %v1148 = vrot.slane %v1075, 5
        %v1149 = vsel %vm1146, %v1147, %v1148
        %v1150 = vrot.slane %v1074, 5
        %v1151 = vrot.slane %v1076, 5
        %v1152 = vsel %vm1146, %v1150, %v1151
        %1155 = vmatpush.msra.mxu0 %v1108
        %1156 = vmatpush.msra.mxu0 %v1106
        %1157 = vmatpush.msra.mxu0 %v1104
        %1158 = vmatpush.msra.mxu0 %v1102
        %1159 = vmatpush.msra.mxu0 %v1100
        %1160 = vmatpush.msra.mxu0 %v1098
        %1161 = vmatpush.msra.mxu0 %v1096
        %1162 = vmatpush.msra.mxu0 %v1094
        %1163 = vmatpush.msra.mxu0 %v1092
        %1164 = vmatpush.msra.mxu0 %v1090
        %1165 = vmatpush.msra.mxu0 %v1088
        %1166 = vmatpush.msra.mxu0 %v1086
        %1167 = vmatpush.msra.mxu0 %v1084
        %1168 = vmatpush.msra.mxu0 %v1082
        %1169 = vmatpush.msra.mxu0 %v1080
        %1170 = vmatpush.msra.mxu0 %v1078
        %1171 = vmatmul.f32.gmra.mxu0 %v1149
        %v1172 = vpop.f32.mrf.mxu0
        %v1173 = vadd.f32 0.0, %v1172
        %1174 = vdwg.mxu0
        %1175 = vmatpush.msra.mxu0 %v1140
        %1176 = vmatpush.msra.mxu0 %v1138
        %1177 = vmatpush.msra.mxu0 %v1136
        %1178 = vmatpush.msra.mxu0 %v1134
        %1179 = vmatpush.msra.mxu0 %v1132
        %1180 = vmatpush.msra.mxu0 %v1130
        %1181 = vmatpush.msra.mxu0 %v1128
        %1182 = vmatpush.msra.mxu0 %v1126
        %1183 = vmatpush.msra.mxu0 %v1124
        %1184 = vmatpush.msra.mxu0 %v1122
        %1185 = vmatpush.msra.mxu0 %v1120
        %1186 = vmatpush.msra.mxu0 %v1118
        %1187 = vmatpush.msra.mxu0 %v1116
        %1188 = vmatpush.msra.mxu0 %v1114
        %1189 = vmatpush.msra.mxu0 %v1112
        %1190 = vmatpush.msra.mxu0 %v1110
        %1191 = vmatmul.f32.gmra.mxu0 %v1152
        %v1192 = vpop.f32.mrf.mxu0
        %v1193 = vadd.f32 %v1173, %v1192
        %1194 = vdwg.mxu0
        %1195 = vmatpush.msra.mxu0 %v1109
        %1196 = vmatpush.msra.mxu0 %v1107
        %1197 = vmatpush.msra.mxu0 %v1105
        %1198 = vmatpush.msra.mxu0 %v1103
        %1199 = vmatpush.msra.mxu0 %v1101
        %1200 = vmatpush.msra.mxu0 %v1099
        %1201 = vmatpush.msra.mxu0 %v1097
        %1202 = vmatpush.msra.mxu0 %v1095
        %1203 = vmatpush.msra.mxu0 %v1093
        %1204 = vmatpush.msra.mxu0 %v1091
        %1205 = vmatpush.msra.mxu0 %v1089
        %1206 = vmatpush.msra.mxu0 %v1087
        %1207 = vmatpush.msra.mxu0 %v1085
        %1208 = vmatpush.msra.mxu0 %v1083
        %1209 = vmatpush.msra.mxu0 %v1081
        %1210 = vmatpush.msra.mxu0 %v1079
        %1211 = vmatmul.f32.gmra.mxu0 %v1149
        %v1212 = vpop.f32.mrf.mxu0
        %v1213 = vadd.f32 0.0, %v1212
        %1214 = vdwg.mxu0
        %1215 = vmatpush.msra.mxu0 %v1141
        %1216 = vmatpush.msra.mxu0 %v1139
        %1217 = vmatpush.msra.mxu0 %v1137
        %1218 = vmatpush.msra.mxu0 %v1135
        %1219 = vmatpush.msra.mxu0 %v1133
        %1220 = vmatpush.msra.mxu0 %v1131
        %1221 = vmatpush.msra.mxu0 %v1129
        %1222 = vmatpush.msra.mxu0 %v1127
        %1223 = vmatpush.msra.mxu0 %v1125
        %1224 = vmatpush.msra.mxu0 %v1123
        %1225 = vmatpush.msra.mxu0 %v1121
        %1226 = vmatpush.msra.mxu0 %v1119
        %1227 = vmatpush.msra.mxu0 %v1117
        %1228 = vmatpush.msra.mxu0 %v1115
        %1229 = vmatpush.msra.mxu0 %v1113
        %1230 = vmatpush.msra.mxu0 %v1111
        %1231 = vmatmul.f32.gmra.mxu0 %v1152
        %v1232 = vpop.f32.mrf.mxu0
        %v1233 = vadd.f32 %v1213, %v1232
        %1234 = vdwg.mxu0
        %v1235 = vadd.f32 %v1071, %v1193
        %v1236 = vadd.f32 %v1072, %v1233
        %v1237 = vld [vmem:[#allocation2] sm:$0xc0]
        %v1238 = vld [vmem:[#allocation2 + $0x8] sm:$0xc0]
        %v1239 = vld [vmem:[#allocation2 + $0x10] sm:$0x3f]
        %v1240 = vld [vmem:[#allocation2 + $0x18] sm:$0x3f]
        %s1241 = scalar_lea.vmem [#allocation7], 3072
        %v1242 = vld [vmem:[%s1241] sm:$0xff]
        %v1243 = vld [vmem:[%s1241 + $0x8] sm:$0xff]
        %v1244 = vld [vmem:[%s1241 + $0x10] sm:$0xff]
        %v1245 = vld [vmem:[%s1241 + $0x18] sm:$0xff]
        %v1246 = vld [vmem:[%s1241 + $0x20] sm:$0xff]
        %v1247 = vld [vmem:[%s1241 + $0x28] sm:$0xff]
        %v1248 = vld [vmem:[%s1241 + $0x30] sm:$0xff]
        %v1249 = vld [vmem:[%s1241 + $0x38] sm:$0xff]
        %v1250 = vld [vmem:[%s1241 + $0x40] sm:$0xff]
        %v1251 = vld [vmem:[%s1241 + $0x48] sm:$0xff]
        %v1252 = vld [vmem:[%s1241 + $0x50] sm:$0xff]
        %v1253 = vld [vmem:[%s1241 + $0x58] sm:$0xff]
        %v1254 = vld [vmem:[%s1241 + $0x60] sm:$0xff]
        %v1255 = vld [vmem:[%s1241 + $0x68] sm:$0xff]
        %v1256 = vld [vmem:[%s1241 + $0x70] sm:$0xff]
        %v1257 = vld [vmem:[%s1241 + $0x78] sm:$0xff]
        %v1258 = vld [vmem:[%s1241 + $0x80] sm:$0xff]
        %v1259 = vld [vmem:[%s1241 + $0x88] sm:$0xff]
        %v1260 = vld [vmem:[%s1241 + $0x90] sm:$0xff]
        %v1261 = vld [vmem:[%s1241 + $0x98] sm:$0xff]
        %v1262 = vld [vmem:[%s1241 + $0xa0] sm:$0xff]
        %v1263 = vld [vmem:[%s1241 + $0xa8] sm:$0xff]
        %v1264 = vld [vmem:[%s1241 + $0xb0] sm:$0xff]
        %v1265 = vld [vmem:[%s1241 + $0xb8] sm:$0xff]
        %v1266 = vld [vmem:[%s1241 + $0xc0] sm:$0xff]
        %v1267 = vld [vmem:[%s1241 + $0xc8] sm:$0xff]
        %v1268 = vld [vmem:[%s1241 + $0xd0] sm:$0xff]
        %v1269 = vld [vmem:[%s1241 + $0xd8] sm:$0xff]
        %v1270 = vld [vmem:[%s1241 + $0xe0] sm:$0xff]
        %v1271 = vld [vmem:[%s1241 + $0xe8] sm:$0xff]
        %v1272 = vld [vmem:[%s1241 + $0xf0] sm:$0xff]
        %v1273 = vld [vmem:[%s1241 + $0xf8] sm:$0xff]
        %v1274 = vld [vmem:[%s1241 + $0x100] sm:$0xff]
        %v1275 = vld [vmem:[%s1241 + $0x108] sm:$0xff]
        %v1276 = vld [vmem:[%s1241 + $0x110] sm:$0xff]
        %v1277 = vld [vmem:[%s1241 + $0x118] sm:$0xff]
        %v1278 = vld [vmem:[%s1241 + $0x120] sm:$0xff]
        %v1279 = vld [vmem:[%s1241 + $0x128] sm:$0xff]
        %v1280 = vld [vmem:[%s1241 + $0x130] sm:$0xff]
        %v1281 = vld [vmem:[%s1241 + $0x138] sm:$0xff]
        %v1282 = vld [vmem:[%s1241 + $0x140] sm:$0xff]
        %v1283 = vld [vmem:[%s1241 + $0x148] sm:$0xff]
        %v1284 = vld [vmem:[%s1241 + $0x150] sm:$0xff]
        %v1285 = vld [vmem:[%s1241 + $0x158] sm:$0xff]
        %v1286 = vld [vmem:[%s1241 + $0x160] sm:$0xff]
        %v1287 = vld [vmem:[%s1241 + $0x168] sm:$0xff]
        %v1288 = vld [vmem:[%s1241 + $0x170] sm:$0xff]
        %v1289 = vld [vmem:[%s1241 + $0x178] sm:$0xff]
        %v1290 = vld [vmem:[%s1241 + $0x180] sm:$0xff]
        %v1291 = vld [vmem:[%s1241 + $0x188] sm:$0xff]
        %v1292 = vld [vmem:[%s1241 + $0x190] sm:$0xff]
        %v1293 = vld [vmem:[%s1241 + $0x198] sm:$0xff]
        %v1294 = vld [vmem:[%s1241 + $0x1a0] sm:$0xff]
        %v1295 = vld [vmem:[%s1241 + $0x1a8] sm:$0xff]
        %v1296 = vld [vmem:[%s1241 + $0x1b0] sm:$0xff]
        %v1297 = vld [vmem:[%s1241 + $0x1b8] sm:$0xff]
        %v1298 = vld [vmem:[%s1241 + $0x1c0] sm:$0xff]
        %v1299 = vld [vmem:[%s1241 + $0x1c8] sm:$0xff]
        %v1300 = vld [vmem:[%s1241 + $0x1d0] sm:$0xff]
        %v1301 = vld [vmem:[%s1241 + $0x1d8] sm:$0xff]
        %v1302 = vld [vmem:[%s1241 + $0x1e0] sm:$0xff]
        %v1303 = vld [vmem:[%s1241 + $0x1e8] sm:$0xff]
        %v1304 = vld [vmem:[%s1241 + $0x1f0] sm:$0xff]
        %v1305 = vld [vmem:[%s1241 + $0x1f8] sm:$0xff]
        %vm1310 = vcmask 1041408
        %v1311 = vrot.slane %v1237, 6
        %v1312 = vrot.slane %v1239, 6
        %v1313 = vsel %vm1310, %v1311, %v1312
        %v1314 = vrot.slane %v1238, 6
        %v1315 = vrot.slane %v1240, 6
        %v1316 = vsel %vm1310, %v1314, %v1315
        %1319 = vmatpush.msra.mxu0 %v1272
        %1320 = vmatpush.msra.mxu0 %v1270
        %1321 = vmatpush.msra.mxu0 %v1268
        %1322 = vmatpush.msra.mxu0 %v1266
        %1323 = vmatpush.msra.mxu0 %v1264
        %1324 = vmatpush.msra.mxu0 %v1262
        %1325 = vmatpush.msra.mxu0 %v1260
        %1326 = vmatpush.msra.mxu0 %v1258
        %1327 = vmatpush.msra.mxu0 %v1256
        %1328 = vmatpush.msra.mxu0 %v1254
        %1329 = vmatpush.msra.mxu0 %v1252
        %1330 = vmatpush.msra.mxu0 %v1250
        %1331 = vmatpush.msra.mxu0 %v1248
        %1332 = vmatpush.msra.mxu0 %v1246
        %1333 = vmatpush.msra.mxu0 %v1244
        %1334 = vmatpush.msra.mxu0 %v1242
        %1335 = vmatmul.f32.gmra.mxu0 %v1313
        %v1336 = vpop.f32.mrf.mxu0
        %v1337 = vadd.f32 0.0, %v1336
        %1338 = vdwg.mxu0
        %1339 = vmatpush.msra.mxu0 %v1304
        %1340 = vmatpush.msra.mxu0 %v1302
        %1341 = vmatpush.msra.mxu0 %v1300
        %1342 = vmatpush.msra.mxu0 %v1298
        %1343 = vmatpush.msra.mxu0 %v1296
        %1344 = vmatpush.msra.mxu0 %v1294
        %1345 = vmatpush.msra.mxu0 %v1292
        %1346 = vmatpush.msra.mxu0 %v1290
        %1347 = vmatpush.msra.mxu0 %v1288
        %1348 = vmatpush.msra.mxu0 %v1286
        %1349 = vmatpush.msra.mxu0 %v1284
        %1350 = vmatpush.msra.mxu0 %v1282
        %1351 = vmatpush.msra.mxu0 %v1280
        %1352 = vmatpush.msra.mxu0 %v1278
        %1353 = vmatpush.msra.mxu0 %v1276
        %1354 = vmatpush.msra.mxu0 %v1274
        %1355 = vmatmul.f32.gmra.mxu0 %v1316
        %v1356 = vpop.f32.mrf.mxu0
        %v1357 = vadd.f32 %v1337, %v1356
        %1358 = vdwg.mxu0
        %1359 = vmatpush.msra.mxu0 %v1273
        %1360 = vmatpush.msra.mxu0 %v1271
        %1361 = vmatpush.msra.mxu0 %v1269
        %1362 = vmatpush.msra.mxu0 %v1267
        %1363 = vmatpush.msra.mxu0 %v1265
        %1364 = vmatpush.msra.mxu0 %v1263
        %1365 = vmatpush.msra.mxu0 %v1261
        %1366 = vmatpush.msra.mxu0 %v1259
        %1367 = vmatpush.msra.mxu0 %v1257
        %1368 = vmatpush.msra.mxu0 %v1255
        %1369 = vmatpush.msra.mxu0 %v1253
        %1370 = vmatpush.msra.mxu0 %v1251
        %1371 = vmatpush.msra.mxu0 %v1249
        %1372 = vmatpush.msra.mxu0 %v1247
        %1373 = vmatpush.msra.mxu0 %v1245
        %1374 = vmatpush.msra.mxu0 %v1243
        %1375 = vmatmul.f32.gmra.mxu0 %v1313
        %v1376 = vpop.f32.mrf.mxu0
        %v1377 = vadd.f32 0.0, %v1376
        %1378 = vdwg.mxu0
        %1379 = vmatpush.msra.mxu0 %v1305
        %1380 = vmatpush.msra.mxu0 %v1303
        %1381 = vmatpush.msra.mxu0 %v1301
        %1382 = vmatpush.msra.mxu0 %v1299
        %1383 = vmatpush.msra.mxu0 %v1297
        %1384 = vmatpush.msra.mxu0 %v1295
        %1385 = vmatpush.msra.mxu0 %v1293
        %1386 = vmatpush.msra.mxu0 %v1291
        %1387 = vmatpush.msra.mxu0 %v1289
        %1388 = vmatpush.msra.mxu0 %v1287
        %1389 = vmatpush.msra.mxu0 %v1285
        %1390 = vmatpush.msra.mxu0 %v1283
        %1391 = vmatpush.msra.mxu0 %v1281
        %1392 = vmatpush.msra.mxu0 %v1279
        %1393 = vmatpush.msra.mxu0 %v1277
        %1394 = vmatpush.msra.mxu0 %v1275
        %1395 = vmatmul.f32.gmra.mxu0 %v1316
        %v1396 = vpop.f32.mrf.mxu0
        %v1397 = vadd.f32 %v1377, %v1396
        %1398 = vdwg.mxu0
        %v1399 = vadd.f32 %v1235, %v1357
        %v1400 = vadd.f32 %v1236, %v1397
        %v1401 = vld [vmem:[%s262] sm:$0xff]
        %v1402 = vld [vmem:[%s262 + $0x8] sm:$0xff]
        %s1403 = scalar_lea.vmem [#allocation7], 3584
        %v1404 = vld [vmem:[%s1403] sm:$0xff]
        %v1405 = vld [vmem:[%s1403 + $0x8] sm:$0xff]
        %v1406 = vld [vmem:[%s1403 + $0x10] sm:$0xff]
        %v1407 = vld [vmem:[%s1403 + $0x18] sm:$0xff]
        %v1408 = vld [vmem:[%s1403 + $0x20] sm:$0xff]
        %v1409 = vld [vmem:[%s1403 + $0x28] sm:$0xff]
        %v1410 = vld [vmem:[%s1403 + $0x30] sm:$0xff]
        %v1411 = vld [vmem:[%s1403 + $0x38] sm:$0xff]
        %v1412 = vld [vmem:[%s1403 + $0x40] sm:$0xff]
        %v1413 = vld [vmem:[%s1403 + $0x48] sm:$0xff]
        %v1414 = vld [vmem:[%s1403 + $0x50] sm:$0xff]
        %v1415 = vld [vmem:[%s1403 + $0x58] sm:$0xff]
        %v1416 = vld [vmem:[%s1403 + $0x60] sm:$0xff]
        %v1417 = vld [vmem:[%s1403 + $0x68] sm:$0xff]
        %v1418 = vld [vmem:[%s1403 + $0x70] sm:$0xff]
        %v1419 = vld [vmem:[%s1403 + $0x78] sm:$0xff]
        %v1420 = vld [vmem:[%s1403 + $0x80] sm:$0xff]
        %v1421 = vld [vmem:[%s1403 + $0x88] sm:$0xff]
        %v1422 = vld [vmem:[%s1403 + $0x90] sm:$0xff]
        %v1423 = vld [vmem:[%s1403 + $0x98] sm:$0xff]
        %v1424 = vld [vmem:[%s1403 + $0xa0] sm:$0xff]
        %v1425 = vld [vmem:[%s1403 + $0xa8] sm:$0xff]
        %v1426 = vld [vmem:[%s1403 + $0xb0] sm:$0xff]
        %v1427 = vld [vmem:[%s1403 + $0xb8] sm:$0xff]
        %v1428 = vld [vmem:[%s1403 + $0xc0] sm:$0xff]
        %v1429 = vld [vmem:[%s1403 + $0xc8] sm:$0xff]
        %v1430 = vld [vmem:[%s1403 + $0xd0] sm:$0xff]
        %v1431 = vld [vmem:[%s1403 + $0xd8] sm:$0xff]
        %v1432 = vld [vmem:[%s1403 + $0xe0] sm:$0xff]
        %v1433 = vld [vmem:[%s1403 + $0xe8] sm:$0xff]
        %v1434 = vld [vmem:[%s1403 + $0xf0] sm:$0xff]
        %v1435 = vld [vmem:[%s1403 + $0xf8] sm:$0xff]
        %v1436 = vld [vmem:[%s1403 + $0x100] sm:$0xff]
        %v1437 = vld [vmem:[%s1403 + $0x108] sm:$0xff]
        %v1438 = vld [vmem:[%s1403 + $0x110] sm:$0xff]
        %v1439 = vld [vmem:[%s1403 + $0x118] sm:$0xff]
        %v1440 = vld [vmem:[%s1403 + $0x120] sm:$0xff]
        %v1441 = vld [vmem:[%s1403 + $0x128] sm:$0xff]
        %v1442 = vld [vmem:[%s1403 + $0x130] sm:$0xff]
        %v1443 = vld [vmem:[%s1403 + $0x138] sm:$0xff]
        %v1444 = vld [vmem:[%s1403 + $0x140] sm:$0xff]
        %v1445 = vld [vmem:[%s1403 + $0x148] sm:$0xff]
        %v1446 = vld [vmem:[%s1403 + $0x150] sm:$0xff]
        %v1447 = vld [vmem:[%s1403 + $0x158] sm:$0xff]
        %v1448 = vld [vmem:[%s1403 + $0x160] sm:$0xff]
        %v1449 = vld [vmem:[%s1403 + $0x168] sm:$0xff]
        %v1450 = vld [vmem:[%s1403 + $0x170] sm:$0xff]
        %v1451 = vld [vmem:[%s1403 + $0x178] sm:$0xff]
        %v1452 = vld [vmem:[%s1403 + $0x180] sm:$0xff]
        %v1453 = vld [vmem:[%s1403 + $0x188] sm:$0xff]
        %v1454 = vld [vmem:[%s1403 + $0x190] sm:$0xff]
        %v1455 = vld [vmem:[%s1403 + $0x198] sm:$0xff]
        %v1456 = vld [vmem:[%s1403 + $0x1a0] sm:$0xff]
        %v1457 = vld [vmem:[%s1403 + $0x1a8] sm:$0xff]
        %v1458 = vld [vmem:[%s1403 + $0x1b0] sm:$0xff]
        %v1459 = vld [vmem:[%s1403 + $0x1b8] sm:$0xff]
        %v1460 = vld [vmem:[%s1403 + $0x1c0] sm:$0xff]
        %v1461 = vld [vmem:[%s1403 + $0x1c8] sm:$0xff]
        %v1462 = vld [vmem:[%s1403 + $0x1d0] sm:$0xff]
        %v1463 = vld [vmem:[%s1403 + $0x1d8] sm:$0xff]
        %v1464 = vld [vmem:[%s1403 + $0x1e0] sm:$0xff]
        %v1465 = vld [vmem:[%s1403 + $0x1e8] sm:$0xff]
        %v1466 = vld [vmem:[%s1403 + $0x1f0] sm:$0xff]
        %v1467 = vld [vmem:[%s1403 + $0x1f8] sm:$0xff]
        %1468 = vmatpush.msra.mxu0 %v1434
        %1469 = vmatpush.msra.mxu0 %v1432
        %1470 = vmatpush.msra.mxu0 %v1430
        %1471 = vmatpush.msra.mxu0 %v1428
        %1472 = vmatpush.msra.mxu0 %v1426
        %1473 = vmatpush.msra.mxu0 %v1424
        %1474 = vmatpush.msra.mxu0 %v1422
        %1475 = vmatpush.msra.mxu0 %v1420
        %1476 = vmatpush.msra.mxu0 %v1418
        %1477 = vmatpush.msra.mxu0 %v1416
        %1478 = vmatpush.msra.mxu0 %v1414
        %1479 = vmatpush.msra.mxu0 %v1412
        %1480 = vmatpush.msra.mxu0 %v1410
        %1481 = vmatpush.msra.mxu0 %v1408
        %1482 = vmatpush.msra.mxu0 %v1406
        %1483 = vmatpush.msra.mxu0 %v1404
        %1484 = vmatmul.f32.gmra.mxu0 %v1401
        %v1485 = vpop.f32.mrf.mxu0
        %v1486 = vadd.f32 0.0, %v1485
        %1487 = vdwg.mxu0
        %1488 = vmatpush.msra.mxu0 %v1466
        %1489 = vmatpush.msra.mxu0 %v1464
        %1490 = vmatpush.msra.mxu0 %v1462
        %1491 = vmatpush.msra.mxu0 %v1460
        %1492 = vmatpush.msra.mxu0 %v1458
        %1493 = vmatpush.msra.mxu0 %v1456
        %1494 = vmatpush.msra.mxu0 %v1454
        %1495 = vmatpush.msra.mxu0 %v1452
        %1496 = vmatpush.msra.mxu0 %v1450
        %1497 = vmatpush.msra.mxu0 %v1448
        %1498 = vmatpush.msra.mxu0 %v1446
        %1499 = vmatpush.msra.mxu0 %v1444
        %1500 = vmatpush.msra.mxu0 %v1442
        %1501 = vmatpush.msra.mxu0 %v1440
        %1502 = vmatpush.msra.mxu0 %v1438
        %1503 = vmatpush.msra.mxu0 %v1436
        %1504 = vmatmul.f32.gmra.mxu0 %v1402
        %v1505 = vpop.f32.mrf.mxu0
        %v1506 = vadd.f32 %v1486, %v1505
        %1507 = vdwg.mxu0
        %1508 = vmatpush.msra.mxu0 %v1435
        %1509 = vmatpush.msra.mxu0 %v1433
        %1510 = vmatpush.msra.mxu0 %v1431
        %1511 = vmatpush.msra.mxu0 %v1429
        %1512 = vmatpush.msra.mxu0 %v1427
        %1513 = vmatpush.msra.mxu0 %v1425
        %1514 = vmatpush.msra.mxu0 %v1423
        %1515 = vmatpush.msra.mxu0 %v1421
        %1516 = vmatpush.msra.mxu0 %v1419
        %1517 = vmatpush.msra.mxu0 %v1417
        %1518 = vmatpush.msra.mxu0 %v1415
        %1519 = vmatpush.msra.mxu0 %v1413
        %1520 = vmatpush.msra.mxu0 %v1411
        %1521 = vmatpush.msra.mxu0 %v1409
        %1522 = vmatpush.msra.mxu0 %v1407
        %1523 = vmatpush.msra.mxu0 %v1405
        %1524 = vmatmul.f32.gmra.mxu0 %v1401
        %v1525 = vpop.f32.mrf.mxu0
        %v1526 = vadd.f32 0.0, %v1525
        %1527 = vdwg.mxu0
        %1528 = vmatpush.msra.mxu0 %v1467
        %1529 = vmatpush.msra.mxu0 %v1465
        %1530 = vmatpush.msra.mxu0 %v1463
        %1531 = vmatpush.msra.mxu0 %v1461
        %1532 = vmatpush.msra.mxu0 %v1459
        %1533 = vmatpush.msra.mxu0 %v1457
        %1534 = vmatpush.msra.mxu0 %v1455
        %1535 = vmatpush.msra.mxu0 %v1453
        %1536 = vmatpush.msra.mxu0 %v1451
        %1537 = vmatpush.msra.mxu0 %v1449
        %1538 = vmatpush.msra.mxu0 %v1447
        %1539 = vmatpush.msra.mxu0 %v1445
        %1540 = vmatpush.msra.mxu0 %v1443
        %1541 = vmatpush.msra.mxu0 %v1441
        %1542 = vmatpush.msra.mxu0 %v1439
        %1543 = vmatpush.msra.mxu0 %v1437
        %1544 = vmatmul.f32.gmra.mxu0 %v1402
        %v1545 = vpop.f32.mrf.mxu0
        %v1546 = vadd.f32 %v1526, %v1545
        %1547 = vdwg.mxu0
        %v1548 = vadd.f32 %v1399, %v1506
        %v1549 = vadd.f32 %v1400, %v1546
        %v1550 = vld [vmem:[%s262] sm:$0xfe]
        %v1551 = vld [vmem:[%s262 + $0x8] sm:$0xfe]
        %v1552 = vld [vmem:[%s262 + $0x10] sm:$0x1]
        %v1553 = vld [vmem:[%s262 + $0x18] sm:$0x1]
        %s1554 = scalar_lea.vmem [#allocation7], 4096
        %v1555 = vld [vmem:[%s1554] sm:$0xff]
        %v1556 = vld [vmem:[%s1554 + $0x8] sm:$0xff]
        %v1557 = vld [vmem:[%s1554 + $0x10] sm:$0xff]
        %v1558 = vld [vmem:[%s1554 + $0x18] sm:$0xff]
        %v1559 = vld [vmem:[%s1554 + $0x20] sm:$0xff]
        %v1560 = vld [vmem:[%s1554 + $0x28] sm:$0xff]
        %v1561 = vld [vmem:[%s1554 + $0x30] sm:$0xff]
        %v1562 = vld [vmem:[%s1554 + $0x38] sm:$0xff]
        %v1563 = vld [vmem:[%s1554 + $0x40] sm:$0xff]
        %v1564 = vld [vmem:[%s1554 + $0x48] sm:$0xff]
        %v1565 = vld [vmem:[%s1554 + $0x50] sm:$0xff]
        %v1566 = vld [vmem:[%s1554 + $0x58] sm:$0xff]
        %v1567 = vld [vmem:[%s1554 + $0x60] sm:$0xff]
        %v1568 = vld [vmem:[%s1554 + $0x68] sm:$0xff]
        %v1569 = vld [vmem:[%s1554 + $0x70] sm:$0xff]
        %v1570 = vld [vmem:[%s1554 + $0x78] sm:$0xff]
        %v1571 = vld [vmem:[%s1554 + $0x80] sm:$0xff]
        %v1572 = vld [vmem:[%s1554 + $0x88] sm:$0xff]
        %v1573 = vld [vmem:[%s1554 + $0x90] sm:$0xff]
        %v1574 = vld [vmem:[%s1554 + $0x98] sm:$0xff]
        %v1575 = vld [vmem:[%s1554 + $0xa0] sm:$0xff]
        %v1576 = vld [vmem:[%s1554 + $0xa8] sm:$0xff]
        %v1577 = vld [vmem:[%s1554 + $0xb0] sm:$0xff]
        %v1578 = vld [vmem:[%s1554 + $0xb8] sm:$0xff]
        %v1579 = vld [vmem:[%s1554 + $0xc0] sm:$0xff]
        %v1580 = vld [vmem:[%s1554 + $0xc8] sm:$0xff]
        %v1581 = vld [vmem:[%s1554 + $0xd0] sm:$0xff]
        %v1582 = vld [vmem:[%s1554 + $0xd8] sm:$0xff]
        %v1583 = vld [vmem:[%s1554 + $0xe0] sm:$0xff]
        %v1584 = vld [vmem:[%s1554 + $0xe8] sm:$0xff]
        %v1585 = vld [vmem:[%s1554 + $0xf0] sm:$0xff]
        %v1586 = vld [vmem:[%s1554 + $0xf8] sm:$0xff]
        %v1587 = vld [vmem:[%s1554 + $0x100] sm:$0xff]
        %v1588 = vld [vmem:[%s1554 + $0x108] sm:$0xff]
        %v1589 = vld [vmem:[%s1554 + $0x110] sm:$0xff]
        %v1590 = vld [vmem:[%s1554 + $0x118] sm:$0xff]
        %v1591 = vld [vmem:[%s1554 + $0x120] sm:$0xff]
        %v1592 = vld [vmem:[%s1554 + $0x128] sm:$0xff]
        %v1593 = vld [vmem:[%s1554 + $0x130] sm:$0xff]
        %v1594 = vld [vmem:[%s1554 + $0x138] sm:$0xff]
        %v1595 = vld [vmem:[%s1554 + $0x140] sm:$0xff]
        %v1596 = vld [vmem:[%s1554 + $0x148] sm:$0xff]
        %v1597 = vld [vmem:[%s1554 + $0x150] sm:$0xff]
        %v1598 = vld [vmem:[%s1554 + $0x158] sm:$0xff]
        %v1599 = vld [vmem:[%s1554 + $0x160] sm:$0xff]
        %v1600 = vld [vmem:[%s1554 + $0x168] sm:$0xff]
        %v1601 = vld [vmem:[%s1554 + $0x170] sm:$0xff]
        %v1602 = vld [vmem:[%s1554 + $0x178] sm:$0xff]
        %v1603 = vld [vmem:[%s1554 + $0x180] sm:$0xff]
        %v1604 = vld [vmem:[%s1554 + $0x188] sm:$0xff]
        %v1605 = vld [vmem:[%s1554 + $0x190] sm:$0xff]
        %v1606 = vld [vmem:[%s1554 + $0x198] sm:$0xff]
        %v1607 = vld [vmem:[%s1554 + $0x1a0] sm:$0xff]
        %v1608 = vld [vmem:[%s1554 + $0x1a8] sm:$0xff]
        %v1609 = vld [vmem:[%s1554 + $0x1b0] sm:$0xff]
        %v1610 = vld [vmem:[%s1554 + $0x1b8] sm:$0xff]
        %v1611 = vld [vmem:[%s1554 + $0x1c0] sm:$0xff]
        %v1612 = vld [vmem:[%s1554 + $0x1c8] sm:$0xff]
        %v1613 = vld [vmem:[%s1554 + $0x1d0] sm:$0xff]
        %v1614 = vld [vmem:[%s1554 + $0x1d8] sm:$0xff]
        %v1615 = vld [vmem:[%s1554 + $0x1e0] sm:$0xff]
        %v1616 = vld [vmem:[%s1554 + $0x1e8] sm:$0xff]
        %v1617 = vld [vmem:[%s1554 + $0x1f0] sm:$0xff]
        %v1618 = vld [vmem:[%s1554 + $0x1f8] sm:$0xff]
        %v1623 = vrot.slane %v1550, 1
        %v1624 = vrot.slane %v1552, 1
        %v1625 = vsel %vm490, %v1623, %v1624
        %v1626 = vrot.slane %v1551, 1
        %v1627 = vrot.slane %v1553, 1
        %v1628 = vsel %vm490, %v1626, %v1627
        %1631 = vmatpush.msra.mxu0 %v1585
        %1632 = vmatpush.msra.mxu0 %v1583
        %1633 = vmatpush.msra.mxu0 %v1581
        %1634 = vmatpush.msra.mxu0 %v1579
        %1635 = vmatpush.msra.mxu0 %v1577
        %1636 = vmatpush.msra.mxu0 %v1575
        %1637 = vmatpush.msra.mxu0 %v1573
        %1638 = vmatpush.msra.mxu0 %v1571
        %1639 = vmatpush.msra.mxu0 %v1569
        %1640 = vmatpush.msra.mxu0 %v1567
        %1641 = vmatpush.msra.mxu0 %v1565
        %1642 = vmatpush.msra.mxu0 %v1563
        %1643 = vmatpush.msra.mxu0 %v1561
        %1644 = vmatpush.msra.mxu0 %v1559
        %1645 = vmatpush.msra.mxu0 %v1557
        %1646 = vmatpush.msra.mxu0 %v1555
        %1647 = vmatmul.f32.gmra.mxu0 %v1625
        %v1648 = vpop.f32.mrf.mxu0
        %v1649 = vadd.f32 0.0, %v1648
        %1650 = vdwg.mxu0
        %1651 = vmatpush.msra.mxu0 %v1617
        %1652 = vmatpush.msra.mxu0 %v1615
        %1653 = vmatpush.msra.mxu0 %v1613
        %1654 = vmatpush.msra.mxu0 %v1611
        %1655 = vmatpush.msra.mxu0 %v1609
        %1656 = vmatpush.msra.mxu0 %v1607
        %1657 = vmatpush.msra.mxu0 %v1605
        %1658 = vmatpush.msra.mxu0 %v1603
        %1659 = vmatpush.msra.mxu0 %v1601
        %1660 = vmatpush.msra.mxu0 %v1599
        %1661 = vmatpush.msra.mxu0 %v1597
        %1662 = vmatpush.msra.mxu0 %v1595
        %1663 = vmatpush.msra.mxu0 %v1593
        %1664 = vmatpush.msra.mxu0 %v1591
        %1665 = vmatpush.msra.mxu0 %v1589
        %1666 = vmatpush.msra.mxu0 %v1587
        %1667 = vmatmul.f32.gmra.mxu0 %v1628
        %v1668 = vpop.f32.mrf.mxu0
        %v1669 = vadd.f32 %v1649, %v1668
        %1670 = vdwg.mxu0
        %1671 = vmatpush.msra.mxu0 %v1586
        %1672 = vmatpush.msra.mxu0 %v1584
        %1673 = vmatpush.msra.mxu0 %v1582
        %1674 = vmatpush.msra.mxu0 %v1580
        %1675 = vmatpush.msra.mxu0 %v1578
        %1676 = vmatpush.msra.mxu0 %v1576
        %1677 = vmatpush.msra.mxu0 %v1574
        %1678 = vmatpush.msra.mxu0 %v1572
        %1679 = vmatpush.msra.mxu0 %v1570
        %1680 = vmatpush.msra.mxu0 %v1568
        %1681 = vmatpush.msra.mxu0 %v1566
        %1682 = vmatpush.msra.mxu0 %v1564
        %1683 = vmatpush.msra.mxu0 %v1562
        %1684 = vmatpush.msra.mxu0 %v1560
        %1685 = vmatpush.msra.mxu0 %v1558
        %1686 = vmatpush.msra.mxu0 %v1556
        %1687 = vmatmul.f32.gmra.mxu0 %v1625
        %v1688 = vpop.f32.mrf.mxu0
        %v1689 = vadd.f32 0.0, %v1688
        %1690 = vdwg.mxu0
        %1691 = vmatpush.msra.mxu0 %v1618
        %1692 = vmatpush.msra.mxu0 %v1616
        %1693 = vmatpush.msra.mxu0 %v1614
        %1694 = vmatpush.msra.mxu0 %v1612
        %1695 = vmatpush.msra.mxu0 %v1610
        %1696 = vmatpush.msra.mxu0 %v1608
        %1697 = vmatpush.msra.mxu0 %v1606
        %1698 = vmatpush.msra.mxu0 %v1604
        %1699 = vmatpush.msra.mxu0 %v1602
        %1700 = vmatpush.msra.mxu0 %v1600
        %1701 = vmatpush.msra.mxu0 %v1598
        %1702 = vmatpush.msra.mxu0 %v1596
        %1703 = vmatpush.msra.mxu0 %v1594
        %1704 = vmatpush.msra.mxu0 %v1592
        %1705 = vmatpush.msra.mxu0 %v1590
        %1706 = vmatpush.msra.mxu0 %v1588
        %1707 = vmatmul.f32.gmra.mxu0 %v1628
        %v1708 = vpop.f32.mrf.mxu0
        %v1709 = vadd.f32 %v1689, %v1708
        %1710 = vdwg.mxu0
        %v1711 = vadd.f32 %v1548, %v1669
        %v1712 = vadd.f32 %v1549, %v1709
        %v1713 = vld [vmem:[%s262] sm:$0xfc]
        %v1714 = vld [vmem:[%s262 + $0x8] sm:$0xfc]
        %v1715 = vld [vmem:[%s262 + $0x10] sm:$0x3]
        %v1716 = vld [vmem:[%s262 + $0x18] sm:$0x3]
        %s1717 = scalar_lea.vmem [#allocation7], 4608
        %v1718 = vld [vmem:[%s1717] sm:$0xff]
        %v1719 = vld [vmem:[%s1717 + $0x8] sm:$0xff]
        %v1720 = vld [vmem:[%s1717 + $0x10] sm:$0xff]
        %v1721 = vld [vmem:[%s1717 + $0x18] sm:$0xff]
        %v1722 = vld [vmem:[%s1717 + $0x20] sm:$0xff]
        %v1723 = vld [vmem:[%s1717 + $0x28] sm:$0xff]
        %v1724 = vld [vmem:[%s1717 + $0x30] sm:$0xff]
        %v1725 = vld [vmem:[%s1717 + $0x38] sm:$0xff]
        %v1726 = vld [vmem:[%s1717 + $0x40] sm:$0xff]
        %v1727 = vld [vmem:[%s1717 + $0x48] sm:$0xff]
        %v1728 = vld [vmem:[%s1717 + $0x50] sm:$0xff]
        %v1729 = vld [vmem:[%s1717 + $0x58] sm:$0xff]
        %v1730 = vld [vmem:[%s1717 + $0x60] sm:$0xff]
        %v1731 = vld [vmem:[%s1717 + $0x68] sm:$0xff]
        %v1732 = vld [vmem:[%s1717 + $0x70] sm:$0xff]
        %v1733 = vld [vmem:[%s1717 + $0x78] sm:$0xff]
        %v1734 = vld [vmem:[%s1717 + $0x80] sm:$0xff]
        %v1735 = vld [vmem:[%s1717 + $0x88] sm:$0xff]
        %v1736 = vld [vmem:[%s1717 + $0x90] sm:$0xff]
        %v1737 = vld [vmem:[%s1717 + $0x98] sm:$0xff]
        %v1738 = vld [vmem:[%s1717 + $0xa0] sm:$0xff]
        %v1739 = vld [vmem:[%s1717 + $0xa8] sm:$0xff]
        %v1740 = vld [vmem:[%s1717 + $0xb0] sm:$0xff]
        %v1741 = vld [vmem:[%s1717 + $0xb8] sm:$0xff]
        %v1742 = vld [vmem:[%s1717 + $0xc0] sm:$0xff]
        %v1743 = vld [vmem:[%s1717 + $0xc8] sm:$0xff]
        %v1744 = vld [vmem:[%s1717 + $0xd0] sm:$0xff]
        %v1745 = vld [vmem:[%s1717 + $0xd8] sm:$0xff]
        %v1746 = vld [vmem:[%s1717 + $0xe0] sm:$0xff]
        %v1747 = vld [vmem:[%s1717 + $0xe8] sm:$0xff]
        %v1748 = vld [vmem:[%s1717 + $0xf0] sm:$0xff]
        %v1749 = vld [vmem:[%s1717 + $0xf8] sm:$0xff]
        %v1750 = vld [vmem:[%s1717 + $0x100] sm:$0xff]
        %v1751 = vld [vmem:[%s1717 + $0x108] sm:$0xff]
        %v1752 = vld [vmem:[%s1717 + $0x110] sm:$0xff]
        %v1753 = vld [vmem:[%s1717 + $0x118] sm:$0xff]
        %v1754 = vld [vmem:[%s1717 + $0x120] sm:$0xff]
        %v1755 = vld [vmem:[%s1717 + $0x128] sm:$0xff]
        %v1756 = vld [vmem:[%s1717 + $0x130] sm:$0xff]
        %v1757 = vld [vmem:[%s1717 + $0x138] sm:$0xff]
        %v1758 = vld [vmem:[%s1717 + $0x140] sm:$0xff]
        %v1759 = vld [vmem:[%s1717 + $0x148] sm:$0xff]
        %v1760 = vld [vmem:[%s1717 + $0x150] sm:$0xff]
        %v1761 = vld [vmem:[%s1717 + $0x158] sm:$0xff]
        %v1762 = vld [vmem:[%s1717 + $0x160] sm:$0xff]
        %v1763 = vld [vmem:[%s1717 + $0x168] sm:$0xff]
        %v1764 = vld [vmem:[%s1717 + $0x170] sm:$0xff]
        %v1765 = vld [vmem:[%s1717 + $0x178] sm:$0xff]
        %v1766 = vld [vmem:[%s1717 + $0x180] sm:$0xff]
        %v1767 = vld [vmem:[%s1717 + $0x188] sm:$0xff]
        %v1768 = vld [vmem:[%s1717 + $0x190] sm:$0xff]
        %v1769 = vld [vmem:[%s1717 + $0x198] sm:$0xff]
        %v1770 = vld [vmem:[%s1717 + $0x1a0] sm:$0xff]
        %v1771 = vld [vmem:[%s1717 + $0x1a8] sm:$0xff]
        %v1772 = vld [vmem:[%s1717 + $0x1b0] sm:$0xff]
        %v1773 = vld [vmem:[%s1717 + $0x1b8] sm:$0xff]
        %v1774 = vld [vmem:[%s1717 + $0x1c0] sm:$0xff]
        %v1775 = vld [vmem:[%s1717 + $0x1c8] sm:$0xff]
        %v1776 = vld [vmem:[%s1717 + $0x1d0] sm:$0xff]
        %v1777 = vld [vmem:[%s1717 + $0x1d8] sm:$0xff]
        %v1778 = vld [vmem:[%s1717 + $0x1e0] sm:$0xff]
        %v1779 = vld [vmem:[%s1717 + $0x1e8] sm:$0xff]
        %v1780 = vld [vmem:[%s1717 + $0x1f0] sm:$0xff]
        %v1781 = vld [vmem:[%s1717 + $0x1f8] sm:$0xff]
        %v1786 = vrot.slane %v1713, 2
        %v1787 = vrot.slane %v1715, 2
        %v1788 = vsel %vm654, %v1786, %v1787
        %v1789 = vrot.slane %v1714, 2
        %v1790 = vrot.slane %v1716, 2
        %v1791 = vsel %vm654, %v1789, %v1790
        %1794 = vmatpush.msra.mxu0 %v1748
        %1795 = vmatpush.msra.mxu0 %v1746
        %1796 = vmatpush.msra.mxu0 %v1744
        %1797 = vmatpush.msra.mxu0 %v1742
        %1798 = vmatpush.msra.mxu0 %v1740
        %1799 = vmatpush.msra.mxu0 %v1738
        %1800 = vmatpush.msra.mxu0 %v1736
        %1801 = vmatpush.msra.mxu0 %v1734
        %1802 = vmatpush.msra.mxu0 %v1732
        %1803 = vmatpush.msra.mxu0 %v1730
        %1804 = vmatpush.msra.mxu0 %v1728
        %1805 = vmatpush.msra.mxu0 %v1726
        %1806 = vmatpush.msra.mxu0 %v1724
        %1807 = vmatpush.msra.mxu0 %v1722
        %1808 = vmatpush.msra.mxu0 %v1720
        %1809 = vmatpush.msra.mxu0 %v1718
        %1810 = vmatmul.f32.gmra.mxu0 %v1788
        %v1811 = vpop.f32.mrf.mxu0
        %v1812 = vadd.f32 0.0, %v1811
        %1813 = vdwg.mxu0
        %1814 = vmatpush.msra.mxu0 %v1780
        %1815 = vmatpush.msra.mxu0 %v1778
        %1816 = vmatpush.msra.mxu0 %v1776
        %1817 = vmatpush.msra.mxu0 %v1774
        %1818 = vmatpush.msra.mxu0 %v1772
        %1819 = vmatpush.msra.mxu0 %v1770
        %1820 = vmatpush.msra.mxu0 %v1768
        %1821 = vmatpush.msra.mxu0 %v1766
        %1822 = vmatpush.msra.mxu0 %v1764
        %1823 = vmatpush.msra.mxu0 %v1762
        %1824 = vmatpush.msra.mxu0 %v1760
        %1825 = vmatpush.msra.mxu0 %v1758
        %1826 = vmatpush.msra.mxu0 %v1756
        %1827 = vmatpush.msra.mxu0 %v1754
        %1828 = vmatpush.msra.mxu0 %v1752
        %1829 = vmatpush.msra.mxu0 %v1750
        %1830 = vmatmul.f32.gmra.mxu0 %v1791
        %v1831 = vpop.f32.mrf.mxu0
        %v1832 = vadd.f32 %v1812, %v1831
        %1833 = vdwg.mxu0
        %1834 = vmatpush.msra.mxu0 %v1749
        %1835 = vmatpush.msra.mxu0 %v1747
        %1836 = vmatpush.msra.mxu0 %v1745
        %1837 = vmatpush.msra.mxu0 %v1743
        %1838 = vmatpush.msra.mxu0 %v1741
        %1839 = vmatpush.msra.mxu0 %v1739
        %1840 = vmatpush.msra.mxu0 %v1737
        %1841 = vmatpush.msra.mxu0 %v1735
        %1842 = vmatpush.msra.mxu0 %v1733
        %1843 = vmatpush.msra.mxu0 %v1731
        %1844 = vmatpush.msra.mxu0 %v1729
        %1845 = vmatpush.msra.mxu0 %v1727
        %1846 = vmatpush.msra.mxu0 %v1725
        %1847 = vmatpush.msra.mxu0 %v1723
        %1848 = vmatpush.msra.mxu0 %v1721
        %1849 = vmatpush.msra.mxu0 %v1719
        %1850 = vmatmul.f32.gmra.mxu0 %v1788
        %v1851 = vpop.f32.mrf.mxu0
        %v1852 = vadd.f32 0.0, %v1851
        %1853 = vdwg.mxu0
        %1854 = vmatpush.msra.mxu0 %v1781
        %1855 = vmatpush.msra.mxu0 %v1779
        %1856 = vmatpush.msra.mxu0 %v1777
        %1857 = vmatpush.msra.mxu0 %v1775
        %1858 = vmatpush.msra.mxu0 %v1773
        %1859 = vmatpush.msra.mxu0 %v1771
        %1860 = vmatpush.msra.mxu0 %v1769
        %1861 = vmatpush.msra.mxu0 %v1767
        %1862 = vmatpush.msra.mxu0 %v1765
        %1863 = vmatpush.msra.mxu0 %v1763
        %1864 = vmatpush.msra.mxu0 %v1761
        %1865 = vmatpush.msra.mxu0 %v1759
        %1866 = vmatpush.msra.mxu0 %v1757
        %1867 = vmatpush.msra.mxu0 %v1755
        %1868 = vmatpush.msra.mxu0 %v1753
        %1869 = vmatpush.msra.mxu0 %v1751
        %1870 = vmatmul.f32.gmra.mxu0 %v1791
        %v1871 = vpop.f32.mrf.mxu0
        %v1872 = vadd.f32 %v1852, %v1871
        %1873 = vdwg.mxu0
        %v1874 = vadd.f32 %v1711, %v1832
        %v1875 = vadd.f32 %v1712, %v1872
        %v1876 = vld [vmem:[%s262] sm:$0xf8]
        %v1877 = vld [vmem:[%s262 + $0x8] sm:$0xf8]
        %v1878 = vld [vmem:[%s262 + $0x10] sm:$0x7]
        %v1879 = vld [vmem:[%s262 + $0x18] sm:$0x7]
        %s1880 = scalar_lea.vmem [#allocation7], 5120
        %v1881 = vld [vmem:[%s1880] sm:$0xff]
        %v1882 = vld [vmem:[%s1880 + $0x8] sm:$0xff]
        %v1883 = vld [vmem:[%s1880 + $0x10] sm:$0xff]
        %v1884 = vld [vmem:[%s1880 + $0x18] sm:$0xff]
        %v1885 = vld [vmem:[%s1880 + $0x20] sm:$0xff]
        %v1886 = vld [vmem:[%s1880 + $0x28] sm:$0xff]
        %v1887 = vld [vmem:[%s1880 + $0x30] sm:$0xff]
        %v1888 = vld [vmem:[%s1880 + $0x38] sm:$0xff]
        %v1889 = vld [vmem:[%s1880 + $0x40] sm:$0xff]
        %v1890 = vld [vmem:[%s1880 + $0x48] sm:$0xff]
        %v1891 = vld [vmem:[%s1880 + $0x50] sm:$0xff]
        %v1892 = vld [vmem:[%s1880 + $0x58] sm:$0xff]
        %v1893 = vld [vmem:[%s1880 + $0x60] sm:$0xff]
        %v1894 = vld [vmem:[%s1880 + $0x68] sm:$0xff]
        %v1895 = vld [vmem:[%s1880 + $0x70] sm:$0xff]
        %v1896 = vld [vmem:[%s1880 + $0x78] sm:$0xff]
        %v1897 = vld [vmem:[%s1880 + $0x80] sm:$0xff]
        %v1898 = vld [vmem:[%s1880 + $0x88] sm:$0xff]
        %v1899 = vld [vmem:[%s1880 + $0x90] sm:$0xff]
        %v1900 = vld [vmem:[%s1880 + $0x98] sm:$0xff]
        %v1901 = vld [vmem:[%s1880 + $0xa0] sm:$0xff]
        %v1902 = vld [vmem:[%s1880 + $0xa8] sm:$0xff]
        %v1903 = vld [vmem:[%s1880 + $0xb0] sm:$0xff]
        %v1904 = vld [vmem:[%s1880 + $0xb8] sm:$0xff]
        %v1905 = vld [vmem:[%s1880 + $0xc0] sm:$0xff]
        %v1906 = vld [vmem:[%s1880 + $0xc8] sm:$0xff]
        %v1907 = vld [vmem:[%s1880 + $0xd0] sm:$0xff]
        %v1908 = vld [vmem:[%s1880 + $0xd8] sm:$0xff]
        %v1909 = vld [vmem:[%s1880 + $0xe0] sm:$0xff]
        %v1910 = vld [vmem:[%s1880 + $0xe8] sm:$0xff]
        %v1911 = vld [vmem:[%s1880 + $0xf0] sm:$0xff]
        %v1912 = vld [vmem:[%s1880 + $0xf8] sm:$0xff]
        %v1913 = vld [vmem:[%s1880 + $0x100] sm:$0xff]
        %v1914 = vld [vmem:[%s1880 + $0x108] sm:$0xff]
        %v1915 = vld [vmem:[%s1880 + $0x110] sm:$0xff]
        %v1916 = vld [vmem:[%s1880 + $0x118] sm:$0xff]
        %v1917 = vld [vmem:[%s1880 + $0x120] sm:$0xff]
        %v1918 = vld [vmem:[%s1880 + $0x128] sm:$0xff]
        %v1919 = vld [vmem:[%s1880 + $0x130] sm:$0xff]
        %v1920 = vld [vmem:[%s1880 + $0x138] sm:$0xff]
        %v1921 = vld [vmem:[%s1880 + $0x140] sm:$0xff]
        %v1922 = vld [vmem:[%s1880 + $0x148] sm:$0xff]
        %v1923 = vld [vmem:[%s1880 + $0x150] sm:$0xff]
        %v1924 = vld [vmem:[%s1880 + $0x158] sm:$0xff]
        %v1925 = vld [vmem:[%s1880 + $0x160] sm:$0xff]
        %v1926 = vld [vmem:[%s1880 + $0x168] sm:$0xff]
        %v1927 = vld [vmem:[%s1880 + $0x170] sm:$0xff]
        %v1928 = vld [vmem:[%s1880 + $0x178] sm:$0xff]
        %v1929 = vld [vmem:[%s1880 + $0x180] sm:$0xff]
        %v1930 = vld [vmem:[%s1880 + $0x188] sm:$0xff]
        %v1931 = vld [vmem:[%s1880 + $0x190] sm:$0xff]
        %v1932 = vld [vmem:[%s1880 + $0x198] sm:$0xff]
        %v1933 = vld [vmem:[%s1880 + $0x1a0] sm:$0xff]
        %v1934 = vld [vmem:[%s1880 + $0x1a8] sm:$0xff]
        %v1935 = vld [vmem:[%s1880 + $0x1b0] sm:$0xff]
        %v1936 = vld [vmem:[%s1880 + $0x1b8] sm:$0xff]
        %v1937 = vld [vmem:[%s1880 + $0x1c0] sm:$0xff]
        %v1938 = vld [vmem:[%s1880 + $0x1c8] sm:$0xff]
        %v1939 = vld [vmem:[%s1880 + $0x1d0] sm:$0xff]
        %v1940 = vld [vmem:[%s1880 + $0x1d8] sm:$0xff]
        %v1941 = vld [vmem:[%s1880 + $0x1e0] sm:$0xff]
        %v1942 = vld [vmem:[%s1880 + $0x1e8] sm:$0xff]
        %v1943 = vld [vmem:[%s1880 + $0x1f0] sm:$0xff]
        %v1944 = vld [vmem:[%s1880 + $0x1f8] sm:$0xff]
        %v1949 = vrot.slane %v1876, 3
        %v1950 = vrot.slane %v1878, 3
        %v1951 = vsel %vm818, %v1949, %v1950
        %v1952 = vrot.slane %v1877, 3
        %v1953 = vrot.slane %v1879, 3
        %v1954 = vsel %vm818, %v1952, %v1953
        %1957 = vmatpush.msra.mxu0 %v1911
        %1958 = vmatpush.msra.mxu0 %v1909
        %1959 = vmatpush.msra.mxu0 %v1907
        %1960 = vmatpush.msra.mxu0 %v1905
        %1961 = vmatpush.msra.mxu0 %v1903
        %1962 = vmatpush.msra.mxu0 %v1901
        %1963 = vmatpush.msra.mxu0 %v1899
        %1964 = vmatpush.msra.mxu0 %v1897
        %1965 = vmatpush.msra.mxu0 %v1895
        %1966 = vmatpush.msra.mxu0 %v1893
        %1967 = vmatpush.msra.mxu0 %v1891
        %1968 = vmatpush.msra.mxu0 %v1889
        %1969 = vmatpush.msra.mxu0 %v1887
        %1970 = vmatpush.msra.mxu0 %v1885
        %1971 = vmatpush.msra.mxu0 %v1883
        %1972 = vmatpush.msra.mxu0 %v1881
        %1973 = vmatmul.f32.gmra.mxu0 %v1951
        %v1974 = vpop.f32.mrf.mxu0
        %v1975 = vadd.f32 0.0, %v1974
        %1976 = vdwg.mxu0
        %1977 = vmatpush.msra.mxu0 %v1943
        %1978 = vmatpush.msra.mxu0 %v1941
        %1979 = vmatpush.msra.mxu0 %v1939
        %1980 = vmatpush.msra.mxu0 %v1937
        %1981 = vmatpush.msra.mxu0 %v1935
        %1982 = vmatpush.msra.mxu0 %v1933
        %1983 = vmatpush.msra.mxu0 %v1931
        %1984 = vmatpush.msra.mxu0 %v1929
        %1985 = vmatpush.msra.mxu0 %v1927
        %1986 = vmatpush.msra.mxu0 %v1925
        %1987 = vmatpush.msra.mxu0 %v1923
        %1988 = vmatpush.msra.mxu0 %v1921
        %1989 = vmatpush.msra.mxu0 %v1919
        %1990 = vmatpush.msra.mxu0 %v1917
        %1991 = vmatpush.msra.mxu0 %v1915
        %1992 = vmatpush.msra.mxu0 %v1913
        %1993 = vmatmul.f32.gmra.mxu0 %v1954
        %v1994 = vpop.f32.mrf.mxu0
        %v1995 = vadd.f32 %v1975, %v1994
        %1996 = vdwg.mxu0
        %1997 = vmatpush.msra.mxu0 %v1912
        %1998 = vmatpush.msra.mxu0 %v1910
        %1999 = vmatpush.msra.mxu0 %v1908
        %2000 = vmatpush.msra.mxu0 %v1906
        %2001 = vmatpush.msra.mxu0 %v1904
        %2002 = vmatpush.msra.mxu0 %v1902
        %2003 = vmatpush.msra.mxu0 %v1900
        %2004 = vmatpush.msra.mxu0 %v1898
        %2005 = vmatpush.msra.mxu0 %v1896
        %2006 = vmatpush.msra.mxu0 %v1894
        %2007 = vmatpush.msra.mxu0 %v1892
        %2008 = vmatpush.msra.mxu0 %v1890
        %2009 = vmatpush.msra.mxu0 %v1888
        %2010 = vmatpush.msra.mxu0 %v1886
        %2011 = vmatpush.msra.mxu0 %v1884
        %2012 = vmatpush.msra.mxu0 %v1882
        %2013 = vmatmul.f32.gmra.mxu0 %v1951
        %v2014 = vpop.f32.mrf.mxu0
        %v2015 = vadd.f32 0.0, %v2014
        %2016 = vdwg.mxu0
        %2017 = vmatpush.msra.mxu0 %v1944
        %2018 = vmatpush.msra.mxu0 %v1942
        %2019 = vmatpush.msra.mxu0 %v1940
        %2020 = vmatpush.msra.mxu0 %v1938
        %2021 = vmatpush.msra.mxu0 %v1936
        %2022 = vmatpush.msra.mxu0 %v1934
        %2023 = vmatpush.msra.mxu0 %v1932
        %2024 = vmatpush.msra.mxu0 %v1930
        %2025 = vmatpush.msra.mxu0 %v1928
        %2026 = vmatpush.msra.mxu0 %v1926
        %2027 = vmatpush.msra.mxu0 %v1924
        %2028 = vmatpush.msra.mxu0 %v1922
        %2029 = vmatpush.msra.mxu0 %v1920
        %2030 = vmatpush.msra.mxu0 %v1918
        %2031 = vmatpush.msra.mxu0 %v1916
        %2032 = vmatpush.msra.mxu0 %v1914
        %2033 = vmatmul.f32.gmra.mxu0 %v1954
        %v2034 = vpop.f32.mrf.mxu0
        %v2035 = vadd.f32 %v2015, %v2034
        %2036 = vdwg.mxu0
        %v2037 = vadd.f32 %v1874, %v1995
        %v2038 = vadd.f32 %v1875, %v2035
        %v2039 = vld [vmem:[%s262] sm:$0xf0]
        %v2040 = vld [vmem:[%s262 + $0x8] sm:$0xf0]
        %v2041 = vld [vmem:[%s262 + $0x10] sm:$0xf]
        %v2042 = vld [vmem:[%s262 + $0x18] sm:$0xf]
        %s2043 = scalar_lea.vmem [#allocation7], 5632
        %v2044 = vld [vmem:[%s2043] sm:$0xff]
        %v2045 = vld [vmem:[%s2043 + $0x8] sm:$0xff]
        %v2046 = vld [vmem:[%s2043 + $0x10] sm:$0xff]
        %v2047 = vld [vmem:[%s2043 + $0x18] sm:$0xff]
        %v2048 = vld [vmem:[%s2043 + $0x20] sm:$0xff]
        %v2049 = vld [vmem:[%s2043 + $0x28] sm:$0xff]
        %v2050 = vld [vmem:[%s2043 + $0x30] sm:$0xff]
        %v2051 = vld [vmem:[%s2043 + $0x38] sm:$0xff]
        %v2052 = vld [vmem:[%s2043 + $0x40] sm:$0xff]
        %v2053 = vld [vmem:[%s2043 + $0x48] sm:$0xff]
        %v2054 = vld [vmem:[%s2043 + $0x50] sm:$0xff]
        %v2055 = vld [vmem:[%s2043 + $0x58] sm:$0xff]
        %v2056 = vld [vmem:[%s2043 + $0x60] sm:$0xff]
        %v2057 = vld [vmem:[%s2043 + $0x68] sm:$0xff]
        %v2058 = vld [vmem:[%s2043 + $0x70] sm:$0xff]
        %v2059 = vld [vmem:[%s2043 + $0x78] sm:$0xff]
        %v2060 = vld [vmem:[%s2043 + $0x80] sm:$0xff]
        %v2061 = vld [vmem:[%s2043 + $0x88] sm:$0xff]
        %v2062 = vld [vmem:[%s2043 + $0x90] sm:$0xff]
        %v2063 = vld [vmem:[%s2043 + $0x98] sm:$0xff]
        %v2064 = vld [vmem:[%s2043 + $0xa0] sm:$0xff]
        %v2065 = vld [vmem:[%s2043 + $0xa8] sm:$0xff]
        %v2066 = vld [vmem:[%s2043 + $0xb0] sm:$0xff]
        %v2067 = vld [vmem:[%s2043 + $0xb8] sm:$0xff]
        %v2068 = vld [vmem:[%s2043 + $0xc0] sm:$0xff]
        %v2069 = vld [vmem:[%s2043 + $0xc8] sm:$0xff]
        %v2070 = vld [vmem:[%s2043 + $0xd0] sm:$0xff]
        %v2071 = vld [vmem:[%s2043 + $0xd8] sm:$0xff]
        %v2072 = vld [vmem:[%s2043 + $0xe0] sm:$0xff]
        %v2073 = vld [vmem:[%s2043 + $0xe8] sm:$0xff]
        %v2074 = vld [vmem:[%s2043 + $0xf0] sm:$0xff]
        %v2075 = vld [vmem:[%s2043 + $0xf8] sm:$0xff]
        %v2076 = vld [vmem:[%s2043 + $0x100] sm:$0xff]
        %v2077 = vld [vmem:[%s2043 + $0x108] sm:$0xff]
        %v2078 = vld [vmem:[%s2043 + $0x110] sm:$0xff]
        %v2079 = vld [vmem:[%s2043 + $0x118] sm:$0xff]
        %v2080 = vld [vmem:[%s2043 + $0x120] sm:$0xff]
        %v2081 = vld [vmem:[%s2043 + $0x128] sm:$0xff]
        %v2082 = vld [vmem:[%s2043 + $0x130] sm:$0xff]
        %v2083 = vld [vmem:[%s2043 + $0x138] sm:$0xff]
        %v2084 = vld [vmem:[%s2043 + $0x140] sm:$0xff]
        %v2085 = vld [vmem:[%s2043 + $0x148] sm:$0xff]
        %v2086 = vld [vmem:[%s2043 + $0x150] sm:$0xff]
        %v2087 = vld [vmem:[%s2043 + $0x158] sm:$0xff]
        %v2088 = vld [vmem:[%s2043 + $0x160] sm:$0xff]
        %v2089 = vld [vmem:[%s2043 + $0x168] sm:$0xff]
        %v2090 = vld [vmem:[%s2043 + $0x170] sm:$0xff]
        %v2091 = vld [vmem:[%s2043 + $0x178] sm:$0xff]
        %v2092 = vld [vmem:[%s2043 + $0x180] sm:$0xff]
        %v2093 = vld [vmem:[%s2043 + $0x188] sm:$0xff]
        %v2094 = vld [vmem:[%s2043 + $0x190] sm:$0xff]
        %v2095 = vld [vmem:[%s2043 + $0x198] sm:$0xff]
        %v2096 = vld [vmem:[%s2043 + $0x1a0] sm:$0xff]
        %v2097 = vld [vmem:[%s2043 + $0x1a8] sm:$0xff]
        %v2098 = vld [vmem:[%s2043 + $0x1b0] sm:$0xff]
        %v2099 = vld [vmem:[%s2043 + $0x1b8] sm:$0xff]
        %v2100 = vld [vmem:[%s2043 + $0x1c0] sm:$0xff]
        %v2101 = vld [vmem:[%s2043 + $0x1c8] sm:$0xff]
        %v2102 = vld [vmem:[%s2043 + $0x1d0] sm:$0xff]
        %v2103 = vld [vmem:[%s2043 + $0x1d8] sm:$0xff]
        %v2104 = vld [vmem:[%s2043 + $0x1e0] sm:$0xff]
        %v2105 = vld [vmem:[%s2043 + $0x1e8] sm:$0xff]
        %v2106 = vld [vmem:[%s2043 + $0x1f0] sm:$0xff]
        %v2107 = vld [vmem:[%s2043 + $0x1f8] sm:$0xff]
        %v2112 = vrot.slane %v2039, 4
        %v2113 = vrot.slane %v2041, 4
        %v2114 = vsel %vm982, %v2112, %v2113
        %v2115 = vrot.slane %v2040, 4
        %v2116 = vrot.slane %v2042, 4
        %v2117 = vsel %vm982, %v2115, %v2116
        %2120 = vmatpush.msra.mxu0 %v2074
        %2121 = vmatpush.msra.mxu0 %v2072
        %2122 = vmatpush.msra.mxu0 %v2070
        %2123 = vmatpush.msra.mxu0 %v2068
        %2124 = vmatpush.msra.mxu0 %v2066
        %2125 = vmatpush.msra.mxu0 %v2064
        %2126 = vmatpush.msra.mxu0 %v2062
        %2127 = vmatpush.msra.mxu0 %v2060
        %2128 = vmatpush.msra.mxu0 %v2058
        %2129 = vmatpush.msra.mxu0 %v2056
        %2130 = vmatpush.msra.mxu0 %v2054
        %2131 = vmatpush.msra.mxu0 %v2052
        %2132 = vmatpush.msra.mxu0 %v2050
        %2133 = vmatpush.msra.mxu0 %v2048
        %2134 = vmatpush.msra.mxu0 %v2046
        %2135 = vmatpush.msra.mxu0 %v2044
        %2136 = vmatmul.f32.gmra.mxu0 %v2114
        %v2137 = vpop.f32.mrf.mxu0
        %v2138 = vadd.f32 0.0, %v2137
        %2139 = vdwg.mxu0
        %2140 = vmatpush.msra.mxu0 %v2106
        %2141 = vmatpush.msra.mxu0 %v2104
        %2142 = vmatpush.msra.mxu0 %v2102
        %2143 = vmatpush.msra.mxu0 %v2100
        %2144 = vmatpush.msra.mxu0 %v2098
        %2145 = vmatpush.msra.mxu0 %v2096
        %2146 = vmatpush.msra.mxu0 %v2094
        %2147 = vmatpush.msra.mxu0 %v2092
        %2148 = vmatpush.msra.mxu0 %v2090
        %2149 = vmatpush.msra.mxu0 %v2088
        %2150 = vmatpush.msra.mxu0 %v2086
        %2151 = vmatpush.msra.mxu0 %v2084
        %2152 = vmatpush.msra.mxu0 %v2082
        %2153 = vmatpush.msra.mxu0 %v2080
        %2154 = vmatpush.msra.mxu0 %v2078
        %2155 = vmatpush.msra.mxu0 %v2076
        %2156 = vmatmul.f32.gmra.mxu0 %v2117
        %v2157 = vpop.f32.mrf.mxu0
        %v2158 = vadd.f32 %v2138, %v2157
        %2159 = vdwg.mxu0
        %2160 = vmatpush.msra.mxu0 %v2075
        %2161 = vmatpush.msra.mxu0 %v2073
        %2162 = vmatpush.msra.mxu0 %v2071
        %2163 = vmatpush.msra.mxu0 %v2069
        %2164 = vmatpush.msra.mxu0 %v2067
        %2165 = vmatpush.msra.mxu0 %v2065
        %2166 = vmatpush.msra.mxu0 %v2063
        %2167 = vmatpush.msra.mxu0 %v2061
        %2168 = vmatpush.msra.mxu0 %v2059
        %2169 = vmatpush.msra.mxu0 %v2057
        %2170 = vmatpush.msra.mxu0 %v2055
        %2171 = vmatpush.msra.mxu0 %v2053
        %2172 = vmatpush.msra.mxu0 %v2051
        %2173 = vmatpush.msra.mxu0 %v2049
        %2174 = vmatpush.msra.mxu0 %v2047
        %2175 = vmatpush.msra.mxu0 %v2045
        %2176 = vmatmul.f32.gmra.mxu0 %v2114
        %v2177 = vpop.f32.mrf.mxu0
        %v2178 = vadd.f32 0.0, %v2177
        %2179 = vdwg.mxu0
        %2180 = vmatpush.msra.mxu0 %v2107
        %2181 = vmatpush.msra.mxu0 %v2105
        %2182 = vmatpush.msra.mxu0 %v2103
        %2183 = vmatpush.msra.mxu0 %v2101
        %2184 = vmatpush.msra.mxu0 %v2099
        %2185 = vmatpush.msra.mxu0 %v2097
        %2186 = vmatpush.msra.mxu0 %v2095
        %2187 = vmatpush.msra.mxu0 %v2093
        %2188 = vmatpush.msra.mxu0 %v2091
        %2189 = vmatpush.msra.mxu0 %v2089
        %2190 = vmatpush.msra.mxu0 %v2087
        %2191 = vmatpush.msra.mxu0 %v2085
        %2192 = vmatpush.msra.mxu0 %v2083
        %2193 = vmatpush.msra.mxu0 %v2081
        %2194 = vmatpush.msra.mxu0 %v2079
        %2195 = vmatpush.msra.mxu0 %v2077
        %2196 = vmatmul.f32.gmra.mxu0 %v2117
        %v2197 = vpop.f32.mrf.mxu0
        %v2198 = vadd.f32 %v2178, %v2197
        %2199 = vdwg.mxu0
        %v2200 = vadd.f32 %v2037, %v2158
        %v2201 = vadd.f32 %v2038, %v2198
        %v2202 = vld [vmem:[%s262] sm:$0xe0]
        %v2203 = vld [vmem:[%s262 + $0x8] sm:$0xe0]
        %v2204 = vld [vmem:[%s262 + $0x10] sm:$0x1f]
        %v2205 = vld [vmem:[%s262 + $0x18] sm:$0x1f]
        %s2206 = scalar_lea.vmem [#allocation7], 6144
        %v2207 = vld [vmem:[%s2206] sm:$0xff]
        %v2208 = vld [vmem:[%s2206 + $0x8] sm:$0xff]
        %v2209 = vld [vmem:[%s2206 + $0x10] sm:$0xff]
        %v2210 = vld [vmem:[%s2206 + $0x18] sm:$0xff]
        %v2211 = vld [vmem:[%s2206 + $0x20] sm:$0xff]
        %v2212 = vld [vmem:[%s2206 + $0x28] sm:$0xff]
        %v2213 = vld [vmem:[%s2206 + $0x30] sm:$0xff]
        %v2214 = vld [vmem:[%s2206 + $0x38] sm:$0xff]
        %v2215 = vld [vmem:[%s2206 + $0x40] sm:$0xff]
        %v2216 = vld [vmem:[%s2206 + $0x48] sm:$0xff]
        %v2217 = vld [vmem:[%s2206 + $0x50] sm:$0xff]
        %v2218 = vld [vmem:[%s2206 + $0x58] sm:$0xff]
        %v2219 = vld [vmem:[%s2206 + $0x60] sm:$0xff]
        %v2220 = vld [vmem:[%s2206 + $0x68] sm:$0xff]
        %v2221 = vld [vmem:[%s2206 + $0x70] sm:$0xff]
        %v2222 = vld [vmem:[%s2206 + $0x78] sm:$0xff]
        %v2223 = vld [vmem:[%s2206 + $0x80] sm:$0xff]
        %v2224 = vld [vmem:[%s2206 + $0x88] sm:$0xff]
        %v2225 = vld [vmem:[%s2206 + $0x90] sm:$0xff]
        %v2226 = vld [vmem:[%s2206 + $0x98] sm:$0xff]
        %v2227 = vld [vmem:[%s2206 + $0xa0] sm:$0xff]
        %v2228 = vld [vmem:[%s2206 + $0xa8] sm:$0xff]
        %v2229 = vld [vmem:[%s2206 + $0xb0] sm:$0xff]
        %v2230 = vld [vmem:[%s2206 + $0xb8] sm:$0xff]
        %v2231 = vld [vmem:[%s2206 + $0xc0] sm:$0xff]
        %v2232 = vld [vmem:[%s2206 + $0xc8] sm:$0xff]
        %v2233 = vld [vmem:[%s2206 + $0xd0] sm:$0xff]
        %v2234 = vld [vmem:[%s2206 + $0xd8] sm:$0xff]
        %v2235 = vld [vmem:[%s2206 + $0xe0] sm:$0xff]
        %v2236 = vld [vmem:[%s2206 + $0xe8] sm:$0xff]
        %v2237 = vld [vmem:[%s2206 + $0xf0] sm:$0xff]
        %v2238 = vld [vmem:[%s2206 + $0xf8] sm:$0xff]
        %v2239 = vld [vmem:[%s2206 + $0x100] sm:$0xff]
        %v2240 = vld [vmem:[%s2206 + $0x108] sm:$0xff]
        %v2241 = vld [vmem:[%s2206 + $0x110] sm:$0xff]
        %v2242 = vld [vmem:[%s2206 + $0x118] sm:$0xff]
        %v2243 = vld [vmem:[%s2206 + $0x120] sm:$0xff]
        %v2244 = vld [vmem:[%s2206 + $0x128] sm:$0xff]
        %v2245 = vld [vmem:[%s2206 + $0x130] sm:$0xff]
        %v2246 = vld [vmem:[%s2206 + $0x138] sm:$0xff]
        %v2247 = vld [vmem:[%s2206 + $0x140] sm:$0xff]
        %v2248 = vld [vmem:[%s2206 + $0x148] sm:$0xff]
        %v2249 = vld [vmem:[%s2206 + $0x150] sm:$0xff]
        %v2250 = vld [vmem:[%s2206 + $0x158] sm:$0xff]
        %v2251 = vld [vmem:[%s2206 + $0x160] sm:$0xff]
        %v2252 = vld [vmem:[%s2206 + $0x168] sm:$0xff]
        %v2253 = vld [vmem:[%s2206 + $0x170] sm:$0xff]
        %v2254 = vld [vmem:[%s2206 + $0x178] sm:$0xff]
        %v2255 = vld [vmem:[%s2206 + $0x180] sm:$0xff]
        %v2256 = vld [vmem:[%s2206 + $0x188] sm:$0xff]
        %v2257 = vld [vmem:[%s2206 + $0x190] sm:$0xff]
        %v2258 = vld [vmem:[%s2206 + $0x198] sm:$0xff]
        %v2259 = vld [vmem:[%s2206 + $0x1a0] sm:$0xff]
        %v2260 = vld [vmem:[%s2206 + $0x1a8] sm:$0xff]
        %v2261 = vld [vmem:[%s2206 + $0x1b0] sm:$0xff]
        %v2262 = vld [vmem:[%s2206 + $0x1b8] sm:$0xff]
        %v2263 = vld [vmem:[%s2206 + $0x1c0] sm:$0xff]
        %v2264 = vld [vmem:[%s2206 + $0x1c8] sm:$0xff]
        %v2265 = vld [vmem:[%s2206 + $0x1d0] sm:$0xff]
        %v2266 = vld [vmem:[%s2206 + $0x1d8] sm:$0xff]
        %v2267 = vld [vmem:[%s2206 + $0x1e0] sm:$0xff]
        %v2268 = vld [vmem:[%s2206 + $0x1e8] sm:$0xff]
        %v2269 = vld [vmem:[%s2206 + $0x1f0] sm:$0xff]
        %v2270 = vld [vmem:[%s2206 + $0x1f8] sm:$0xff]
        %v2275 = vrot.slane %v2202, 5
        %v2276 = vrot.slane %v2204, 5
        %v2277 = vsel %vm1146, %v2275, %v2276
        %v2278 = vrot.slane %v2203, 5
        %v2279 = vrot.slane %v2205, 5
        %v2280 = vsel %vm1146, %v2278, %v2279
        %2283 = vmatpush.msra.mxu0 %v2237
        %2284 = vmatpush.msra.mxu0 %v2235
        %2285 = vmatpush.msra.mxu0 %v2233
        %2286 = vmatpush.msra.mxu0 %v2231
        %2287 = vmatpush.msra.mxu0 %v2229
        %2288 = vmatpush.msra.mxu0 %v2227
        %2289 = vmatpush.msra.mxu0 %v2225
        %2290 = vmatpush.msra.mxu0 %v2223
        %2291 = vmatpush.msra.mxu0 %v2221
        %2292 = vmatpush.msra.mxu0 %v2219
        %2293 = vmatpush.msra.mxu0 %v2217
        %2294 = vmatpush.msra.mxu0 %v2215
        %2295 = vmatpush.msra.mxu0 %v2213
        %2296 = vmatpush.msra.mxu0 %v2211
        %2297 = vmatpush.msra.mxu0 %v2209
        %2298 = vmatpush.msra.mxu0 %v2207
        %2299 = vmatmul.f32.gmra.mxu0 %v2277
        %v2300 = vpop.f32.mrf.mxu0
        %v2301 = vadd.f32 0.0, %v2300
        %2302 = vdwg.mxu0
        %2303 = vmatpush.msra.mxu0 %v2269
        %2304 = vmatpush.msra.mxu0 %v2267
        %2305 = vmatpush.msra.mxu0 %v2265
        %2306 = vmatpush.msra.mxu0 %v2263
        %2307 = vmatpush.msra.mxu0 %v2261
        %2308 = vmatpush.msra.mxu0 %v2259
        %2309 = vmatpush.msra.mxu0 %v2257
        %2310 = vmatpush.msra.mxu0 %v2255
        %2311 = vmatpush.msra.mxu0 %v2253
        %2312 = vmatpush.msra.mxu0 %v2251
        %2313 = vmatpush.msra.mxu0 %v2249
        %2314 = vmatpush.msra.mxu0 %v2247
        %2315 = vmatpush.msra.mxu0 %v2245
        %2316 = vmatpush.msra.mxu0 %v2243
        %2317 = vmatpush.msra.mxu0 %v2241
        %2318 = vmatpush.msra.mxu0 %v2239
        %2319 = vmatmul.f32.gmra.mxu0 %v2280
        %v2320 = vpop.f32.mrf.mxu0
        %v2321 = vadd.f32 %v2301, %v2320
        %2322 = vdwg.mxu0
        %2323 = vmatpush.msra.mxu0 %v2238
        %2324 = vmatpush.msra.mxu0 %v2236
        %2325 = vmatpush.msra.mxu0 %v2234
        %2326 = vmatpush.msra.mxu0 %v2232
        %2327 = vmatpush.msra.mxu0 %v2230
        %2328 = vmatpush.msra.mxu0 %v2228
        %2329 = vmatpush.msra.mxu0 %v2226
        %2330 = vmatpush.msra.mxu0 %v2224
        %2331 = vmatpush.msra.mxu0 %v2222
        %2332 = vmatpush.msra.mxu0 %v2220
        %2333 = vmatpush.msra.mxu0 %v2218
        %2334 = vmatpush.msra.mxu0 %v2216
        %2335 = vmatpush.msra.mxu0 %v2214
        %2336 = vmatpush.msra.mxu0 %v2212
        %2337 = vmatpush.msra.mxu0 %v2210
        %2338 = vmatpush.msra.mxu0 %v2208
        %2339 = vmatmul.f32.gmra.mxu0 %v2277
        %v2340 = vpop.f32.mrf.mxu0
        %v2341 = vadd.f32 0.0, %v2340
        %2342 = vdwg.mxu0
        %2343 = vmatpush.msra.mxu0 %v2270
        %2344 = vmatpush.msra.mxu0 %v2268
        %2345 = vmatpush.msra.mxu0 %v2266
        %2346 = vmatpush.msra.mxu0 %v2264
        %2347 = vmatpush.msra.mxu0 %v2262
        %2348 = vmatpush.msra.mxu0 %v2260
        %2349 = vmatpush.msra.mxu0 %v2258
        %2350 = vmatpush.msra.mxu0 %v2256
        %2351 = vmatpush.msra.mxu0 %v2254
        %2352 = vmatpush.msra.mxu0 %v2252
        %2353 = vmatpush.msra.mxu0 %v2250
        %2354 = vmatpush.msra.mxu0 %v2248
        %2355 = vmatpush.msra.mxu0 %v2246
        %2356 = vmatpush.msra.mxu0 %v2244
        %2357 = vmatpush.msra.mxu0 %v2242
        %2358 = vmatpush.msra.mxu0 %v2240
        %2359 = vmatmul.f32.gmra.mxu0 %v2280
        %v2360 = vpop.f32.mrf.mxu0
        %v2361 = vadd.f32 %v2341, %v2360
        %2362 = vdwg.mxu0
        %v2363 = vadd.f32 %v2200, %v2321
        %v2364 = vadd.f32 %v2201, %v2361
        %v2365 = vld [vmem:[%s262] sm:$0xc0]
        %v2366 = vld [vmem:[%s262 + $0x8] sm:$0xc0]
        %v2367 = vld [vmem:[%s262 + $0x10] sm:$0x3f]
        %v2368 = vld [vmem:[%s262 + $0x18] sm:$0x3f]
        %s2369 = scalar_lea.vmem [#allocation7], 6656
        %v2370 = vld [vmem:[%s2369] sm:$0xff]
        %v2371 = vld [vmem:[%s2369 + $0x8] sm:$0xff]
        %v2372 = vld [vmem:[%s2369 + $0x10] sm:$0xff]
        %v2373 = vld [vmem:[%s2369 + $0x18] sm:$0xff]
        %v2374 = vld [vmem:[%s2369 + $0x20] sm:$0xff]
        %v2375 = vld [vmem:[%s2369 + $0x28] sm:$0xff]
        %v2376 = vld [vmem:[%s2369 + $0x30] sm:$0xff]
        %v2377 = vld [vmem:[%s2369 + $0x38] sm:$0xff]
        %v2378 = vld [vmem:[%s2369 + $0x40] sm:$0xff]
        %v2379 = vld [vmem:[%s2369 + $0x48] sm:$0xff]
        %v2380 = vld [vmem:[%s2369 + $0x50] sm:$0xff]
        %v2381 = vld [vmem:[%s2369 + $0x58] sm:$0xff]
        %v2382 = vld [vmem:[%s2369 + $0x60] sm:$0xff]
        %v2383 = vld [vmem:[%s2369 + $0x68] sm:$0xff]
        %v2384 = vld [vmem:[%s2369 + $0x70] sm:$0xff]
        %v2385 = vld [vmem:[%s2369 + $0x78] sm:$0xff]
        %v2386 = vld [vmem:[%s2369 + $0x80] sm:$0xff]
        %v2387 = vld [vmem:[%s2369 + $0x88] sm:$0xff]
        %v2388 = vld [vmem:[%s2369 + $0x90] sm:$0xff]
        %v2389 = vld [vmem:[%s2369 + $0x98] sm:$0xff]
        %v2390 = vld [vmem:[%s2369 + $0xa0] sm:$0xff]
        %v2391 = vld [vmem:[%s2369 + $0xa8] sm:$0xff]
        %v2392 = vld [vmem:[%s2369 + $0xb0] sm:$0xff]
        %v2393 = vld [vmem:[%s2369 + $0xb8] sm:$0xff]
        %v2394 = vld [vmem:[%s2369 + $0xc0] sm:$0xff]
        %v2395 = vld [vmem:[%s2369 + $0xc8] sm:$0xff]
        %v2396 = vld [vmem:[%s2369 + $0xd0] sm:$0xff]
        %v2397 = vld [vmem:[%s2369 + $0xd8] sm:$0xff]
        %v2398 = vld [vmem:[%s2369 + $0xe0] sm:$0xff]
        %v2399 = vld [vmem:[%s2369 + $0xe8] sm:$0xff]
        %v2400 = vld [vmem:[%s2369 + $0xf0] sm:$0xff]
        %v2401 = vld [vmem:[%s2369 + $0xf8] sm:$0xff]
        %v2402 = vld [vmem:[%s2369 + $0x100] sm:$0xff]
        %v2403 = vld [vmem:[%s2369 + $0x108] sm:$0xff]
        %v2404 = vld [vmem:[%s2369 + $0x110] sm:$0xff]
        %v2405 = vld [vmem:[%s2369 + $0x118] sm:$0xff]
        %v2406 = vld [vmem:[%s2369 + $0x120] sm:$0xff]
        %v2407 = vld [vmem:[%s2369 + $0x128] sm:$0xff]
        %v2408 = vld [vmem:[%s2369 + $0x130] sm:$0xff]
        %v2409 = vld [vmem:[%s2369 + $0x138] sm:$0xff]
        %v2410 = vld [vmem:[%s2369 + $0x140] sm:$0xff]
        %v2411 = vld [vmem:[%s2369 + $0x148] sm:$0xff]
        %v2412 = vld [vmem:[%s2369 + $0x150] sm:$0xff]
        %v2413 = vld [vmem:[%s2369 + $0x158] sm:$0xff]
        %v2414 = vld [vmem:[%s2369 + $0x160] sm:$0xff]
        %v2415 = vld [vmem:[%s2369 + $0x168] sm:$0xff]
        %v2416 = vld [vmem:[%s2369 + $0x170] sm:$0xff]
        %v2417 = vld [vmem:[%s2369 + $0x178] sm:$0xff]
        %v2418 = vld [vmem:[%s2369 + $0x180] sm:$0xff]
        %v2419 = vld [vmem:[%s2369 + $0x188] sm:$0xff]
        %v2420 = vld [vmem:[%s2369 + $0x190] sm:$0xff]
        %v2421 = vld [vmem:[%s2369 + $0x198] sm:$0xff]
        %v2422 = vld [vmem:[%s2369 + $0x1a0] sm:$0xff]
        %v2423 = vld [vmem:[%s2369 + $0x1a8] sm:$0xff]
        %v2424 = vld [vmem:[%s2369 + $0x1b0] sm:$0xff]
        %v2425 = vld [vmem:[%s2369 + $0x1b8] sm:$0xff]
        %v2426 = vld [vmem:[%s2369 + $0x1c0] sm:$0xff]
        %v2427 = vld [vmem:[%s2369 + $0x1c8] sm:$0xff]
        %v2428 = vld [vmem:[%s2369 + $0x1d0] sm:$0xff]
        %v2429 = vld [vmem:[%s2369 + $0x1d8] sm:$0xff]
        %v2430 = vld [vmem:[%s2369 + $0x1e0] sm:$0xff]
        %v2431 = vld [vmem:[%s2369 + $0x1e8] sm:$0xff]
        %v2432 = vld [vmem:[%s2369 + $0x1f0] sm:$0xff]
        %v2433 = vld [vmem:[%s2369 + $0x1f8] sm:$0xff]
        %v2438 = vrot.slane %v2365, 6
        %v2439 = vrot.slane %v2367, 6
        %v2440 = vsel %vm1310, %v2438, %v2439
        %v2441 = vrot.slane %v2366, 6
        %v2442 = vrot.slane %v2368, 6
        %v2443 = vsel %vm1310, %v2441, %v2442
        %2446 = vmatpush.msra.mxu0 %v2400
        %2447 = vmatpush.msra.mxu0 %v2398
        %2448 = vmatpush.msra.mxu0 %v2396
        %2449 = vmatpush.msra.mxu0 %v2394
        %2450 = vmatpush.msra.mxu0 %v2392
        %2451 = vmatpush.msra.mxu0 %v2390
        %2452 = vmatpush.msra.mxu0 %v2388
        %2453 = vmatpush.msra.mxu0 %v2386
        %2454 = vmatpush.msra.mxu0 %v2384
        %2455 = vmatpush.msra.mxu0 %v2382
        %2456 = vmatpush.msra.mxu0 %v2380
        %2457 = vmatpush.msra.mxu0 %v2378
        %2458 = vmatpush.msra.mxu0 %v2376
        %2459 = vmatpush.msra.mxu0 %v2374
        %2460 = vmatpush.msra.mxu0 %v2372
        %2461 = vmatpush.msra.mxu0 %v2370
        %2462 = vmatmul.f32.gmra.mxu0 %v2440
        %v2463 = vpop.f32.mrf.mxu0
        %v2464 = vadd.f32 0.0, %v2463
        %2465 = vdwg.mxu0
        %2466 = vmatpush.msra.mxu0 %v2432
        %2467 = vmatpush.msra.mxu0 %v2430
        %2468 = vmatpush.msra.mxu0 %v2428
        %2469 = vmatpush.msra.mxu0 %v2426
        %2470 = vmatpush.msra.mxu0 %v2424
        %2471 = vmatpush.msra.mxu0 %v2422
        %2472 = vmatpush.msra.mxu0 %v2420
        %2473 = vmatpush.msra.mxu0 %v2418
        %2474 = vmatpush.msra.mxu0 %v2416
        %2475 = vmatpush.msra.mxu0 %v2414
        %2476 = vmatpush.msra.mxu0 %v2412
        %2477 = vmatpush.msra.mxu0 %v2410
        %2478 = vmatpush.msra.mxu0 %v2408
        %2479 = vmatpush.msra.mxu0 %v2406
        %2480 = vmatpush.msra.mxu0 %v2404
        %2481 = vmatpush.msra.mxu0 %v2402
        %2482 = vmatmul.f32.gmra.mxu0 %v2443
        %v2483 = vpop.f32.mrf.mxu0
        %v2484 = vadd.f32 %v2464, %v2483
        %2485 = vdwg.mxu0
        %2486 = vmatpush.msra.mxu0 %v2401
        %2487 = vmatpush.msra.mxu0 %v2399
        %2488 = vmatpush.msra.mxu0 %v2397
        %2489 = vmatpush.msra.mxu0 %v2395
        %2490 = vmatpush.msra.mxu0 %v2393
        %2491 = vmatpush.msra.mxu0 %v2391
        %2492 = vmatpush.msra.mxu0 %v2389
        %2493 = vmatpush.msra.mxu0 %v2387
        %2494 = vmatpush.msra.mxu0 %v2385
        %2495 = vmatpush.msra.mxu0 %v2383
        %2496 = vmatpush.msra.mxu0 %v2381
        %2497 = vmatpush.msra.mxu0 %v2379
        %2498 = vmatpush.msra.mxu0 %v2377
        %2499 = vmatpush.msra.mxu0 %v2375
        %2500 = vmatpush.msra.mxu0 %v2373
        %2501 = vmatpush.msra.mxu0 %v2371
        %2502 = vmatmul.f32.gmra.mxu0 %v2440
        %v2503 = vpop.f32.mrf.mxu0
        %v2504 = vadd.f32 0.0, %v2503
        %2505 = vdwg.mxu0
        %2506 = vmatpush.msra.mxu0 %v2433
        %2507 = vmatpush.msra.mxu0 %v2431
        %2508 = vmatpush.msra.mxu0 %v2429
        %2509 = vmatpush.msra.mxu0 %v2427
        %2510 = vmatpush.msra.mxu0 %v2425
        %2511 = vmatpush.msra.mxu0 %v2423
        %2512 = vmatpush.msra.mxu0 %v2421
        %2513 = vmatpush.msra.mxu0 %v2419
        %2514 = vmatpush.msra.mxu0 %v2417
        %2515 = vmatpush.msra.mxu0 %v2415
        %2516 = vmatpush.msra.mxu0 %v2413
        %2517 = vmatpush.msra.mxu0 %v2411
        %2518 = vmatpush.msra.mxu0 %v2409
        %2519 = vmatpush.msra.mxu0 %v2407
        %2520 = vmatpush.msra.mxu0 %v2405
        %2521 = vmatpush.msra.mxu0 %v2403
        %2522 = vmatmul.f32.gmra.mxu0 %v2443
        %v2523 = vpop.f32.mrf.mxu0
        %v2524 = vadd.f32 %v2504, %v2523
        %2525 = vdwg.mxu0
        %v2526 = vadd.f32 %v2363, %v2484
        %v2527 = vadd.f32 %v2364, %v2524
        %v2528 = vxor.u32 %v2526, 2147483648
        %v2529 = vxor.u32 %v2527, 2147483648
        %v2530 = vmul.f32 %v2528, 1.442695
        %v2531 = vpow.pop %v2530
        %v2532 = vmul.f32 %v2529, 1.442695
        %v2533 = vpow.pop %v2532
        %v2534 = vadd.f32 %v2531, 1.0
        %v2535 = vadd.f32 %v2533, 1.0
        %v2536 = vrcp.pop %v2534
        %v2537 = vmul.f32 %v2534, %v2536
        %v2538 = vsub.f32 1.0, %v2537
        %v2539 = vmul.f32 %v2536, %v2538
        %v2540 = vadd.f32 %v2536, %v2539
        %vm2541 = vweird.f32 %v2534
        %vm2542 = vweird.f32 %v2536
        %vm2543 = vmor %vm2541, %vm2542
        %v2544 = vsel %vm2543, %v2536, %v2540
        %v2545 = vand.u32 2147483647, %v2534
        %vm2546 = vcmp.eq.f32.partialorder %v2545, 8.507059e+37
        %v2547 = vand.u32 %v2534, 2147483648
        %v2548 = vor.u32 1.1754944e-38, %v2547
        %v2549 = vsel %vm2546, %v2548, %v2544
        %v2550 = vmul.f32 1.0, %v2549
        %v2551 = vrcp.pop %v2535
        %v2552 = vmul.f32 %v2535, %v2551
        %v2553 = vsub.f32 1.0, %v2552
        %v2554 = vmul.f32 %v2551, %v2553
        %v2555 = vadd.f32 %v2551, %v2554
        %vm2556 = vweird.f32 %v2535
        %vm2557 = vweird.f32 %v2551
        %vm2558 = vmor %vm2556, %vm2557
        %v2559 = vsel %vm2558, %v2551, %v2555
        %v2560 = vand.u32 2147483647, %v2535
        %vm2561 = vcmp.eq.f32.partialorder %v2560, 8.507059e+37
        %v2562 = vand.u32 %v2535, 2147483648
        %v2563 = vor.u32 1.1754944e-38, %v2562
        %v2564 = vsel %vm2561, %v2563, %v2559
        %v2565 = vmul.f32 1.0, %v2564
        %v2566 = vmul.f32 %v209, %v2550
        %v2567 = vmul.f32 %v210, %v2565
        %v2568 = vmul.f32 %v211, %v2550
        %v2569 = vmul.f32 %v212, %v2565
        %v2570 = vmul.f32 %v213, %v2550
        %v2571 = vmul.f32 %v214, %v2565
        %v2572 = vmul.f32 %v215, %v2550
        %v2573 = vmul.f32 %v216, %v2565
        %2574 = vst [vmem:[%s208] sm:$0xff] %v2566
        %2575 = vst [vmem:[%s208 + $0x8] sm:$0xff] %v2567
        %2576 = vst [vmem:[%s208 + $0x10] sm:$0xff] %v2568
        %2577 = vst [vmem:[%s208 + $0x18] sm:$0xff] %v2569
        %2578 = vst [vmem:[%s208 + $0x20] sm:$0xff] %v2570
        %2579 = vst [vmem:[%s208 + $0x28] sm:$0xff] %v2571
        %2580 = vst [vmem:[%s208 + $0x30] sm:$0xff] %v2572
        %2581 = vst [vmem:[%s208 + $0x38] sm:$0xff] %v2573
        %s2582 = sand.u32 %s98, 1
        %s2583 = scalar_lea.sflag [#allocation6], %s2582
        %s2584 = sand.u32 %s98, 1
        %s2585 = smul.addr %s2584, 64
        %s2586 = scalar_lea.vmem [#allocation9], %s2585
        // Predicated region
        $region41: #{tpu_custom_call.1} parent=31 // pred_check
          %p2587 = pneg %p108
        $region42: #{tpu_custom_call.1} parent=31 // pred_check_branch
          %2589 = sbr.rel (%p2587) target = $region44
        $region43: #{tpu_custom_call.1} parent=31 // pred_region
          %2591 = vsyncadd %s2583, 0
          %s2592 = smul.addr %s22, 8
          %s2593 = smul.addr %s2592, 8
          %s2594 = scalar_lea.hbm %s3, %s2593
          %s2595 = sshll.u32 %s2586, 4
          %s2596 = int_to_ptr.vmem [resolvable:$true] %s2595
          %s2597 = sshll.u32 %s2594, 4
          %s2598 = int_to_ptr.hbm [resolvable:$true] %s2597
          %2603 = dma.vmem_to_hbm [thread:$0]  %s2596, 1024, %s2598, %s2583, 256, 256, 16
        $region44: #{tpu_custom_call.1} parent=31 // pred_fallthru
          _
      $region32: #{tpu_custom_call.1} parent=5 // pred_fallthru
        _
      %p2604 = scmp.le.s32.totalorder 2, %s17
      // Predicated region
      $region45: #{tpu_custom_call.1} parent=5 // pred_check
        %p2605 = pneg %p2604
      $region46: #{tpu_custom_call.1} parent=5 // pred_check_branch
        %2607 = sbr.rel (%p2605) target = $region48
      $region47: #{tpu_custom_call.1} parent=5 // pred_region
        %s2608 = ssub.s32 %s17, 2
        // Predicated region
        $region49: #{tpu_custom_call.1} parent=47 // pred_check
          %p2609 = pneg %p114
        $region50: #{tpu_custom_call.1} parent=47 // pred_check_branch
          %2611 = sbr.rel (%p2609) target = $region52
        $region51: #{tpu_custom_call.1} parent=47 // pred_region
          %s2612 = sand.u32 %s99, 1
          %s2613 = scalar_lea.sflag [#allocation6], %s2612
          %s2614 = sand.u32 %s99, 1
          %s2615 = smul.addr %s2614, 64
          %s2616 = scalar_lea.vmem [#allocation9], %s2615
          %2618 = dma.done %s2613, 1024
        $region52: #{tpu_custom_call.1} parent=47 // pred_fallthru
          _
      $region48: #{tpu_custom_call.1} parent=5 // pred_fallthru
        _
    $region6: #{tpu_custom_call.1} parent=1 // loop_footer
      %s21 = sadd.s32 1, %s17
    $region7: #{tpu_custom_call.1} parent=1 // loop_footer_branch
      %16 = sbr.rel target = $region3
    $region8: #{tpu_custom_call.1} parent=1 // loop_exit
      _
    %2619 = vsyncpa [#allocation5], 1
    %s2620 = scalar_lea.sflag [#allocation5], 1
    %2621 = vsyncpa %s2620, 1
    %2622 = vsyncpa [#allocation8], 1
    %2623 = vsyncpa [#allocation6], 1
    %s2624 = scalar_lea.sflag [#allocation6], 1
    %2625 = vsyncpa %s2624, 1

</llo_original>
